<compile_context>
chip_gen: v5e
topology: v5e:2x2
jax: 0.10.0
libtpu: 0.0.40
codegen_flags: <defaults>
</compile_context>

<pallas_src>
import functools

import jax
import jax.numpy as jnp
from jax import lax
from jax.experimental import pallas as pl
from jax.experimental.pallas import tpu as pltpu


def _score_kernel(src_ref, dst_ref, e_ref, x_ref, w1_ref, b1_ref, w2_ref, b2_ref,
                  o_ref, *, row_chunk, compute_dtype):
    n_nodes, feat = x_ref.shape
    tile = e_ref.shape[0]
    num_chunks = tile // row_chunk

    # Small resident operands (loaded once per grid step; a few KiB).
    x_c = x_ref[...].astype(compute_dtype)                        # [N, F]
    w1 = w1_ref[...].astype(compute_dtype)                        # [3F, H]
    b1 = b1_ref[...]                                              # [1, H] f32
    w2 = w2_ref[...]                                              # [1, H] f32
    b2 = b2_ref[0]                                                # scalar f32

    # Fold the endpoint gather through W1:  x[src] @ W1a == onehot(src) @ (x @ W1a).
    xw_src = jnp.dot(x_c, w1[:feat, :], preferred_element_type=jnp.float32)          # [N, H]
    xw_dst = jnp.dot(x_c, w1[feat:2 * feat, :], preferred_element_type=jnp.float32)  # [N, H]
    w1_e = w1[2 * feat:, :]                                                           # [F, H]

    # Hoisted loop-invariant broadcast (JAX does not CSE broadcast_in_dim).
    node_iota = lax.broadcasted_iota(jnp.int32, (row_chunk, n_nodes), 1)

    # Fully-unrolled chunk loop with static, lane/sublane-aligned slices; each chunk's
    # intermediates die at its output store, bounding f32 vreg pressure (h is only
    # [row_chunk, H] at a time instead of [edge_tile, H]).
    for c in range(num_chunks):
        lo = c * row_chunk
        rows = pl.ds(lo, row_chunk)

        src = src_ref[rows, :]                                    # [chunk, 1] int32
        dst = dst_ref[rows, :]                                    # [chunk, 1] int32
        e_blk = e_ref[rows, :].astype(compute_dtype)              # [chunk, F]

        # Exact row selection via one-hot (f32, so the gather-matmul is exact).
        oh_src = (src == node_iota).astype(jnp.float32)           # [chunk, N]
        oh_dst = (dst == node_iota).astype(jnp.float32)           # [chunk, N]

        h = (jnp.dot(oh_src, xw_src, preferred_element_type=jnp.float32)
             + jnp.dot(oh_dst, xw_dst, preferred_element_type=jnp.float32)
             + jnp.dot(e_blk, w1_e, preferred_element_type=jnp.float32)
             + b1)                                                # [chunk, H] f32
        h = jnp.maximum(h, 0.0)

        # mlp2 (H -> 1) as a lane-dense [1, chunk] row: contract H of w2 with H of h.
        score = lax.dot_general(
            w2, h, dimension_numbers=(((1,), (1,)), ((), ())),
            preferred_element_type=jnp.float32) + b2              # [1, chunk] f32
        o_ref[0, :, rows] = score.astype(o_ref.dtype)


def score_predictor(x, e, src, dst, params, *,
                    edge_tile=1024, row_chunk=256, compute_dtype=jnp.float32):
    """x: [N, F] node feats, e: [E, F] edge feats, src/dst: [E] int endpoints."""
    w1, b1, w2, b2 = params["w1"], params["b1"], params["w2"], params["b2"]
    n_nodes, in_f = x.shape
    hidden = w1.shape[1]
    num_edges = e.shape[0]

    assert w1.shape[0] == 3 * in_f, "w1 must be [3*in_features, hidden]"
    assert row_chunk % 128 == 0, "row_chunk must be a multiple of 128 (lane-aligned stores)"
    assert edge_tile % row_chunk == 0, "edge_tile must be a multiple of row_chunk"

    # Shrink the tile for tiny edge counts; the last tile may be partial — Pallas
    # handles the ragged boundary (garbage rows are trimmed below).
    edge_tile = min(edge_tile, int(pl.cdiv(num_edges, row_chunk)) * row_chunk)
    num_tiles = int(pl.cdiv(num_edges, edge_tile))

    # Cheap metadata-only reshapes / dtype fixes (no large HBM round trips: e and x
    # stream at their native dtypes and are cast, if at all, inside the kernel).
    src2d = src.astype(jnp.int32).reshape(num_edges, 1)
    dst2d = dst.astype(jnp.int32).reshape(num_edges, 1)
    b1_row = b1.reshape(1, hidden).astype(jnp.float32)
    w2_row = w2.reshape(1, hidden).astype(jnp.float32)
    b2_1d = b2.reshape(1).astype(jnp.float32)

    edge_rows = lambda shape: pl.BlockSpec(shape, lambda i: (i, 0))
    resident = lambda shape: pl.BlockSpec(shape, lambda i: (0, 0))

    rows_total = num_tiles * edge_tile
    cost = pl.CostEstimate(
        flops=2 * rows_total * hidden * (2 * n_nodes + in_f + 1)
              + 4 * n_nodes * in_f * hidden,
        transcendentals=0,
        bytes_accessed=(num_edges * in_f * jnp.dtype(e.dtype).itemsize   # e stream
                        + 2 * num_edges * 4                              # src, dst
                        + n_nodes * in_f * jnp.dtype(x.dtype).itemsize   # x (resident)
                        + (3 * in_f + 2) * hidden * 4 + 4                # w1, b1, w2, b2
                        + rows_total * 4),                               # scores
    )

    out = pl.pallas_call(
        functools.partial(_score_kernel, row_chunk=row_chunk,
                          compute_dtype=compute_dtype),
        out_shape=jax.ShapeDtypeStruct((num_tiles, 1, edge_tile), jnp.float32),
        grid_spec=pltpu.PrefetchScalarGridSpec(
            num_scalar_prefetch=0,
            grid=(num_tiles,),
            in_specs=[
                edge_rows((edge_tile, 1)),                       # src indices
                edge_rows((edge_tile, 1)),                       # dst indices
                edge_rows((edge_tile, in_f)),                    # e (only big stream)
                resident((n_nodes, in_f)),                       # x, resident in VMEM
                resident((3 * in_f, hidden)),                    # w1, resident
                resident((1, hidden)),                           # b1
                resident((1, hidden)),                           # w2 row
                pl.BlockSpec(memory_space=pltpu.MemorySpace.SMEM),  # b2 scalar
            ],
            out_specs=pl.BlockSpec((1, 1, edge_tile), lambda i: (i, 0, 0)),
        ),
        compiler_params=pltpu.CompilerParams(
            dimension_semantics=("parallel",),
            # Actual footprint is ~4 MiB even double-buffered; 32 MiB is safe on
            # v5e/v6e (128 MiB physical) and equals the v7x scoped default (64 MiB phys).
            vmem_limit_bytes=32 * 1024 * 1024,
        ),
        cost_estimate=cost,
    )(src2d, dst2d, e, x, w1, b1_row, w2_row, b2_1d)

    # Lane-dense (num_tiles, 1, edge_tile) -> trim padded rows -> [E, 1].
    return out.reshape(rows_total)[:num_edges].reshape(num_edges, 1)


def init_params(key, in_features, hidden_edge_scores):
    """Deterministic synthetic init matching nn.Linear shapes."""
    k1, k2, k3, k4 = jax.random.split(key, 4)
    fan1 = 3 * in_features
    bound1 = 1.0 / jnp.sqrt(fan1)
    w1 = jax.random.uniform(k1, (fan1, hidden_edge_scores),
                            minval=-bound1, maxval=bound1, dtype=jnp.float32)
    b1 = jax.random.uniform(k2, (hidden_edge_scores,),
                            minval=-bound1, maxval=bound1, dtype=jnp.float32)
    bound2 = 1.0 / jnp.sqrt(hidden_edge_scores)
    w2 = jax.random.uniform(k3, (hidden_edge_scores, 1),
                            minval=-bound2, maxval=bound2, dtype=jnp.float32)
    b2 = jax.random.uniform(k4, (1,),
                            minval=-bound2, maxval=bound2, dtype=jnp.float32)
    return {"w1": w1, "b1": b1, "w2": w2, "b2": b2}


if __name__ == "__main__":
    in_features = 32
    hidden = 32
    num_nodes = 64
    num_edges = 1000          # not a multiple of the tile -> exercises the ragged path

    key = jax.random.PRNGKey(0)
    kx, ke, ks, kd, kp = jax.random.split(key, 5)

    x = jax.random.normal(kx, (num_nodes, in_features), dtype=jnp.float32)
    e = jax.random.normal(ke, (num_edges, in_features), dtype=jnp.float32)
    src = jax.random.randint(ks, (num_edges,), 0, num_nodes, dtype=jnp.int32)
    dst = jax.random.randint(kd, (num_edges,), 0, num_nodes, dtype=jnp.int32)
    params = init_params(kp, in_features, hidden)

    run = functools.partial(score_predictor, edge_tile=1024, row_chunk=256,
                            compute_dtype=jnp.float32)
    score = jax.block_until_ready(run(x, e, src, dst, params))

    # Pure-JAX f32 reference (same math as the PyTorch module).
    data = jnp.concatenate([x[src], x[dst], e], axis=1)
    h_ref = jnp.maximum(data @ params["w1"] + params["b1"], 0.0)
    score_ref = h_ref @ params["w2"] + params["b2"]

    assert score.shape == (num_edges, 1)
    # f32 compute path; tolerance leaves headroom for MXU accumulation differences.
    assert jnp.allclose(score, score_ref, atol=5e-2, rtol=5e-2)
    print("KERNEL_OK")
</pallas_src>

<mosaic_0001>
module attributes {stable_mosaic.version = 11 : i64} {
  func.func @_score_kernel(%arg0: i32, %arg1: memref<1024x1xi32, #tpu.memory_space<vmem>>, %arg2: memref<1024x1xi32, #tpu.memory_space<vmem>>, %arg3: memref<1024x32xf32, #tpu.memory_space<vmem>>, %arg4: memref<64x32xf32, #tpu.memory_space<vmem>>, %arg5: memref<96x32xf32, #tpu.memory_space<vmem>>, %arg6: memref<1x32xf32, #tpu.memory_space<vmem>>, %arg7: memref<1x32xf32, #tpu.memory_space<vmem>>, %arg8: memref<1xf32, #tpu.memory_space<smem>>, %arg9: memref<1x1x1024xf32, #tpu.memory_space<vmem>>) attributes {dimension_semantics = [#tpu.dimension_semantics<parallel>], iteration_bounds = array<i64: 1>, scalar_prefetch = 0 : i64, scratch_operands = 0 : i64, tpu.core_type = #tpu.core_type<tc>, window_params = [{transform_indices = @transform_0, window_bounds = array<i64: 1024, 1>}, {transform_indices = @transform_1, window_bounds = array<i64: 1024, 1>}, {transform_indices = @transform_2, window_bounds = array<i64: 1024, 32>}, {pipeline_mode = #tpu.pipeline_mode<synchronous>, transform_indices = @transform_3, window_bounds = array<i64: 64, 32>}, {pipeline_mode = #tpu.pipeline_mode<synchronous>, transform_indices = @transform_4, window_bounds = array<i64: 96, 32>}, {pipeline_mode = #tpu.pipeline_mode<synchronous>, transform_indices = @transform_5, window_bounds = array<i64: 1, 32>}, {pipeline_mode = #tpu.pipeline_mode<synchronous>, transform_indices = @transform_6, window_bounds = array<i64: 1, 32>}, {transform_indices = @transform_7, window_bounds = array<i64: 1>}, {transform_indices = @transform_8, window_bounds = array<i64: 1, 1, 1024>}]} {
    %c0 = arith.constant 0 : index
    %c0_0 = arith.constant 0 : index
    %0 = vector.load %arg4[%c0, %c0_0] : memref<64x32xf32, #tpu.memory_space<vmem>>, vector<64x32xf32>
    %c0_1 = arith.constant 0 : index
    %c0_2 = arith.constant 0 : index
    %1 = vector.load %arg5[%c0_1, %c0_2] : memref<96x32xf32, #tpu.memory_space<vmem>>, vector<96x32xf32>
    %c0_3 = arith.constant 0 : index
    %c0_4 = arith.constant 0 : index
    %2 = vector.load %arg6[%c0_3, %c0_4] : memref<1x32xf32, #tpu.memory_space<vmem>>, vector<1x32xf32>
    %c0_5 = arith.constant 0 : index
    %c0_6 = arith.constant 0 : index
    %3 = vector.load %arg7[%c0_5, %c0_6] : memref<1x32xf32, #tpu.memory_space<vmem>>, vector<1x32xf32>
    %c0_7 = arith.constant 0 : index
    %4 = memref.load %arg8[%c0_7] : memref<1xf32, #tpu.memory_space<smem>>
    %5 = vector.extract_strided_slice %1 {offsets = [0, 0], sizes = [32, 32], strides = [1, 1]} : vector<96x32xf32> to vector<32x32xf32>
    %cst = arith.constant dense<0.000000e+00> : vector<64x32xf32>
    %6 = tpu.matmul %0, %5, %cst {dimension_numbers = #tpu.dot_dimension_numbers<[1], [0], [0], [1], [0, 0, 1, 1], [], []>} : vector<64x32xf32>, vector<32x32xf32>, vector<64x32xf32> -> vector<64x32xf32>
    %7 = vector.extract_strided_slice %1 {offsets = [32, 0], sizes = [32, 32], strides = [1, 1]} : vector<96x32xf32> to vector<32x32xf32>
    %cst_8 = arith.constant dense<0.000000e+00> : vector<64x32xf32>
    %8 = tpu.matmul %0, %7, %cst_8 {dimension_numbers = #tpu.dot_dimension_numbers<[1], [0], [0], [1], [0, 0, 1, 1], [], []>} : vector<64x32xf32>, vector<32x32xf32>, vector<64x32xf32> -> vector<64x32xf32>
    %9 = vector.extract_strided_slice %1 {offsets = [64, 0], sizes = [32, 32], strides = [1, 1]} : vector<96x32xf32> to vector<32x32xf32>
    %10 = tpu.iota {dimensions = array<i32: 1>} : vector<256x64xi32>
    %c0_9 = arith.constant 0 : index
    %c0_10 = arith.constant 0 : index
    %11 = vector.load %arg1[%c0_9, %c0_10] : memref<1024x1xi32, #tpu.memory_space<vmem>>, vector<256x1xi32>
    %c0_11 = arith.constant 0 : index
    %c0_12 = arith.constant 0 : index
    %12 = vector.load %arg2[%c0_11, %c0_12] : memref<1024x1xi32, #tpu.memory_space<vmem>>, vector<256x1xi32>
    %c0_13 = arith.constant 0 : index
    %c0_14 = arith.constant 0 : index
    %13 = vector.load %arg3[%c0_13, %c0_14] : memref<1024x32xf32, #tpu.memory_space<vmem>>, vector<256x32xf32>
    %14 = vector.broadcast %11 : vector<256x1xi32> to vector<256x64xi32>
    %15 = arith.cmpi eq, %14, %10 : vector<256x64xi32>
    %16 = arith.extui %15 : vector<256x64xi1> to vector<256x64xi32>
    %17 = arith.sitofp %16 : vector<256x64xi32> to vector<256x64xf32>
    %18 = vector.broadcast %12 : vector<256x1xi32> to vector<256x64xi32>
    %19 = arith.cmpi eq, %18, %10 : vector<256x64xi32>
    %20 = arith.extui %19 : vector<256x64xi1> to vector<256x64xi32>
    %21 = arith.sitofp %20 : vector<256x64xi32> to vector<256x64xf32>
    %cst_15 = arith.constant dense<0.000000e+00> : vector<256x32xf32>
    %22 = tpu.matmul %17, %6, %cst_15 {dimension_numbers = #tpu.dot_dimension_numbers<[1], [0], [0], [1], [0, 0, 1, 1], [], []>} : vector<256x64xf32>, vector<64x32xf32>, vector<256x32xf32> -> vector<256x32xf32>
    %cst_16 = arith.constant dense<0.000000e+00> : vector<256x32xf32>
    %23 = tpu.matmul %21, %8, %cst_16 {dimension_numbers = #tpu.dot_dimension_numbers<[1], [0], [0], [1], [0, 0, 1, 1], [], []>} : vector<256x64xf32>, vector<64x32xf32>, vector<256x32xf32> -> vector<256x32xf32>
    %24 = arith.addf %22, %23 : vector<256x32xf32>
    %cst_17 = arith.constant dense<0.000000e+00> : vector<256x32xf32>
    %25 = tpu.matmul %13, %9, %cst_17 {dimension_numbers = #tpu.dot_dimension_numbers<[1], [0], [0], [1], [0, 0, 1, 1], [], []>} : vector<256x32xf32>, vector<32x32xf32>, vector<256x32xf32> -> vector<256x32xf32>
    %26 = arith.addf %24, %25 : vector<256x32xf32>
    %27 = vector.broadcast %2 : vector<1x32xf32> to vector<256x32xf32>
    %28 = arith.addf %26, %27 : vector<256x32xf32>
    %cst_18 = arith.constant 0.000000e+00 : f32
    %29 = vector.broadcast %cst_18 : f32 to vector<256x32xf32>
    %30 = arith.maximumf %28, %29 : vector<256x32xf32>
    %cst_19 = arith.constant dense<0.000000e+00> : vector<1x256xf32>
    %31 = tpu.matmul %3, %30, %cst_19 {dimension_numbers = #tpu.dot_dimension_numbers<[1], [1], [0], [0], [0, 0, 1, 0], [], []>} : vector<1x32xf32>, vector<256x32xf32>, vector<1x256xf32> -> vector<1x256xf32>
    %32 = vector.broadcast %4 : f32 to vector<1x256xf32>
    %33 = arith.addf %31, %32 : vector<1x256xf32>
    %c0_20 = arith.constant 0 : index
    %c0_21 = arith.constant 0 : index
    %c0_22 = arith.constant 0 : index
    %34 = vector.load %arg9[%c0_20, %c0_21, %c0_22] : memref<1x1x1024xf32, #tpu.memory_space<vmem>>, vector<1x1x256xf32>
    %35 = vector.shape_cast %34 : vector<1x1x256xf32> to vector<1x256xf32>
    %36 = vector.shape_cast %33 : vector<1x256xf32> to vector<1x1x256xf32>
    tpu.vector_store %arg9[%c0_20, %c0_21, %c0_22], %36 {strides = array<i32>} : memref<1x1x1024xf32, #tpu.memory_space<vmem>>, vector<1x1x256xf32>,
    %c256 = arith.constant 256 : index
    %c0_23 = arith.constant 0 : index
    %37 = vector.load %arg1[%c256, %c0_23] : memref<1024x1xi32, #tpu.memory_space<vmem>>, vector<256x1xi32>
    %c256_24 = arith.constant 256 : index
    %c0_25 = arith.constant 0 : index
    %38 = vector.load %arg2[%c256_24, %c0_25] : memref<1024x1xi32, #tpu.memory_space<vmem>>, vector<256x1xi32>
    %c256_26 = arith.constant 256 : index
    %c0_27 = arith.constant 0 : index
    %39 = vector.load %arg3[%c256_26, %c0_27] : memref<1024x32xf32, #tpu.memory_space<vmem>>, vector<256x32xf32>
    %40 = vector.broadcast %37 : vector<256x1xi32> to vector<256x64xi32>
    %41 = arith.cmpi eq, %40, %10 : vector<256x64xi32>
    %42 = arith.extui %41 : vector<256x64xi1> to vector<256x64xi32>
    %43 = arith.sitofp %42 : vector<256x64xi32> to vector<256x64xf32>
    %44 = vector.broadcast %38 : vector<256x1xi32> to vector<256x64xi32>
    %45 = arith.cmpi eq, %44, %10 : vector<256x64xi32>
    %46 = arith.extui %45 : vector<256x64xi1> to vector<256x64xi32>
    %47 = arith.sitofp %46 : vector<256x64xi32> to vector<256x64xf32>
    %cst_28 = arith.constant dense<0.000000e+00> : vector<256x32xf32>
    %48 = tpu.matmul %43, %6, %cst_28 {dimension_numbers = #tpu.dot_dimension_numbers<[1], [0], [0], [1], [0, 0, 1, 1], [], []>} : vector<256x64xf32>, vector<64x32xf32>, vector<256x32xf32> -> vector<256x32xf32>
    %cst_29 = arith.constant dense<0.000000e+00> : vector<256x32xf32>
    %49 = tpu.matmul %47, %8, %cst_29 {dimension_numbers = #tpu.dot_dimension_numbers<[1], [0], [0], [1], [0, 0, 1, 1], [], []>} : vector<256x64xf32>, vector<64x32xf32>, vector<256x32xf32> -> vector<256x32xf32>
    %50 = arith.addf %48, %49 : vector<256x32xf32>
    %cst_30 = arith.constant dense<0.000000e+00> : vector<256x32xf32>
    %51 = tpu.matmul %39, %9, %cst_30 {dimension_numbers = #tpu.dot_dimension_numbers<[1], [0], [0], [1], [0, 0, 1, 1], [], []>} : vector<256x32xf32>, vector<32x32xf32>, vector<256x32xf32> -> vector<256x32xf32>
    %52 = arith.addf %50, %51 : vector<256x32xf32>
    %53 = vector.broadcast %2 : vector<1x32xf32> to vector<256x32xf32>
    %54 = arith.addf %52, %53 : vector<256x32xf32>
    %cst_31 = arith.constant 0.000000e+00 : f32
    %55 = vector.broadcast %cst_31 : f32 to vector<256x32xf32>
    %56 = arith.maximumf %54, %55 : vector<256x32xf32>
    %cst_32 = arith.constant dense<0.000000e+00> : vector<1x256xf32>
    %57 = tpu.matmul %3, %56, %cst_32 {dimension_numbers = #tpu.dot_dimension_numbers<[1], [1], [0], [0], [0, 0, 1, 0], [], []>} : vector<1x32xf32>, vector<256x32xf32>, vector<1x256xf32> -> vector<1x256xf32>
    %58 = vector.broadcast %4 : f32 to vector<1x256xf32>
    %59 = arith.addf %57, %58 : vector<1x256xf32>
    %c0_33 = arith.constant 0 : index
    %c0_34 = arith.constant 0 : index
    %c256_35 = arith.constant 256 : index
    %60 = vector.load %arg9[%c0_33, %c0_34, %c256_35] : memref<1x1x1024xf32, #tpu.memory_space<vmem>>, vector<1x1x256xf32>
    %61 = vector.shape_cast %60 : vector<1x1x256xf32> to vector<1x256xf32>
    %62 = vector.shape_cast %59 : vector<1x256xf32> to vector<1x1x256xf32>
    tpu.vector_store %arg9[%c0_33, %c0_34, %c256_35], %62 {strides = array<i32>} : memref<1x1x1024xf32, #tpu.memory_space<vmem>>, vector<1x1x256xf32>,
    %c512 = arith.constant 512 : index
    %c0_36 = arith.constant 0 : index
    %63 = vector.load %arg1[%c512, %c0_36] : memref<1024x1xi32, #tpu.memory_space<vmem>>, vector<256x1xi32>
    %c512_37 = arith.constant 512 : index
    %c0_38 = arith.constant 0 : index
    %64 = vector.load %arg2[%c512_37, %c0_38] : memref<1024x1xi32, #tpu.memory_space<vmem>>, vector<256x1xi32>
    %c512_39 = arith.constant 512 : index
    %c0_40 = arith.constant 0 : index
    %65 = vector.load %arg3[%c512_39, %c0_40] : memref<1024x32xf32, #tpu.memory_space<vmem>>, vector<256x32xf32>
    %66 = vector.broadcast %63 : vector<256x1xi32> to vector<256x64xi32>
    %67 = arith.cmpi eq, %66, %10 : vector<256x64xi32>
    %68 = arith.extui %67 : vector<256x64xi1> to vector<256x64xi32>
    %69 = arith.sitofp %68 : vector<256x64xi32> to vector<256x64xf32>
    %70 = vector.broadcast %64 : vector<256x1xi32> to vector<256x64xi32>
    %71 = arith.cmpi eq, %70, %10 : vector<256x64xi32>
    %72 = arith.extui %71 : vector<256x64xi1> to vector<256x64xi32>
    %73 = arith.sitofp %72 : vector<256x64xi32> to vector<256x64xf32>
    %cst_41 = arith.constant dense<0.000000e+00> : vector<256x32xf32>
    %74 = tpu.matmul %69, %6, %cst_41 {dimension_numbers = #tpu.dot_dimension_numbers<[1], [0], [0], [1], [0, 0, 1, 1], [], []>} : vector<256x64xf32>, vector<64x32xf32>, vector<256x32xf32> -> vector<256x32xf32>
    %cst_42 = arith.constant dense<0.000000e+00> : vector<256x32xf32>
    %75 = tpu.matmul %73, %8, %cst_42 {dimension_numbers = #tpu.dot_dimension_numbers<[1], [0], [0], [1], [0, 0, 1, 1], [], []>} : vector<256x64xf32>, vector<64x32xf32>, vector<256x32xf32> -> vector<256x32xf32>
    %76 = arith.addf %74, %75 : vector<256x32xf32>
    %cst_43 = arith.constant dense<0.000000e+00> : vector<256x32xf32>
    %77 = tpu.matmul %65, %9, %cst_43 {dimension_numbers = #tpu.dot_dimension_numbers<[1], [0], [0], [1], [0, 0, 1, 1], [], []>} : vector<256x32xf32>, vector<32x32xf32>, vector<256x32xf32> -> vector<256x32xf32>
    %78 = arith.addf %76, %77 : vector<256x32xf32>
    %79 = vector.broadcast %2 : vector<1x32xf32> to vector<256x32xf32>
    %80 = arith.addf %78, %79 : vector<256x32xf32>
    %cst_44 = arith.constant 0.000000e+00 : f32
    %81 = vector.broadcast %cst_44 : f32 to vector<256x32xf32>
    %82 = arith.maximumf %80, %81 : vector<256x32xf32>
    %cst_45 = arith.constant dense<0.000000e+00> : vector<1x256xf32>
    %83 = tpu.matmul %3, %82, %cst_45 {dimension_numbers = #tpu.dot_dimension_numbers<[1], [1], [0], [0], [0, 0, 1, 0], [], []>} : vector<1x32xf32>, vector<256x32xf32>, vector<1x256xf32> -> vector<1x256xf32>
    %84 = vector.broadcast %4 : f32 to vector<1x256xf32>
    %85 = arith.addf %83, %84 : vector<1x256xf32>
    %c0_46 = arith.constant 0 : index
    %c0_47 = arith.constant 0 : index
    %c512_48 = arith.constant 512 : index
    %86 = vector.load %arg9[%c0_46, %c0_47, %c512_48] : memref<1x1x1024xf32, #tpu.memory_space<vmem>>, vector<1x1x256xf32>
    %87 = vector.shape_cast %86 : vector<1x1x256xf32> to vector<1x256xf32>
    %88 = vector.shape_cast %85 : vector<1x256xf32> to vector<1x1x256xf32>
    tpu.vector_store %arg9[%c0_46, %c0_47, %c512_48], %88 {strides = array<i32>} : memref<1x1x1024xf32, #tpu.memory_space<vmem>>, vector<1x1x256xf32>,
    %c768 = arith.constant 768 : index
    %c0_49 = arith.constant 0 : index
    %89 = vector.load %arg1[%c768, %c0_49] : memref<1024x1xi32, #tpu.memory_space<vmem>>, vector<256x1xi32>
    %c768_50 = arith.constant 768 : index
    %c0_51 = arith.constant 0 : index
    %90 = vector.load %arg2[%c768_50, %c0_51] : memref<1024x1xi32, #tpu.memory_space<vmem>>, vector<256x1xi32>
    %c768_52 = arith.constant 768 : index
    %c0_53 = arith.constant 0 : index
    %91 = vector.load %arg3[%c768_52, %c0_53] : memref<1024x32xf32, #tpu.memory_space<vmem>>, vector<256x32xf32>
    %92 = vector.broadcast %89 : vector<256x1xi32> to vector<256x64xi32>
    %93 = arith.cmpi eq, %92, %10 : vector<256x64xi32>
    %94 = arith.extui %93 : vector<256x64xi1> to vector<256x64xi32>
    %95 = arith.sitofp %94 : vector<256x64xi32> to vector<256x64xf32>
    %96 = vector.broadcast %90 : vector<256x1xi32> to vector<256x64xi32>
    %97 = arith.cmpi eq, %96, %10 : vector<256x64xi32>
    %98 = arith.extui %97 : vector<256x64xi1> to vector<256x64xi32>
    %99 = arith.sitofp %98 : vector<256x64xi32> to vector<256x64xf32>
    %cst_54 = arith.constant dense<0.000000e+00> : vector<256x32xf32>
    %100 = tpu.matmul %95, %6, %cst_54 {dimension_numbers = #tpu.dot_dimension_numbers<[1], [0], [0], [1], [0, 0, 1, 1], [], []>} : vector<256x64xf32>, vector<64x32xf32>, vector<256x32xf32> -> vector<256x32xf32>
    %cst_55 = arith.constant dense<0.000000e+00> : vector<256x32xf32>
    %101 = tpu.matmul %99, %8, %cst_55 {dimension_numbers = #tpu.dot_dimension_numbers<[1], [0], [0], [1], [0, 0, 1, 1], [], []>} : vector<256x64xf32>, vector<64x32xf32>, vector<256x32xf32> -> vector<256x32xf32>
    %102 = arith.addf %100, %101 : vector<256x32xf32>
    %cst_56 = arith.constant dense<0.000000e+00> : vector<256x32xf32>
    %103 = tpu.matmul %91, %9, %cst_56 {dimension_numbers = #tpu.dot_dimension_numbers<[1], [0], [0], [1], [0, 0, 1, 1], [], []>} : vector<256x32xf32>, vector<32x32xf32>, vector<256x32xf32> -> vector<256x32xf32>
    %104 = arith.addf %102, %103 : vector<256x32xf32>
    %105 = vector.broadcast %2 : vector<1x32xf32> to vector<256x32xf32>
    %106 = arith.addf %104, %105 : vector<256x32xf32>
    %cst_57 = arith.constant 0.000000e+00 : f32
    %107 = vector.broadcast %cst_57 : f32 to vector<256x32xf32>
    %108 = arith.maximumf %106, %107 : vector<256x32xf32>
    %cst_58 = arith.constant dense<0.000000e+00> : vector<1x256xf32>
    %109 = tpu.matmul %3, %108, %cst_58 {dimension_numbers = #tpu.dot_dimension_numbers<[1], [1], [0], [0], [0, 0, 1, 0], [], []>} : vector<1x32xf32>, vector<256x32xf32>, vector<1x256xf32> -> vector<1x256xf32>
    %110 = vector.broadcast %4 : f32 to vector<1x256xf32>
    %111 = arith.addf %109, %110 : vector<1x256xf32>
    %c0_59 = arith.constant 0 : index
    %c0_60 = arith.constant 0 : index
    %c768_61 = arith.constant 768 : index
    %112 = vector.load %arg9[%c0_59, %c0_60, %c768_61] : memref<1x1x1024xf32, #tpu.memory_space<vmem>>, vector<1x1x256xf32>
    %113 = vector.shape_cast %112 : vector<1x1x256xf32> to vector<1x256xf32>
    %114 = vector.shape_cast %111 : vector<1x256xf32> to vector<1x1x256xf32>
    tpu.vector_store %arg9[%c0_59, %c0_60, %c768_61], %114 {strides = array<i32>} : memref<1x1x1024xf32, #tpu.memory_space<vmem>>, vector<1x1x256xf32>,
    return
  }
  func.func @transform_0(%arg0: i32) -> (i32, i32) {
    %c0_i32 = arith.constant 0 : i32
    %c0_i32_0 = arith.constant 0 : i32
    return %arg0, %c0_i32 : i32, i32
  }
  func.func @transform_1(%arg0: i32) -> (i32, i32) {
    %c0_i32 = arith.constant 0 : i32
    %c0_i32_0 = arith.constant 0 : i32
    return %arg0, %c0_i32 : i32, i32
  }
  func.func @transform_2(%arg0: i32) -> (i32, i32) {
    %c0_i32 = arith.constant 0 : i32
    %c0_i32_0 = arith.constant 0 : i32
    return %arg0, %c0_i32 : i32, i32
  }
  func.func @transform_3(%arg0: i32) -> (i32, i32) {
    %c0_i32 = arith.constant 0 : i32
    %c0_i32_0 = arith.constant 0 : i32
    %c0_i32_1 = arith.constant 0 : i32
    return %c0_i32, %c0_i32_0 : i32, i32
  }
  func.func @transform_4(%arg0: i32) -> (i32, i32) {
    %c0_i32 = arith.constant 0 : i32
    %c0_i32_0 = arith.constant 0 : i32
    %c0_i32_1 = arith.constant 0 : i32
    return %c0_i32, %c0_i32_0 : i32, i32
  }
  func.func @transform_5(%arg0: i32) -> (i32, i32) {
    %c0_i32 = arith.constant 0 : i32
    %c0_i32_0 = arith.constant 0 : i32
    %c0_i32_1 = arith.constant 0 : i32
    return %c0_i32, %c0_i32_0 : i32, i32
  }
  func.func @transform_6(%arg0: i32) -> (i32, i32) {
    %c0_i32 = arith.constant 0 : i32
    %c0_i32_0 = arith.constant 0 : i32
    %c0_i32_1 = arith.constant 0 : i32
    return %c0_i32, %c0_i32_0 : i32, i32
  }
  func.func @transform_7(%arg0: i32) -> i32 {
    %c0_i32 = arith.constant 0 : i32
    %c0_i32_0 = arith.constant 0 : i32
    return %c0_i32 : i32
  }
  func.func @transform_8(%arg0: i32) -> (i32, i32, i32) {
    %c0_i32 = arith.constant 0 : i32
    %c0_i32_0 = arith.constant 0 : i32
    %c0_i32_1 = arith.constant 0 : i32
    return %arg0, %c0_i32, %c0_i32_0 : i32, i32, i32
  }
}

</mosaic_0001>

<llo_original>
// kernel: tpu_custom_call.1
$region0: #{tpu_custom_call.1}
  #allocation0 [shape = 'u32[]', space=smem, size = 0x4, offset = 0x4, fixed_abs, tag = 'smem constant byte address 0x4 - core index']
  #allocation1 [shape = 'u32[72,128]{1,0:T(1,128)}', space=vmem, size = 0x9000, scoped, tag = 'internal scratch']
  #allocation2 [shape = 'f32[1]{0:T(128)S(6)}', space=smem, size = 0x200, scoped, tag = 'scoped memory for tpu_custom_call.1']
  %s0 = inlined_call_operand.vmem [shape: s32[1000,1], index: 0, kind: input, shape index: {}]
  %s1 = inlined_call_operand.vmem [shape: s32[1000,1], index: 1, kind: input, shape index: {}]
  %s2 = inlined_call_operand.vmem [shape: f32[1000,32], index: 2, kind: input, shape index: {}]
  %s3 = inlined_call_operand.vmem [shape: f32[64,32], index: 3, kind: input, shape index: {}]
  %s4 = inlined_call_operand.vmem [shape: f32[96,32], index: 4, kind: input, shape index: {}]
  %s5 = inlined_call_operand.vmem [shape: f32[1,32], index: 5, kind: input, shape index: {}]
  %s6 = inlined_call_operand.vmem [shape: f32[1,32], index: 6, kind: input, shape index: {}]
  %s7 = inlined_call_operand.<no memory space> [shape: f32[1], index: 7, kind: input, shape index: {}]
  %s8 = inlined_call_operand.hbm [shape: f32[1,1,1024], index: 8, kind: output, shape index: {}]
  %s9 = sld [smem:[#allocation0]]
  $region42: #{tpu_custom_call.1} parent=0
    _
  %s11 = ssub.s32 1, %s9
  %s12 = scalar_select 0, %s11, %s9
  %13 = sst [smem:[#allocation2]] %s7
  $region1: #{tpu_custom_call.1} parent=0
    #allocation3 [shape = 'u8[4096]{0}', space=vmem, size = 0x1000, scoped, tag = 'output window, operand 0, single buffered']
    #allocation4 [shape = 's32[1]{0}', space=sflag, size = 0x4, scoped, tag = 'scoped memory for tpu_custom_call.1']
    %14 = vsyncpa [#allocation4], 0
    // Predicated region
    $region2: #{tpu_custom_call.1} parent=1 // pred_check
      _
    $region3: #{tpu_custom_call.1} parent=1 // pred_check_branch
      %16 = sbr.rel (0) target = $region5
    $region4: #{tpu_custom_call.1} parent=1 // pred_region
      _
    $region5: #{tpu_custom_call.1} parent=1 // pred_fallthru
      _
    // Predicated region
    $region6: #{tpu_custom_call.1} parent=1 // pred_check
      _
    $region7: #{tpu_custom_call.1} parent=1 // pred_check_branch
      %18 = sbr.rel (0) target = $region9
    $region8: #{tpu_custom_call.1} parent=1 // pred_region
      _
    $region9: #{tpu_custom_call.1} parent=1 // pred_fallthru
      _
    // Predicated region
    $region10: #{tpu_custom_call.1} parent=1 // pred_check
      _
    $region11: #{tpu_custom_call.1} parent=1 // pred_check_branch
      %20 = sbr.rel (0) target = $region13
    $region12: #{tpu_custom_call.1} parent=1 // pred_region
      _
    $region13: #{tpu_custom_call.1} parent=1 // pred_fallthru
      _
    // Predicated region
    $region14: #{tpu_custom_call.1} parent=1 // pred_check
      _
    $region15: #{tpu_custom_call.1} parent=1 // pred_check_branch
      %22 = sbr.rel (0) target = $region17
    $region16: #{tpu_custom_call.1} parent=1 // pred_region
      _
    $region17: #{tpu_custom_call.1} parent=1 // pred_fallthru
      _
    // Predicated region
    $region18: #{tpu_custom_call.1} parent=1 // pred_check
      _
    $region19: #{tpu_custom_call.1} parent=1 // pred_check_branch
      %24 = sbr.rel (0) target = $region21
    $region20: #{tpu_custom_call.1} parent=1 // pred_region
      _
    $region21: #{tpu_custom_call.1} parent=1 // pred_fallthru
      _
    // Predicated region
    $region22: #{tpu_custom_call.1} parent=1 // pred_check
      _
    $region23: #{tpu_custom_call.1} parent=1 // pred_check_branch
      %26 = sbr.rel (0) target = $region25
    $region24: #{tpu_custom_call.1} parent=1 // pred_region
      _
    $region25: #{tpu_custom_call.1} parent=1 // pred_fallthru
      _
    // Predicated region
    $region26: #{tpu_custom_call.1} parent=1 // pred_check
      _
    $region27: #{tpu_custom_call.1} parent=1 // pred_check_branch
      %28 = sbr.rel (0) target = $region29
    $region28: #{tpu_custom_call.1} parent=1 // pred_region
      _
    $region29: #{tpu_custom_call.1} parent=1 // pred_fallthru
      _
    // Predicated region
    $region30: #{tpu_custom_call.1} parent=1 // pred_check
      _
    $region31: #{tpu_custom_call.1} parent=1 // pred_check_branch
      %30 = sbr.rel (0) target = $region33
    $region32: #{tpu_custom_call.1} parent=1 // pred_region
      _
    $region33: #{tpu_custom_call.1} parent=1 // pred_fallthru
      _
    %v31 = vld [vmem:[%s3] sm:$0xff]
    %v32 = vld [vmem:[%s3 + $0x8] sm:$0xff]
    %v33 = vld [vmem:[%s3 + $0x10] sm:$0xff]
    %v34 = vld [vmem:[%s3 + $0x18] sm:$0xff]
    %v35 = vld [vmem:[%s3 + $0x20] sm:$0xff]
    %v36 = vld [vmem:[%s3 + $0x28] sm:$0xff]
    %v37 = vld [vmem:[%s3 + $0x30] sm:$0xff]
    %v38 = vld [vmem:[%s3 + $0x38] sm:$0xff]
    %v39 = vld [vmem:[%s4] sm:$0xff]
    %v40 = vld [vmem:[%s4 + $0x8] sm:$0xff]
    %v41 = vld [vmem:[%s4 + $0x10] sm:$0xff]
    %v42 = vld [vmem:[%s4 + $0x18] sm:$0xff]
    %v43 = vld [vmem:[%s4 + $0x20] sm:$0xff]
    %v44 = vld [vmem:[%s4 + $0x28] sm:$0xff]
    %v45 = vld [vmem:[%s4 + $0x30] sm:$0xff]
    %v46 = vld [vmem:[%s4 + $0x38] sm:$0xff]
    %v47 = vld [vmem:[%s4 + $0x40] sm:$0xff]
    %v48 = vld [vmem:[%s4 + $0x48] sm:$0xff]
    %v49 = vld [vmem:[%s4 + $0x50] sm:$0xff]
    %v50 = vld [vmem:[%s4 + $0x58] sm:$0xff]
    %v51 = vld [vmem:[%s5] sm:$0x1]
    %v52 = vld [vmem:[%s6] sm:$0x1]
    %s53 = sld [smem:[#allocation2]]
    %vm54 = vcmask 261120
    %v56 = vsel %vm54, %v31, 0
    %v59 = vsel %vm54, %v32, 0
    %v62 = vsel %vm54, %v33, 0
    %v65 = vsel %vm54, %v34, 0
    %v68 = vsel %vm54, %v35, 0
    %v71 = vsel %vm54, %v36, 0
    %v74 = vsel %vm54, %v37, 0
    %v77 = vsel %vm54, %v38, 0
    %79 = vmatpush.msra.mxu0 0.0
    %80 = vmatpush.msra.mxu0 0.0
    %81 = vmatpush.msra.mxu0 0.0
    %82 = vmatpush.msra.mxu0 0.0
    %83 = vmatpush.msra.mxu0 0.0
    %84 = vmatpush.msra.mxu0 0.0
    %85 = vmatpush.msra.mxu0 0.0
    %86 = vmatpush.msra.mxu0 0.0
    %87 = vmatpush.msra.mxu0 0.0
    %88 = vmatpush.msra.mxu0 0.0
    %89 = vmatpush.msra.mxu0 0.0
    %90 = vmatpush.msra.mxu0 0.0
    %91 = vmatpush.msra.mxu0 %v42
    %92 = vmatpush.msra.mxu0 %v41
    %93 = vmatpush.msra.mxu0 %v40
    %94 = vmatpush.msra.mxu0 %v39
    %95 = vmatmul.f32.gmra.mxu0 %v56
    %v96 = vpop.f32.mrf.mxu0
    %v97 = vadd.f32 0.0, %v96
    %98 = vmatmul.f32.gmra.mxu0 %v59
    %v99 = vpop.f32.mrf.mxu0
    %v100 = vadd.f32 0.0, %v99
    %101 = vmatmul.f32.gmra.mxu0 %v62
    %v102 = vpop.f32.mrf.mxu0
    %v103 = vadd.f32 0.0, %v102
    %104 = vmatmul.f32.gmra.mxu0 %v65
    %v105 = vpop.f32.mrf.mxu0
    %v106 = vadd.f32 0.0, %v105
    %107 = vmatmul.f32.gmra.mxu0 %v68
    %v108 = vpop.f32.mrf.mxu0
    %v109 = vadd.f32 0.0, %v108
    %110 = vmatmul.f32.gmra.mxu0 %v71
    %v111 = vpop.f32.mrf.mxu0
    %v112 = vadd.f32 0.0, %v111
    %113 = vmatmul.f32.gmra.mxu0 %v74
    %v114 = vpop.f32.mrf.mxu0
    %v115 = vadd.f32 0.0, %v114
    %116 = vmatmul.f32.gmra.mxu0 %v77
    %v117 = vpop.f32.mrf.mxu0
    %v118 = vadd.f32 0.0, %v117
    %119 = vdwg.mxu0
    %120 = vmatpush.msra.mxu0 0.0
    %121 = vmatpush.msra.mxu0 0.0
    %122 = vmatpush.msra.mxu0 0.0
    %123 = vmatpush.msra.mxu0 0.0
    %124 = vmatpush.msra.mxu0 0.0
    %125 = vmatpush.msra.mxu0 0.0
    %126 = vmatpush.msra.mxu0 0.0
    %127 = vmatpush.msra.mxu0 0.0
    %128 = vmatpush.msra.mxu0 0.0
    %129 = vmatpush.msra.mxu0 0.0
    %130 = vmatpush.msra.mxu0 0.0
    %131 = vmatpush.msra.mxu0 0.0
    %132 = vmatpush.msra.mxu0 %v46
    %133 = vmatpush.msra.mxu0 %v45
    %134 = vmatpush.msra.mxu0 %v44
    %135 = vmatpush.msra.mxu0 %v43
    %136 = vmatmul.f32.gmra.mxu0 %v56
    %v137 = vpop.f32.mrf.mxu0
    %v138 = vadd.f32 0.0, %v137
    %139 = vmatmul.f32.gmra.mxu0 %v59
    %v140 = vpop.f32.mrf.mxu0
    %v141 = vadd.f32 0.0, %v140
    %142 = vmatmul.f32.gmra.mxu0 %v62
    %v143 = vpop.f32.mrf.mxu0
    %v144 = vadd.f32 0.0, %v143
    %145 = vmatmul.f32.gmra.mxu0 %v65
    %v146 = vpop.f32.mrf.mxu0
    %v147 = vadd.f32 0.0, %v146
    %148 = vmatmul.f32.gmra.mxu0 %v68
    %v149 = vpop.f32.mrf.mxu0
    %v150 = vadd.f32 0.0, %v149
    %151 = vmatmul.f32.gmra.mxu0 %v71
    %v152 = vpop.f32.mrf.mxu0
    %v153 = vadd.f32 0.0, %v152
    %154 = vmatmul.f32.gmra.mxu0 %v74
    %v155 = vpop.f32.mrf.mxu0
    %v156 = vadd.f32 0.0, %v155
    %157 = vmatmul.f32.gmra.mxu0 %v77
    %v158 = vpop.f32.mrf.mxu0
    %v159 = vadd.f32 0.0, %v158
    %160 = vdwg.mxu0
    %v161 = vlaneseq
    %v162 = vand.u32 %v161, 127
    %v163 = vld [vmem:[%s0] sm:$0xff]
    %v164 = vld [vmem:[%s0 + $0x8] sm:$0xff]
    %v165 = vld [vmem:[%s0 + $0x10] sm:$0xff]
    %v166 = vld [vmem:[%s0 + $0x18] sm:$0xff]
    %v167 = vld [vmem:[%s0 + $0x20] sm:$0xff]
    %v168 = vld [vmem:[%s0 + $0x28] sm:$0xff]
    %v169 = vld [vmem:[%s0 + $0x30] sm:$0xff]
    %v170 = vld [vmem:[%s0 + $0x38] sm:$0xff]
    %v171 = vld [vmem:[%s0 + $0x40] sm:$0xff]
    %v172 = vld [vmem:[%s0 + $0x48] sm:$0xff]
    %v173 = vld [vmem:[%s0 + $0x50] sm:$0xff]
    %v174 = vld [vmem:[%s0 + $0x58] sm:$0xff]
    %v175 = vld [vmem:[%s0 + $0x60] sm:$0xff]
    %v176 = vld [vmem:[%s0 + $0x68] sm:$0xff]
    %v177 = vld [vmem:[%s0 + $0x70] sm:$0xff]
    %v178 = vld [vmem:[%s0 + $0x78] sm:$0xff]
    %v179 = vld [vmem:[%s0 + $0x80] sm:$0xff]
    %v180 = vld [vmem:[%s0 + $0x88] sm:$0xff]
    %v181 = vld [vmem:[%s0 + $0x90] sm:$0xff]
    %v182 = vld [vmem:[%s0 + $0x98] sm:$0xff]
    %v183 = vld [vmem:[%s0 + $0xa0] sm:$0xff]
    %v184 = vld [vmem:[%s0 + $0xa8] sm:$0xff]
    %v185 = vld [vmem:[%s0 + $0xb0] sm:$0xff]
    %v186 = vld [vmem:[%s0 + $0xb8] sm:$0xff]
    %v187 = vld [vmem:[%s0 + $0xc0] sm:$0xff]
    %v188 = vld [vmem:[%s0 + $0xc8] sm:$0xff]
    %v189 = vld [vmem:[%s0 + $0xd0] sm:$0xff]
    %v190 = vld [vmem:[%s0 + $0xd8] sm:$0xff]
    %v191 = vld [vmem:[%s0 + $0xe0] sm:$0xff]
    %v192 = vld [vmem:[%s0 + $0xe8] sm:$0xff]
    %v193 = vld [vmem:[%s0 + $0xf0] sm:$0xff]
    %v194 = vld [vmem:[%s0 + $0xf8] sm:$0xff]
    %v195 = vld [vmem:[%s1] sm:$0xff]
    %v196 = vld [vmem:[%s1 + $0x8] sm:$0xff]
    %v197 = vld [vmem:[%s1 + $0x10] sm:$0xff]
    %v198 = vld [vmem:[%s1 + $0x18] sm:$0xff]
    %v199 = vld [vmem:[%s1 + $0x20] sm:$0xff]
    %v200 = vld [vmem:[%s1 + $0x28] sm:$0xff]
    %v201 = vld [vmem:[%s1 + $0x30] sm:$0xff]
    %v202 = vld [vmem:[%s1 + $0x38] sm:$0xff]
    %v203 = vld [vmem:[%s1 + $0x40] sm:$0xff]
    %v204 = vld [vmem:[%s1 + $0x48] sm:$0xff]
    %v205 = vld [vmem:[%s1 + $0x50] sm:$0xff]
    %v206 = vld [vmem:[%s1 + $0x58] sm:$0xff]
    %v207 = vld [vmem:[%s1 + $0x60] sm:$0xff]
    %v208 = vld [vmem:[%s1 + $0x68] sm:$0xff]
    %v209 = vld [vmem:[%s1 + $0x70] sm:$0xff]
    %v210 = vld [vmem:[%s1 + $0x78] sm:$0xff]
    %v211 = vld [vmem:[%s1 + $0x80] sm:$0xff]
    %v212 = vld [vmem:[%s1 + $0x88] sm:$0xff]
    %v213 = vld [vmem:[%s1 + $0x90] sm:$0xff]
    %v214 = vld [vmem:[%s1 + $0x98] sm:$0xff]
    %v215 = vld [vmem:[%s1 + $0xa0] sm:$0xff]
    %v216 = vld [vmem:[%s1 + $0xa8] sm:$0xff]
    %v217 = vld [vmem:[%s1 + $0xb0] sm:$0xff]
    %v218 = vld [vmem:[%s1 + $0xb8] sm:$0xff]
    %v219 = vld [vmem:[%s1 + $0xc0] sm:$0xff]
    %v220 = vld [vmem:[%s1 + $0xc8] sm:$0xff]
    %v221 = vld [vmem:[%s1 + $0xd0] sm:$0xff]
    %v222 = vld [vmem:[%s1 + $0xd8] sm:$0xff]
    %v223 = vld [vmem:[%s1 + $0xe0] sm:$0xff]
    %v224 = vld [vmem:[%s1 + $0xe8] sm:$0xff]
    %v225 = vld [vmem:[%s1 + $0xf0] sm:$0xff]
    %v226 = vld [vmem:[%s1 + $0xf8] sm:$0xff]
    %v227 = vld [vmem:[%s2] sm:$0xff]
    %v228 = vld [vmem:[%s2 + $0x8] sm:$0xff]
    %v229 = vld [vmem:[%s2 + $0x10] sm:$0xff]
    %v230 = vld [vmem:[%s2 + $0x18] sm:$0xff]
    %v231 = vld [vmem:[%s2 + $0x20] sm:$0xff]
    %v232 = vld [vmem:[%s2 + $0x28] sm:$0xff]
    %v233 = vld [vmem:[%s2 + $0x30] sm:$0xff]
    %v234 = vld [vmem:[%s2 + $0x38] sm:$0xff]
    %v235 = vld [vmem:[%s2 + $0x40] sm:$0xff]
    %v236 = vld [vmem:[%s2 + $0x48] sm:$0xff]
    %v237 = vld [vmem:[%s2 + $0x50] sm:$0xff]
    %v238 = vld [vmem:[%s2 + $0x58] sm:$0xff]
    %v239 = vld [vmem:[%s2 + $0x60] sm:$0xff]
    %v240 = vld [vmem:[%s2 + $0x68] sm:$0xff]
    %v241 = vld [vmem:[%s2 + $0x70] sm:$0xff]
    %v242 = vld [vmem:[%s2 + $0x78] sm:$0xff]
    %v243 = vld [vmem:[%s2 + $0x80] sm:$0xff]
    %v244 = vld [vmem:[%s2 + $0x88] sm:$0xff]
    %v245 = vld [vmem:[%s2 + $0x90] sm:$0xff]
    %v246 = vld [vmem:[%s2 + $0x98] sm:$0xff]
    %v247 = vld [vmem:[%s2 + $0xa0] sm:$0xff]
    %v248 = vld [vmem:[%s2 + $0xa8] sm:$0xff]
    %v249 = vld [vmem:[%s2 + $0xb0] sm:$0xff]
    %v250 = vld [vmem:[%s2 + $0xb8] sm:$0xff]
    %v251 = vld [vmem:[%s2 + $0xc0] sm:$0xff]
    %v252 = vld [vmem:[%s2 + $0xc8] sm:$0xff]
    %v253 = vld [vmem:[%s2 + $0xd0] sm:$0xff]
    %v254 = vld [vmem:[%s2 + $0xd8] sm:$0xff]
    %v255 = vld [vmem:[%s2 + $0xe0] sm:$0xff]
    %v256 = vld [vmem:[%s2 + $0xe8] sm:$0xff]
    %v257 = vld [vmem:[%s2 + $0xf0] sm:$0xff]
    %v258 = vld [vmem:[%s2 + $0xf8] sm:$0xff]
    %259 = vset.pattern.permute.xlu0 0
    %260 = vperm.xlu0 %259, %v163
    %v261 = vpop.permute.xlu0 %260
    %262 = vset.pattern.permute.xlu0 0
    %263 = vperm.xlu0 %262, %v164
    %v264 = vpop.permute.xlu0 %263
    %265 = vset.pattern.permute.xlu0 0
    %266 = vperm.xlu0 %265, %v165
    %v267 = vpop.permute.xlu0 %266
    %268 = vset.pattern.permute.xlu0 0
    %269 = vperm.xlu0 %268, %v166
    %v270 = vpop.permute.xlu0 %269
    %271 = vset.pattern.permute.xlu0 0
    %272 = vperm.xlu0 %271, %v167
    %v273 = vpop.permute.xlu0 %272
    %274 = vset.pattern.permute.xlu0 0
    %275 = vperm.xlu0 %274, %v168
    %v276 = vpop.permute.xlu0 %275
    %277 = vset.pattern.permute.xlu0 0
    %278 = vperm.xlu0 %277, %v169
    %v279 = vpop.permute.xlu0 %278
    %280 = vset.pattern.permute.xlu0 0
    %281 = vperm.xlu0 %280, %v170
    %v282 = vpop.permute.xlu0 %281
    %283 = vset.pattern.permute.xlu0 0
    %284 = vperm.xlu0 %283, %v171
    %v285 = vpop.permute.xlu0 %284
    %286 = vset.pattern.permute.xlu0 0
    %287 = vperm.xlu0 %286, %v172
    %v288 = vpop.permute.xlu0 %287
    %289 = vset.pattern.permute.xlu0 0
    %290 = vperm.xlu0 %289, %v173
    %v291 = vpop.permute.xlu0 %290
    %292 = vset.pattern.permute.xlu0 0
    %293 = vperm.xlu0 %292, %v174
    %v294 = vpop.permute.xlu0 %293
    %295 = vset.pattern.permute.xlu0 0
    %296 = vperm.xlu0 %295, %v175
    %v297 = vpop.permute.xlu0 %296
    %298 = vset.pattern.permute.xlu0 0
    %299 = vperm.xlu0 %298, %v176
    %v300 = vpop.permute.xlu0 %299
    %301 = vset.pattern.permute.xlu0 0
    %302 = vperm.xlu0 %301, %v177
    %v303 = vpop.permute.xlu0 %302
    %304 = vset.pattern.permute.xlu0 0
    %305 = vperm.xlu0 %304, %v178
    %v306 = vpop.permute.xlu0 %305
    %307 = vset.pattern.permute.xlu0 0
    %308 = vperm.xlu0 %307, %v179
    %v309 = vpop.permute.xlu0 %308
    %310 = vset.pattern.permute.xlu0 0
    %311 = vperm.xlu0 %310, %v180
    %v312 = vpop.permute.xlu0 %311
    %313 = vset.pattern.permute.xlu0 0
    %314 = vperm.xlu0 %313, %v181
    %v315 = vpop.permute.xlu0 %314
    %316 = vset.pattern.permute.xlu0 0
    %317 = vperm.xlu0 %316, %v182
    %v318 = vpop.permute.xlu0 %317
    %319 = vset.pattern.permute.xlu0 0
    %320 = vperm.xlu0 %319, %v183
    %v321 = vpop.permute.xlu0 %320
    %322 = vset.pattern.permute.xlu0 0
    %323 = vperm.xlu0 %322, %v184
    %v324 = vpop.permute.xlu0 %323
    %325 = vset.pattern.permute.xlu0 0
    %326 = vperm.xlu0 %325, %v185
    %v327 = vpop.permute.xlu0 %326
    %328 = vset.pattern.permute.xlu0 0
    %329 = vperm.xlu0 %328, %v186
    %v330 = vpop.permute.xlu0 %329
    %331 = vset.pattern.permute.xlu0 0
    %332 = vperm.xlu0 %331, %v187
    %v333 = vpop.permute.xlu0 %332
    %334 = vset.pattern.permute.xlu0 0
    %335 = vperm.xlu0 %334, %v188
    %v336 = vpop.permute.xlu0 %335
    %337 = vset.pattern.permute.xlu0 0
    %338 = vperm.xlu0 %337, %v189
    %v339 = vpop.permute.xlu0 %338
    %340 = vset.pattern.permute.xlu0 0
    %341 = vperm.xlu0 %340, %v190
    %v342 = vpop.permute.xlu0 %341
    %343 = vset.pattern.permute.xlu0 0
    %344 = vperm.xlu0 %343, %v191
    %v345 = vpop.permute.xlu0 %344
    %346 = vset.pattern.permute.xlu0 0
    %347 = vperm.xlu0 %346, %v192
    %v348 = vpop.permute.xlu0 %347
    %349 = vset.pattern.permute.xlu0 0
    %350 = vperm.xlu0 %349, %v193
    %v351 = vpop.permute.xlu0 %350
    %352 = vset.pattern.permute.xlu0 0
    %353 = vperm.xlu0 %352, %v194
    %v354 = vpop.permute.xlu0 %353
    %vm355 = vcmp.eq.s32.totalorder %v261, %v162
    %vm356 = vcmp.eq.s32.totalorder %v264, %v162
    %vm357 = vcmp.eq.s32.totalorder %v267, %v162
    %vm358 = vcmp.eq.s32.totalorder %v270, %v162
    %vm359 = vcmp.eq.s32.totalorder %v273, %v162
    %vm360 = vcmp.eq.s32.totalorder %v276, %v162
    %vm361 = vcmp.eq.s32.totalorder %v279, %v162
    %vm362 = vcmp.eq.s32.totalorder %v282, %v162
    %vm363 = vcmp.eq.s32.totalorder %v285, %v162
    %vm364 = vcmp.eq.s32.totalorder %v288, %v162
    %vm365 = vcmp.eq.s32.totalorder %v291, %v162
    %vm366 = vcmp.eq.s32.totalorder %v294, %v162
    %vm367 = vcmp.eq.s32.totalorder %v297, %v162
    %vm368 = vcmp.eq.s32.totalorder %v300, %v162
    %vm369 = vcmp.eq.s32.totalorder %v303, %v162
    %vm370 = vcmp.eq.s32.totalorder %v306, %v162
    %vm371 = vcmp.eq.s32.totalorder %v309, %v162
    %vm372 = vcmp.eq.s32.totalorder %v312, %v162
    %vm373 = vcmp.eq.s32.totalorder %v315, %v162
    %vm374 = vcmp.eq.s32.totalorder %v318, %v162
    %vm375 = vcmp.eq.s32.totalorder %v321, %v162
    %vm376 = vcmp.eq.s32.totalorder %v324, %v162
    %vm377 = vcmp.eq.s32.totalorder %v327, %v162
    %vm378 = vcmp.eq.s32.totalorder %v330, %v162
    %vm379 = vcmp.eq.s32.totalorder %v333, %v162
    %vm380 = vcmp.eq.s32.totalorder %v336, %v162
    %vm381 = vcmp.eq.s32.totalorder %v339, %v162
    %vm382 = vcmp.eq.s32.totalorder %v342, %v162
    %vm383 = vcmp.eq.s32.totalorder %v345, %v162
    %vm384 = vcmp.eq.s32.totalorder %v348, %v162
    %vm385 = vcmp.eq.s32.totalorder %v351, %v162
    %vm386 = vcmp.eq.s32.totalorder %v354, %v162
    %v387 = vsel %vm355, 1, 0
    %v388 = vsel %vm356, 1, 0
    %v389 = vsel %vm357, 1, 0
    %v390 = vsel %vm358, 1, 0
    %v391 = vsel %vm359, 1, 0
    %v392 = vsel %vm360, 1, 0
    %v393 = vsel %vm361, 1, 0
    %v394 = vsel %vm362, 1, 0
    %v395 = vsel %vm363, 1, 0
    %v396 = vsel %vm364, 1, 0
    %v397 = vsel %vm365, 1, 0
    %v398 = vsel %vm366, 1, 0
    %v399 = vsel %vm367, 1, 0
    %v400 = vsel %vm368, 1, 0
    %v401 = vsel %vm369, 1, 0
    %v402 = vsel %vm370, 1, 0
    %v403 = vsel %vm371, 1, 0
    %v404 = vsel %vm372, 1, 0
    %v405 = vsel %vm373, 1, 0
    %v406 = vsel %vm374, 1, 0
    %v407 = vsel %vm375, 1, 0
    %v408 = vsel %vm376, 1, 0
    %v409 = vsel %vm377, 1, 0
    %v410 = vsel %vm378, 1, 0
    %v411 = vsel %vm379, 1, 0
    %v412 = vsel %vm380, 1, 0
    %v413 = vsel %vm381, 1, 0
    %v414 = vsel %vm382, 1, 0
    %v415 = vsel %vm383, 1, 0
    %v416 = vsel %vm384, 1, 0
    %v417 = vsel %vm385, 1, 0
    %v418 = vsel %vm386, 1, 0
    %v419 = vcvt.s32.f32 %v387
    %v420 = vcvt.s32.f32 %v388
    %v421 = vcvt.s32.f32 %v389
    %v422 = vcvt.s32.f32 %v390
    %v423 = vcvt.s32.f32 %v391
    %v424 = vcvt.s32.f32 %v392
    %v425 = vcvt.s32.f32 %v393
    %v426 = vcvt.s32.f32 %v394
    %v427 = vcvt.s32.f32 %v395
    %v428 = vcvt.s32.f32 %v396
    %v429 = vcvt.s32.f32 %v397
    %v430 = vcvt.s32.f32 %v398
    %v431 = vcvt.s32.f32 %v399
    %v432 = vcvt.s32.f32 %v400
    %v433 = vcvt.s32.f32 %v401
    %v434 = vcvt.s32.f32 %v402
    %v435 = vcvt.s32.f32 %v403
    %v436 = vcvt.s32.f32 %v404
    %v437 = vcvt.s32.f32 %v405
    %v438 = vcvt.s32.f32 %v406
    %v439 = vcvt.s32.f32 %v407
    %v440 = vcvt.s32.f32 %v408
    %v441 = vcvt.s32.f32 %v409
    %v442 = vcvt.s32.f32 %v410
    %v443 = vcvt.s32.f32 %v411
    %v444 = vcvt.s32.f32 %v412
    %v445 = vcvt.s32.f32 %v413
    %v446 = vcvt.s32.f32 %v414
    %v447 = vcvt.s32.f32 %v415
    %v448 = vcvt.s32.f32 %v416
    %v449 = vcvt.s32.f32 %v417
    %v450 = vcvt.s32.f32 %v418
    %451 = vset.pattern.permute.xlu0 0
    %452 = vperm.xlu0 %451, %v195
    %v453 = vpop.permute.xlu0 %452
    %454 = vset.pattern.permute.xlu0 0
    %455 = vperm.xlu0 %454, %v196
    %v456 = vpop.permute.xlu0 %455
    %457 = vset.pattern.permute.xlu0 0
    %458 = vperm.xlu0 %457, %v197
    %v459 = vpop.permute.xlu0 %458
    %460 = vset.pattern.permute.xlu0 0
    %461 = vperm.xlu0 %460, %v198
    %v462 = vpop.permute.xlu0 %461
    %463 = vset.pattern.permute.xlu0 0
    %464 = vperm.xlu0 %463, %v199
    %v465 = vpop.permute.xlu0 %464
    %466 = vset.pattern.permute.xlu0 0
    %467 = vperm.xlu0 %466, %v200
    %v468 = vpop.permute.xlu0 %467
    %469 = vset.pattern.permute.xlu0 0
    %470 = vperm.xlu0 %469, %v201
    %v471 = vpop.permute.xlu0 %470
    %472 = vset.pattern.permute.xlu0 0
    %473 = vperm.xlu0 %472, %v202
    %v474 = vpop.permute.xlu0 %473
    %475 = vset.pattern.permute.xlu0 0
    %476 = vperm.xlu0 %475, %v203
    %v477 = vpop.permute.xlu0 %476
    %478 = vset.pattern.permute.xlu0 0
    %479 = vperm.xlu0 %478, %v204
    %v480 = vpop.permute.xlu0 %479
    %481 = vset.pattern.permute.xlu0 0
    %482 = vperm.xlu0 %481, %v205
    %v483 = vpop.permute.xlu0 %482
    %484 = vset.pattern.permute.xlu0 0
    %485 = vperm.xlu0 %484, %v206
    %v486 = vpop.permute.xlu0 %485
    %487 = vset.pattern.permute.xlu0 0
    %488 = vperm.xlu0 %487, %v207
    %v489 = vpop.permute.xlu0 %488
    %490 = vset.pattern.permute.xlu0 0
    %491 = vperm.xlu0 %490, %v208
    %v492 = vpop.permute.xlu0 %491
    %493 = vset.pattern.permute.xlu0 0
    %494 = vperm.xlu0 %493, %v209
    %v495 = vpop.permute.xlu0 %494
    %496 = vset.pattern.permute.xlu0 0
    %497 = vperm.xlu0 %496, %v210
    %v498 = vpop.permute.xlu0 %497
    %499 = vset.pattern.permute.xlu0 0
    %500 = vperm.xlu0 %499, %v211
    %v501 = vpop.permute.xlu0 %500
    %502 = vset.pattern.permute.xlu0 0
    %503 = vperm.xlu0 %502, %v212
    %v504 = vpop.permute.xlu0 %503
    %505 = vset.pattern.permute.xlu0 0
    %506 = vperm.xlu0 %505, %v213
    %v507 = vpop.permute.xlu0 %506
    %508 = vset.pattern.permute.xlu0 0
    %509 = vperm.xlu0 %508, %v214
    %v510 = vpop.permute.xlu0 %509
    %511 = vset.pattern.permute.xlu0 0
    %512 = vperm.xlu0 %511, %v215
    %v513 = vpop.permute.xlu0 %512
    %514 = vset.pattern.permute.xlu0 0
    %515 = vperm.xlu0 %514, %v216
    %v516 = vpop.permute.xlu0 %515
    %517 = vset.pattern.permute.xlu0 0
    %518 = vperm.xlu0 %517, %v217
    %v519 = vpop.permute.xlu0 %518
    %520 = vset.pattern.permute.xlu0 0
    %521 = vperm.xlu0 %520, %v218
    %v522 = vpop.permute.xlu0 %521
    %523 = vset.pattern.permute.xlu0 0
    %524 = vperm.xlu0 %523, %v219
    %v525 = vpop.permute.xlu0 %524
    %526 = vset.pattern.permute.xlu0 0
    %527 = vperm.xlu0 %526, %v220
    %v528 = vpop.permute.xlu0 %527
    %529 = vset.pattern.permute.xlu0 0
    %530 = vperm.xlu0 %529, %v221
    %v531 = vpop.permute.xlu0 %530
    %532 = vset.pattern.permute.xlu0 0
    %533 = vperm.xlu0 %532, %v222
    %v534 = vpop.permute.xlu0 %533
    %535 = vset.pattern.permute.xlu0 0
    %536 = vperm.xlu0 %535, %v223
    %v537 = vpop.permute.xlu0 %536
    %538 = vset.pattern.permute.xlu0 0
    %539 = vperm.xlu0 %538, %v224
    %v540 = vpop.permute.xlu0 %539
    %541 = vset.pattern.permute.xlu0 0
    %542 = vperm.xlu0 %541, %v225
    %v543 = vpop.permute.xlu0 %542
    %544 = vset.pattern.permute.xlu0 0
    %545 = vperm.xlu0 %544, %v226
    %v546 = vpop.permute.xlu0 %545
    %vm547 = vcmp.eq.s32.totalorder %v453, %v162
    %vm548 = vcmp.eq.s32.totalorder %v456, %v162
    %vm549 = vcmp.eq.s32.totalorder %v459, %v162
    %vm550 = vcmp.eq.s32.totalorder %v462, %v162
    %vm551 = vcmp.eq.s32.totalorder %v465, %v162
    %vm552 = vcmp.eq.s32.totalorder %v468, %v162
    %vm553 = vcmp.eq.s32.totalorder %v471, %v162
    %vm554 = vcmp.eq.s32.totalorder %v474, %v162
    %vm555 = vcmp.eq.s32.totalorder %v477, %v162
    %vm556 = vcmp.eq.s32.totalorder %v480, %v162
    %vm557 = vcmp.eq.s32.totalorder %v483, %v162
    %vm558 = vcmp.eq.s32.totalorder %v486, %v162
    %vm559 = vcmp.eq.s32.totalorder %v489, %v162
    %vm560 = vcmp.eq.s32.totalorder %v492, %v162
    %vm561 = vcmp.eq.s32.totalorder %v495, %v162
    %vm562 = vcmp.eq.s32.totalorder %v498, %v162
    %vm563 = vcmp.eq.s32.totalorder %v501, %v162
    %vm564 = vcmp.eq.s32.totalorder %v504, %v162
    %vm565 = vcmp.eq.s32.totalorder %v507, %v162
    %vm566 = vcmp.eq.s32.totalorder %v510, %v162
    %vm567 = vcmp.eq.s32.totalorder %v513, %v162
    %vm568 = vcmp.eq.s32.totalorder %v516, %v162
    %vm569 = vcmp.eq.s32.totalorder %v519, %v162
    %vm570 = vcmp.eq.s32.totalorder %v522, %v162
    %vm571 = vcmp.eq.s32.totalorder %v525, %v162
    %vm572 = vcmp.eq.s32.totalorder %v528, %v162
    %vm573 = vcmp.eq.s32.totalorder %v531, %v162
    %vm574 = vcmp.eq.s32.totalorder %v534, %v162
    %vm575 = vcmp.eq.s32.totalorder %v537, %v162
    %vm576 = vcmp.eq.s32.totalorder %v540, %v162
    %vm577 = vcmp.eq.s32.totalorder %v543, %v162
    %vm578 = vcmp.eq.s32.totalorder %v546, %v162
    %v579 = vsel %vm547, 1, 0
    %v580 = vsel %vm548, 1, 0
    %v581 = vsel %vm549, 1, 0
    %v582 = vsel %vm550, 1, 0
    %v583 = vsel %vm551, 1, 0
    %v584 = vsel %vm552, 1, 0
    %v585 = vsel %vm553, 1, 0
    %v586 = vsel %vm554, 1, 0
    %v587 = vsel %vm555, 1, 0
    %v588 = vsel %vm556, 1, 0
    %v589 = vsel %vm557, 1, 0
    %v590 = vsel %vm558, 1, 0
    %v591 = vsel %vm559, 1, 0
    %v592 = vsel %vm560, 1, 0
    %v593 = vsel %vm561, 1, 0
    %v594 = vsel %vm562, 1, 0
    %v595 = vsel %vm563, 1, 0
    %v596 = vsel %vm564, 1, 0
    %v597 = vsel %vm565, 1, 0
    %v598 = vsel %vm566, 1, 0
    %v599 = vsel %vm567, 1, 0
    %v600 = vsel %vm568, 1, 0
    %v601 = vsel %vm569, 1, 0
    %v602 = vsel %vm570, 1, 0
    %v603 = vsel %vm571, 1, 0
    %v604 = vsel %vm572, 1, 0
    %v605 = vsel %vm573, 1, 0
    %v606 = vsel %vm574, 1, 0
    %v607 = vsel %vm575, 1, 0
    %v608 = vsel %vm576, 1, 0
    %v609 = vsel %vm577, 1, 0
    %v610 = vsel %vm578, 1, 0
    %v611 = vcvt.s32.f32 %v579
    %v612 = vcvt.s32.f32 %v580
    %v613 = vcvt.s32.f32 %v581
    %v614 = vcvt.s32.f32 %v582
    %v615 = vcvt.s32.f32 %v583
    %v616 = vcvt.s32.f32 %v584
    %v617 = vcvt.s32.f32 %v585
    %v618 = vcvt.s32.f32 %v586
    %v619 = vcvt.s32.f32 %v587
    %v620 = vcvt.s32.f32 %v588
    %v621 = vcvt.s32.f32 %v589
    %v622 = vcvt.s32.f32 %v590
    %v623 = vcvt.s32.f32 %v591
    %v624 = vcvt.s32.f32 %v592
    %v625 = vcvt.s32.f32 %v593
    %v626 = vcvt.s32.f32 %v594
    %v627 = vcvt.s32.f32 %v595
    %v628 = vcvt.s32.f32 %v596
    %v629 = vcvt.s32.f32 %v597
    %v630 = vcvt.s32.f32 %v598
    %v631 = vcvt.s32.f32 %v599
    %v632 = vcvt.s32.f32 %v600
    %v633 = vcvt.s32.f32 %v601
    %v634 = vcvt.s32.f32 %v602
    %v635 = vcvt.s32.f32 %v603
    %v636 = vcvt.s32.f32 %v604
    %v637 = vcvt.s32.f32 %v605
    %v638 = vcvt.s32.f32 %v606
    %v639 = vcvt.s32.f32 %v607
    %v640 = vcvt.s32.f32 %v608
    %v641 = vcvt.s32.f32 %v609
    %v642 = vcvt.s32.f32 %v610
    %vm643 = vcmask 523264
    %v645 = vsel %vm643, %v611, 0
    %v648 = vsel %vm643, %v612, 0
    %v651 = vsel %vm643, %v613, 0
    %v654 = vsel %vm643, %v614, 0
    %v657 = vsel %vm643, %v615, 0
    %v660 = vsel %vm643, %v616, 0
    %v663 = vsel %vm643, %v617, 0
    %v666 = vsel %vm643, %v618, 0
    %v669 = vsel %vm643, %v619, 0
    %v672 = vsel %vm643, %v620, 0
    %v675 = vsel %vm643, %v621, 0
    %v678 = vsel %vm643, %v622, 0
    %v681 = vsel %vm643, %v623, 0
    %v684 = vsel %vm643, %v624, 0
    %v687 = vsel %vm643, %v625, 0
    %v690 = vsel %vm643, %v626, 0
    %v693 = vsel %vm643, %v627, 0
    %v696 = vsel %vm643, %v628, 0
    %v699 = vsel %vm643, %v629, 0
    %v702 = vsel %vm643, %v630, 0
    %v705 = vsel %vm643, %v631, 0
    %v708 = vsel %vm643, %v632, 0
    %v711 = vsel %vm643, %v633, 0
    %v714 = vsel %vm643, %v634, 0
    %v717 = vsel %vm643, %v635, 0
    %v720 = vsel %vm643, %v636, 0
    %v723 = vsel %vm643, %v637, 0
    %v726 = vsel %vm643, %v638, 0
    %v729 = vsel %vm643, %v639, 0
    %v732 = vsel %vm643, %v640, 0
    %v735 = vsel %vm643, %v641, 0
    %v738 = vsel %vm643, %v642, 0
    %740 = vmatpush.msra.mxu0 0.0
    %741 = vmatpush.msra.mxu0 0.0
    %742 = vmatpush.msra.mxu0 0.0
    %743 = vmatpush.msra.mxu0 0.0
    %744 = vmatpush.msra.mxu0 0.0
    %745 = vmatpush.msra.mxu0 0.0
    %746 = vmatpush.msra.mxu0 0.0
    %747 = vmatpush.msra.mxu0 0.0
    %748 = vmatpush.msra.mxu0 %v159
    %749 = vmatpush.msra.mxu0 %v156
    %750 = vmatpush.msra.mxu0 %v153
    %751 = vmatpush.msra.mxu0 %v150
    %752 = vmatpush.msra.mxu0 %v147
    %753 = vmatpush.msra.mxu0 %v144
    %754 = vmatpush.msra.mxu0 %v141
    %755 = vmatpush.msra.mxu0 %v138
    %756 = vmatmul.f32.gmra.mxu0 %v645
    %v757 = vpop.f32.mrf.mxu0
    %v758 = vadd.f32 0.0, %v757
    %759 = vmatmul.f32.gmra.mxu0 %v648
    %v760 = vpop.f32.mrf.mxu0
    %v761 = vadd.f32 0.0, %v760
    %762 = vmatmul.f32.gmra.mxu0 %v651
    %v763 = vpop.f32.mrf.mxu0
    %v764 = vadd.f32 0.0, %v763
    %765 = vmatmul.f32.gmra.mxu0 %v654
    %v766 = vpop.f32.mrf.mxu0
    %v767 = vadd.f32 0.0, %v766
    %768 = vmatmul.f32.gmra.mxu0 %v657
    %v769 = vpop.f32.mrf.mxu0
    %v770 = vadd.f32 0.0, %v769
    %771 = vmatmul.f32.gmra.mxu0 %v660
    %v772 = vpop.f32.mrf.mxu0
    %v773 = vadd.f32 0.0, %v772
    %774 = vmatmul.f32.gmra.mxu0 %v663
    %v775 = vpop.f32.mrf.mxu0
    %v776 = vadd.f32 0.0, %v775
    %777 = vmatmul.f32.gmra.mxu0 %v666
    %v778 = vpop.f32.mrf.mxu0
    %v779 = vadd.f32 0.0, %v778
    %780 = vmatmul.f32.gmra.mxu0 %v669
    %v781 = vpop.f32.mrf.mxu0
    %v782 = vadd.f32 0.0, %v781
    %783 = vmatmul.f32.gmra.mxu0 %v672
    %v784 = vpop.f32.mrf.mxu0
    %v785 = vadd.f32 0.0, %v784
    %786 = vmatmul.f32.gmra.mxu0 %v675
    %v787 = vpop.f32.mrf.mxu0
    %v788 = vadd.f32 0.0, %v787
    %789 = vmatmul.f32.gmra.mxu0 %v678
    %v790 = vpop.f32.mrf.mxu0
    %v791 = vadd.f32 0.0, %v790
    %792 = vmatmul.f32.gmra.mxu0 %v681
    %v793 = vpop.f32.mrf.mxu0
    %v794 = vadd.f32 0.0, %v793
    %795 = vmatmul.f32.gmra.mxu0 %v684
    %v796 = vpop.f32.mrf.mxu0
    %v797 = vadd.f32 0.0, %v796
    %798 = vmatmul.f32.gmra.mxu0 %v687
    %v799 = vpop.f32.mrf.mxu0
    %v800 = vadd.f32 0.0, %v799
    %801 = vmatmul.f32.gmra.mxu0 %v690
    %v802 = vpop.f32.mrf.mxu0
    %v803 = vadd.f32 0.0, %v802
    %804 = vmatmul.f32.gmra.mxu0 %v693
    %v805 = vpop.f32.mrf.mxu0
    %v806 = vadd.f32 0.0, %v805
    %807 = vmatmul.f32.gmra.mxu0 %v696
    %v808 = vpop.f32.mrf.mxu0
    %v809 = vadd.f32 0.0, %v808
    %810 = vmatmul.f32.gmra.mxu0 %v699
    %v811 = vpop.f32.mrf.mxu0
    %v812 = vadd.f32 0.0, %v811
    %813 = vmatmul.f32.gmra.mxu0 %v702
    %v814 = vpop.f32.mrf.mxu0
    %v815 = vadd.f32 0.0, %v814
    %816 = vmatmul.f32.gmra.mxu0 %v705
    %v817 = vpop.f32.mrf.mxu0
    %v818 = vadd.f32 0.0, %v817
    %819 = vmatmul.f32.gmra.mxu0 %v708
    %v820 = vpop.f32.mrf.mxu0
    %v821 = vadd.f32 0.0, %v820
    %822 = vmatmul.f32.gmra.mxu0 %v711
    %v823 = vpop.f32.mrf.mxu0
    %v824 = vadd.f32 0.0, %v823
    %825 = vmatmul.f32.gmra.mxu0 %v714
    %v826 = vpop.f32.mrf.mxu0
    %v827 = vadd.f32 0.0, %v826
    %828 = vmatmul.f32.gmra.mxu0 %v717
    %v829 = vpop.f32.mrf.mxu0
    %v830 = vadd.f32 0.0, %v829
    %831 = vmatmul.f32.gmra.mxu0 %v720
    %v832 = vpop.f32.mrf.mxu0
    %v833 = vadd.f32 0.0, %v832
    %834 = vmatmul.f32.gmra.mxu0 %v723
    %v835 = vpop.f32.mrf.mxu0
    %v836 = vadd.f32 0.0, %v835
    %837 = vmatmul.f32.gmra.mxu0 %v726
    %v838 = vpop.f32.mrf.mxu0
    %v839 = vadd.f32 0.0, %v838
    %840 = vmatmul.f32.gmra.mxu0 %v729
    %v841 = vpop.f32.mrf.mxu0
    %v842 = vadd.f32 0.0, %v841
    %843 = vmatmul.f32.gmra.mxu0 %v732
    %v844 = vpop.f32.mrf.mxu0
    %v845 = vadd.f32 0.0, %v844
    %846 = vmatmul.f32.gmra.mxu0 %v735
    %v847 = vpop.f32.mrf.mxu0
    %v848 = vadd.f32 0.0, %v847
    %849 = vmatmul.f32.gmra.mxu0 %v738
    %v850 = vpop.f32.mrf.mxu0
    %v851 = vadd.f32 0.0, %v850
    %852 = vdwg.mxu0
    %v854 = vsel %vm643, %v419, 0
    %v857 = vsel %vm643, %v420, 0
    %v860 = vsel %vm643, %v421, 0
    %v863 = vsel %vm643, %v422, 0
    %v866 = vsel %vm643, %v423, 0
    %v869 = vsel %vm643, %v424, 0
    %v872 = vsel %vm643, %v425, 0
    %v875 = vsel %vm643, %v426, 0
    %v878 = vsel %vm643, %v427, 0
    %v881 = vsel %vm643, %v428, 0
    %v884 = vsel %vm643, %v429, 0
    %v887 = vsel %vm643, %v430, 0
    %v890 = vsel %vm643, %v431, 0
    %v893 = vsel %vm643, %v432, 0
    %v896 = vsel %vm643, %v433, 0
    %v899 = vsel %vm643, %v434, 0
    %v902 = vsel %vm643, %v435, 0
    %v905 = vsel %vm643, %v436, 0
    %v908 = vsel %vm643, %v437, 0
    %v911 = vsel %vm643, %v438, 0
    %v914 = vsel %vm643, %v439, 0
    %v917 = vsel %vm643, %v440, 0
    %v920 = vsel %vm643, %v441, 0
    %v923 = vsel %vm643, %v442, 0
    %v926 = vsel %vm643, %v443, 0
    %v929 = vsel %vm643, %v444, 0
    %v932 = vsel %vm643, %v445, 0
    %v935 = vsel %vm643, %v446, 0
    %v938 = vsel %vm643, %v447, 0
    %v941 = vsel %vm643, %v448, 0
    %v944 = vsel %vm643, %v449, 0
    %v947 = vsel %vm643, %v450, 0
    %949 = vmatpush.msra.mxu0 0.0
    %950 = vmatpush.msra.mxu0 0.0
    %951 = vmatpush.msra.mxu0 0.0
    %952 = vmatpush.msra.mxu0 0.0
    %953 = vmatpush.msra.mxu0 0.0
    %954 = vmatpush.msra.mxu0 0.0
    %955 = vmatpush.msra.mxu0 0.0
    %956 = vmatpush.msra.mxu0 0.0
    %957 = vmatpush.msra.mxu0 %v118
    %958 = vmatpush.msra.mxu0 %v115
    %959 = vmatpush.msra.mxu0 %v112
    %960 = vmatpush.msra.mxu0 %v109
    %961 = vmatpush.msra.mxu0 %v106
    %962 = vmatpush.msra.mxu0 %v103
    %963 = vmatpush.msra.mxu0 %v100
    %964 = vmatpush.msra.mxu0 %v97
    %965 = vmatmul.f32.gmra.mxu0 %v854
    %v966 = vpop.f32.mrf.mxu0
    %v967 = vadd.f32 %v758, %v966
    %968 = vmatmul.f32.gmra.mxu0 %v857
    %v969 = vpop.f32.mrf.mxu0
    %v970 = vadd.f32 %v761, %v969
    %971 = vmatmul.f32.gmra.mxu0 %v860
    %v972 = vpop.f32.mrf.mxu0
    %v973 = vadd.f32 %v764, %v972
    %974 = vmatmul.f32.gmra.mxu0 %v863
    %v975 = vpop.f32.mrf.mxu0
    %v976 = vadd.f32 %v767, %v975
    %977 = vmatmul.f32.gmra.mxu0 %v866
    %v978 = vpop.f32.mrf.mxu0
    %v979 = vadd.f32 %v770, %v978
    %980 = vmatmul.f32.gmra.mxu0 %v869
    %v981 = vpop.f32.mrf.mxu0
    %v982 = vadd.f32 %v773, %v981
    %983 = vmatmul.f32.gmra.mxu0 %v872
    %v984 = vpop.f32.mrf.mxu0
    %v985 = vadd.f32 %v776, %v984
    %986 = vmatmul.f32.gmra.mxu0 %v875
    %v987 = vpop.f32.mrf.mxu0
    %v988 = vadd.f32 %v779, %v987
    %989 = vmatmul.f32.gmra.mxu0 %v878
    %v990 = vpop.f32.mrf.mxu0
    %v991 = vadd.f32 %v782, %v990
    %992 = vmatmul.f32.gmra.mxu0 %v881
    %v993 = vpop.f32.mrf.mxu0
    %v994 = vadd.f32 %v785, %v993
    %995 = vmatmul.f32.gmra.mxu0 %v884
    %v996 = vpop.f32.mrf.mxu0
    %v997 = vadd.f32 %v788, %v996
    %998 = vmatmul.f32.gmra.mxu0 %v887
    %v999 = vpop.f32.mrf.mxu0
    %v1000 = vadd.f32 %v791, %v999
    %1001 = vmatmul.f32.gmra.mxu0 %v890
    %v1002 = vpop.f32.mrf.mxu0
    %v1003 = vadd.f32 %v794, %v1002
    %1004 = vmatmul.f32.gmra.mxu0 %v893
    %v1005 = vpop.f32.mrf.mxu0
    %v1006 = vadd.f32 %v797, %v1005
    %1007 = vmatmul.f32.gmra.mxu0 %v896
    %v1008 = vpop.f32.mrf.mxu0
    %v1009 = vadd.f32 %v800, %v1008
    %1010 = vmatmul.f32.gmra.mxu0 %v899
    %v1011 = vpop.f32.mrf.mxu0
    %v1012 = vadd.f32 %v803, %v1011
    %1013 = vmatmul.f32.gmra.mxu0 %v902
    %v1014 = vpop.f32.mrf.mxu0
    %v1015 = vadd.f32 %v806, %v1014
    %1016 = vmatmul.f32.gmra.mxu0 %v905
    %v1017 = vpop.f32.mrf.mxu0
    %v1018 = vadd.f32 %v809, %v1017
    %1019 = vmatmul.f32.gmra.mxu0 %v908
    %v1020 = vpop.f32.mrf.mxu0
    %v1021 = vadd.f32 %v812, %v1020
    %1022 = vmatmul.f32.gmra.mxu0 %v911
    %v1023 = vpop.f32.mrf.mxu0
    %v1024 = vadd.f32 %v815, %v1023
    %1025 = vmatmul.f32.gmra.mxu0 %v914
    %v1026 = vpop.f32.mrf.mxu0
    %v1027 = vadd.f32 %v818, %v1026
    %1028 = vmatmul.f32.gmra.mxu0 %v917
    %v1029 = vpop.f32.mrf.mxu0
    %v1030 = vadd.f32 %v821, %v1029
    %1031 = vmatmul.f32.gmra.mxu0 %v920
    %v1032 = vpop.f32.mrf.mxu0
    %v1033 = vadd.f32 %v824, %v1032
    %1034 = vmatmul.f32.gmra.mxu0 %v923
    %v1035 = vpop.f32.mrf.mxu0
    %v1036 = vadd.f32 %v827, %v1035
    %1037 = vmatmul.f32.gmra.mxu0 %v926
    %v1038 = vpop.f32.mrf.mxu0
    %v1039 = vadd.f32 %v830, %v1038
    %1040 = vmatmul.f32.gmra.mxu0 %v929
    %v1041 = vpop.f32.mrf.mxu0
    %v1042 = vadd.f32 %v833, %v1041
    %1043 = vmatmul.f32.gmra.mxu0 %v932
    %v1044 = vpop.f32.mrf.mxu0
    %v1045 = vadd.f32 %v836, %v1044
    %1046 = vmatmul.f32.gmra.mxu0 %v935
    %v1047 = vpop.f32.mrf.mxu0
    %v1048 = vadd.f32 %v839, %v1047
    %1049 = vmatmul.f32.gmra.mxu0 %v938
    %v1050 = vpop.f32.mrf.mxu0
    %v1051 = vadd.f32 %v842, %v1050
    %1052 = vmatmul.f32.gmra.mxu0 %v941
    %v1053 = vpop.f32.mrf.mxu0
    %v1054 = vadd.f32 %v845, %v1053
    %1055 = vmatmul.f32.gmra.mxu0 %v944
    %v1056 = vpop.f32.mrf.mxu0
    %v1057 = vadd.f32 %v848, %v1056
    %1058 = vmatmul.f32.gmra.mxu0 %v947
    %v1059 = vpop.f32.mrf.mxu0
    %v1060 = vadd.f32 %v851, %v1059
    %1061 = vdwg.mxu0
    %v1063 = vsel %vm54, %v227, 0
    %v1066 = vsel %vm54, %v228, 0
    %v1069 = vsel %vm54, %v229, 0
    %v1072 = vsel %vm54, %v230, 0
    %v1075 = vsel %vm54, %v231, 0
    %v1078 = vsel %vm54, %v232, 0
    %v1081 = vsel %vm54, %v233, 0
    %v1084 = vsel %vm54, %v234, 0
    %v1087 = vsel %vm54, %v235, 0
    %v1090 = vsel %vm54, %v236, 0
    %v1093 = vsel %vm54, %v237, 0
    %v1096 = vsel %vm54, %v238, 0
    %v1099 = vsel %vm54, %v239, 0
    %v1102 = vsel %vm54, %v240, 0
    %v1105 = vsel %vm54, %v241, 0
    %v1108 = vsel %vm54, %v242, 0
    %v1111 = vsel %vm54, %v243, 0
    %v1114 = vsel %vm54, %v244, 0
    %v1117 = vsel %vm54, %v245, 0
    %v1120 = vsel %vm54, %v246, 0
    %v1123 = vsel %vm54, %v247, 0
    %v1126 = vsel %vm54, %v248, 0
    %v1129 = vsel %vm54, %v249, 0
    %v1132 = vsel %vm54, %v250, 0
    %v1135 = vsel %vm54, %v251, 0
    %v1138 = vsel %vm54, %v252, 0
    %v1141 = vsel %vm54, %v253, 0
    %v1144 = vsel %vm54, %v254, 0
    %v1147 = vsel %vm54, %v255, 0
    %v1150 = vsel %vm54, %v256, 0
    %v1153 = vsel %vm54, %v257, 0
    %v1156 = vsel %vm54, %v258, 0
    %1158 = vmatpush.msra.mxu0 0.0
    %1159 = vmatpush.msra.mxu0 0.0
    %1160 = vmatpush.msra.mxu0 0.0
    %1161 = vmatpush.msra.mxu0 0.0
    %1162 = vmatpush.msra.mxu0 0.0
    %1163 = vmatpush.msra.mxu0 0.0
    %1164 = vmatpush.msra.mxu0 0.0
    %1165 = vmatpush.msra.mxu0 0.0
    %1166 = vmatpush.msra.mxu0 0.0
    %1167 = vmatpush.msra.mxu0 0.0
    %1168 = vmatpush.msra.mxu0 0.0
    %1169 = vmatpush.msra.mxu0 0.0
    %1170 = vmatpush.msra.mxu0 %v50
    %1171 = vmatpush.msra.mxu0 %v49
    %1172 = vmatpush.msra.mxu0 %v48
    %1173 = vmatpush.msra.mxu0 %v47
    %1174 = vmatmul.f32.gmra.mxu0 %v1063
    %v1175 = vpop.f32.mrf.mxu0
    %v1176 = vadd.f32 0.0, %v1175
    %1177 = vmatmul.f32.gmra.mxu0 %v1066
    %v1178 = vpop.f32.mrf.mxu0
    %v1179 = vadd.f32 0.0, %v1178
    %1180 = vmatmul.f32.gmra.mxu0 %v1069
    %v1181 = vpop.f32.mrf.mxu0
    %v1182 = vadd.f32 0.0, %v1181
    %1183 = vmatmul.f32.gmra.mxu0 %v1072
    %v1184 = vpop.f32.mrf.mxu0
    %v1185 = vadd.f32 0.0, %v1184
    %1186 = vmatmul.f32.gmra.mxu0 %v1075
    %v1187 = vpop.f32.mrf.mxu0
    %v1188 = vadd.f32 0.0, %v1187
    %1189 = vmatmul.f32.gmra.mxu0 %v1078
    %v1190 = vpop.f32.mrf.mxu0
    %v1191 = vadd.f32 0.0, %v1190
    %1192 = vmatmul.f32.gmra.mxu0 %v1081
    %v1193 = vpop.f32.mrf.mxu0
    %v1194 = vadd.f32 0.0, %v1193
    %1195 = vmatmul.f32.gmra.mxu0 %v1084
    %v1196 = vpop.f32.mrf.mxu0
    %v1197 = vadd.f32 0.0, %v1196
    %1198 = vmatmul.f32.gmra.mxu0 %v1087
    %v1199 = vpop.f32.mrf.mxu0
    %v1200 = vadd.f32 0.0, %v1199
    %1201 = vmatmul.f32.gmra.mxu0 %v1090
    %v1202 = vpop.f32.mrf.mxu0
    %v1203 = vadd.f32 0.0, %v1202
    %1204 = vmatmul.f32.gmra.mxu0 %v1093
    %v1205 = vpop.f32.mrf.mxu0
    %v1206 = vadd.f32 0.0, %v1205
    %1207 = vmatmul.f32.gmra.mxu0 %v1096
    %v1208 = vpop.f32.mrf.mxu0
    %v1209 = vadd.f32 0.0, %v1208
    %1210 = vmatmul.f32.gmra.mxu0 %v1099
    %v1211 = vpop.f32.mrf.mxu0
    %v1212 = vadd.f32 0.0, %v1211
    %1213 = vmatmul.f32.gmra.mxu0 %v1102
    %v1214 = vpop.f32.mrf.mxu0
    %v1215 = vadd.f32 0.0, %v1214
    %1216 = vmatmul.f32.gmra.mxu0 %v1105
    %v1217 = vpop.f32.mrf.mxu0
    %v1218 = vadd.f32 0.0, %v1217
    %1219 = vmatmul.f32.gmra.mxu0 %v1108
    %v1220 = vpop.f32.mrf.mxu0
    %v1221 = vadd.f32 0.0, %v1220
    %1222 = vmatmul.f32.gmra.mxu0 %v1111
    %v1223 = vpop.f32.mrf.mxu0
    %v1224 = vadd.f32 0.0, %v1223
    %1225 = vmatmul.f32.gmra.mxu0 %v1114
    %v1226 = vpop.f32.mrf.mxu0
    %v1227 = vadd.f32 0.0, %v1226
    %1228 = vmatmul.f32.gmra.mxu0 %v1117
    %v1229 = vpop.f32.mrf.mxu0
    %v1230 = vadd.f32 0.0, %v1229
    %1231 = vmatmul.f32.gmra.mxu0 %v1120
    %v1232 = vpop.f32.mrf.mxu0
    %v1233 = vadd.f32 0.0, %v1232
    %1234 = vmatmul.f32.gmra.mxu0 %v1123
    %v1235 = vpop.f32.mrf.mxu0
    %v1236 = vadd.f32 0.0, %v1235
    %1237 = vmatmul.f32.gmra.mxu0 %v1126
    %v1238 = vpop.f32.mrf.mxu0
    %v1239 = vadd.f32 0.0, %v1238
    %1240 = vmatmul.f32.gmra.mxu0 %v1129
    %v1241 = vpop.f32.mrf.mxu0
    %v1242 = vadd.f32 0.0, %v1241
    %1243 = vmatmul.f32.gmra.mxu0 %v1132
    %v1244 = vpop.f32.mrf.mxu0
    %v1245 = vadd.f32 0.0, %v1244
    %1246 = vmatmul.f32.gmra.mxu0 %v1135
    %v1247 = vpop.f32.mrf.mxu0
    %v1248 = vadd.f32 0.0, %v1247
    %1249 = vmatmul.f32.gmra.mxu0 %v1138
    %v1250 = vpop.f32.mrf.mxu0
    %v1251 = vadd.f32 0.0, %v1250
    %1252 = vmatmul.f32.gmra.mxu0 %v1141
    %v1253 = vpop.f32.mrf.mxu0
    %v1254 = vadd.f32 0.0, %v1253
    %1255 = vmatmul.f32.gmra.mxu0 %v1144
    %v1256 = vpop.f32.mrf.mxu0
    %v1257 = vadd.f32 0.0, %v1256
    %1258 = vmatmul.f32.gmra.mxu0 %v1147
    %v1259 = vpop.f32.mrf.mxu0
    %v1260 = vadd.f32 0.0, %v1259
    %1261 = vmatmul.f32.gmra.mxu0 %v1150
    %v1262 = vpop.f32.mrf.mxu0
    %v1263 = vadd.f32 0.0, %v1262
    %1264 = vmatmul.f32.gmra.mxu0 %v1153
    %v1265 = vpop.f32.mrf.mxu0
    %v1266 = vadd.f32 0.0, %v1265
    %1267 = vmatmul.f32.gmra.mxu0 %v1156
    %v1268 = vpop.f32.mrf.mxu0
    %v1269 = vadd.f32 0.0, %v1268
    %1270 = vdwg.mxu0
    %v1271 = vadd.f32 %v967, %v1176
    %v1272 = vadd.f32 %v970, %v1179
    %v1273 = vadd.f32 %v973, %v1182
    %v1274 = vadd.f32 %v976, %v1185
    %v1275 = vadd.f32 %v979, %v1188
    %v1276 = vadd.f32 %v982, %v1191
    %v1277 = vadd.f32 %v985, %v1194
    %v1278 = vadd.f32 %v988, %v1197
    %v1279 = vadd.f32 %v991, %v1200
    %v1280 = vadd.f32 %v994, %v1203
    %v1281 = vadd.f32 %v997, %v1206
    %v1282 = vadd.f32 %v1000, %v1209
    %v1283 = vadd.f32 %v1003, %v1212
    %v1284 = vadd.f32 %v1006, %v1215
    %v1285 = vadd.f32 %v1009, %v1218
    %v1286 = vadd.f32 %v1012, %v1221
    %v1287 = vadd.f32 %v1015, %v1224
    %v1288 = vadd.f32 %v1018, %v1227
    %v1289 = vadd.f32 %v1021, %v1230
    %v1290 = vadd.f32 %v1024, %v1233
    %v1291 = vadd.f32 %v1027, %v1236
    %v1292 = vadd.f32 %v1030, %v1239
    %v1293 = vadd.f32 %v1033, %v1242
    %v1294 = vadd.f32 %v1036, %v1245
    %v1295 = vadd.f32 %v1039, %v1248
    %v1296 = vadd.f32 %v1042, %v1251
    %v1297 = vadd.f32 %v1045, %v1254
    %v1298 = vadd.f32 %v1048, %v1257
    %v1299 = vadd.f32 %v1051, %v1260
    %v1300 = vadd.f32 %v1054, %v1263
    %v1301 = vadd.f32 %v1057, %v1266
    %v1302 = vadd.f32 %v1060, %v1269
    %v1304 = vperm.slane %v51, 0
    %v1306 = vadd.f32 %v1271, %v1304
    %v1307 = vadd.f32 %v1272, %v1304
    %v1308 = vadd.f32 %v1273, %v1304
    %v1309 = vadd.f32 %v1274, %v1304
    %v1310 = vadd.f32 %v1275, %v1304
    %v1311 = vadd.f32 %v1276, %v1304
    %v1312 = vadd.f32 %v1277, %v1304
    %v1313 = vadd.f32 %v1278, %v1304
    %v1314 = vadd.f32 %v1279, %v1304
    %v1315 = vadd.f32 %v1280, %v1304
    %v1316 = vadd.f32 %v1281, %v1304
    %v1317 = vadd.f32 %v1282, %v1304
    %v1318 = vadd.f32 %v1283, %v1304
    %v1319 = vadd.f32 %v1284, %v1304
    %v1320 = vadd.f32 %v1285, %v1304
    %v1321 = vadd.f32 %v1286, %v1304
    %v1322 = vadd.f32 %v1287, %v1304
    %v1323 = vadd.f32 %v1288, %v1304
    %v1324 = vadd.f32 %v1289, %v1304
    %v1325 = vadd.f32 %v1290, %v1304
    %v1326 = vadd.f32 %v1291, %v1304
    %v1327 = vadd.f32 %v1292, %v1304
    %v1328 = vadd.f32 %v1293, %v1304
    %v1329 = vadd.f32 %v1294, %v1304
    %v1330 = vadd.f32 %v1295, %v1304
    %v1331 = vadd.f32 %v1296, %v1304
    %v1332 = vadd.f32 %v1297, %v1304
    %v1333 = vadd.f32 %v1298, %v1304
    %v1334 = vadd.f32 %v1299, %v1304
    %v1335 = vadd.f32 %v1300, %v1304
    %v1336 = vadd.f32 %v1301, %v1304
    %v1337 = vadd.f32 %v1302, %v1304
    %v1338 = vmax.f32 %v1306, 0.0
    %v1339 = vmax.f32 %v1307, 0.0
    %v1340 = vmax.f32 %v1308, 0.0
    %v1341 = vmax.f32 %v1309, 0.0
    %v1342 = vmax.f32 %v1310, 0.0
    %v1343 = vmax.f32 %v1311, 0.0
    %v1344 = vmax.f32 %v1312, 0.0
    %v1345 = vmax.f32 %v1313, 0.0
    %v1346 = vmax.f32 %v1314, 0.0
    %v1347 = vmax.f32 %v1315, 0.0
    %v1348 = vmax.f32 %v1316, 0.0
    %v1349 = vmax.f32 %v1317, 0.0
    %v1350 = vmax.f32 %v1318, 0.0
    %v1351 = vmax.f32 %v1319, 0.0
    %v1352 = vmax.f32 %v1320, 0.0
    %v1353 = vmax.f32 %v1321, 0.0
    %v1354 = vmax.f32 %v1322, 0.0
    %v1355 = vmax.f32 %v1323, 0.0
    %v1356 = vmax.f32 %v1324, 0.0
    %v1357 = vmax.f32 %v1325, 0.0
    %v1358 = vmax.f32 %v1326, 0.0
    %v1359 = vmax.f32 %v1327, 0.0
    %v1360 = vmax.f32 %v1328, 0.0
    %v1361 = vmax.f32 %v1329, 0.0
    %v1362 = vmax.f32 %v1330, 0.0
    %v1363 = vmax.f32 %v1331, 0.0
    %v1364 = vmax.f32 %v1332, 0.0
    %v1365 = vmax.f32 %v1333, 0.0
    %v1366 = vmax.f32 %v1334, 0.0
    %v1367 = vmax.f32 %v1335, 0.0
    %v1368 = vmax.f32 %v1336, 0.0
    %v1369 = vmax.f32 %v1337, 0.0
    %v1370 = vstv %s53
    %v1372 = vsel %vm54, %v52, 0
    %v1375 = vsel %vm54, %v1338, 0
    %v1378 = vsel %vm54, %v1339, 0
    %v1381 = vsel %vm54, %v1340, 0
    %v1384 = vsel %vm54, %v1341, 0
    %v1387 = vsel %vm54, %v1342, 0
    %v1390 = vsel %vm54, %v1343, 0
    %v1393 = vsel %vm54, %v1344, 0
    %v1396 = vsel %vm54, %v1345, 0
    %v1399 = vsel %vm54, %v1346, 0
    %v1402 = vsel %vm54, %v1347, 0
    %v1405 = vsel %vm54, %v1348, 0
    %v1408 = vsel %vm54, %v1349, 0
    %v1411 = vsel %vm54, %v1350, 0
    %v1414 = vsel %vm54, %v1351, 0
    %v1417 = vsel %vm54, %v1352, 0
    %v1420 = vsel %vm54, %v1353, 0
    %v1423 = vsel %vm54, %v1354, 0
    %v1426 = vsel %vm54, %v1355, 0
    %v1429 = vsel %vm54, %v1356, 0
    %v1432 = vsel %vm54, %v1357, 0
    %v1435 = vsel %vm54, %v1358, 0
    %v1438 = vsel %vm54, %v1359, 0
    %v1441 = vsel %vm54, %v1360, 0
    %v1444 = vsel %vm54, %v1361, 0
    %v1447 = vsel %vm54, %v1362, 0
    %v1450 = vsel %vm54, %v1363, 0
    %v1453 = vsel %vm54, %v1364, 0
    %v1456 = vsel %vm54, %v1365, 0
    %v1459 = vsel %vm54, %v1366, 0
    %v1462 = vsel %vm54, %v1367, 0
    %v1465 = vsel %vm54, %v1368, 0
    %v1468 = vsel %vm54, %v1369, 0
    %1470 = vmatpush.xpose.msra.mxu0 %v1420
    %1471 = vmatpush.xpose.msra.mxu0 %v1417
    %1472 = vmatpush.xpose.msra.mxu0 %v1414
    %1473 = vmatpush.xpose.msra.mxu0 %v1411
    %1474 = vmatpush.xpose.msra.mxu0 %v1408
    %1475 = vmatpush.xpose.msra.mxu0 %v1405
    %1476 = vmatpush.xpose.msra.mxu0 %v1402
    %1477 = vmatpush.xpose.msra.mxu0 %v1399
    %1478 = vmatpush.xpose.msra.mxu0 %v1396
    %1479 = vmatpush.xpose.msra.mxu0 %v1393
    %1480 = vmatpush.xpose.msra.mxu0 %v1390
    %1481 = vmatpush.xpose.msra.mxu0 %v1387
    %1482 = vmatpush.xpose.msra.mxu0 %v1384
    %1483 = vmatpush.xpose.msra.mxu0 %v1381
    %1484 = vmatpush.xpose.msra.mxu0 %v1378
    %1485 = vmatpush.xpose.msra.mxu0 %v1375
    %1486 = vmatmul.f32.gmra.mxu0 %v1372
    %v1487 = vpop.f32.mrf.mxu0
    %v1488 = vadd.f32 %v1370, %v1487
    %1489 = vdwg.mxu0
    %1490 = vmatpush.xpose.msra.mxu0 %v1468
    %1491 = vmatpush.xpose.msra.mxu0 %v1465
    %1492 = vmatpush.xpose.msra.mxu0 %v1462
    %1493 = vmatpush.xpose.msra.mxu0 %v1459
    %1494 = vmatpush.xpose.msra.mxu0 %v1456
    %1495 = vmatpush.xpose.msra.mxu0 %v1453
    %1496 = vmatpush.xpose.msra.mxu0 %v1450
    %1497 = vmatpush.xpose.msra.mxu0 %v1447
    %1498 = vmatpush.xpose.msra.mxu0 %v1444
    %1499 = vmatpush.xpose.msra.mxu0 %v1441
    %1500 = vmatpush.xpose.msra.mxu0 %v1438
    %1501 = vmatpush.xpose.msra.mxu0 %v1435
    %1502 = vmatpush.xpose.msra.mxu0 %v1432
    %1503 = vmatpush.xpose.msra.mxu0 %v1429
    %1504 = vmatpush.xpose.msra.mxu0 %v1426
    %1505 = vmatpush.xpose.msra.mxu0 %v1423
    %1506 = vmatmul.f32.gmra.mxu0 %v1372
    %v1507 = vpop.f32.mrf.mxu0
    %v1508 = vadd.f32 %v1370, %v1507
    %1509 = vdwg.mxu0
    %v1512 = vrot.slane %v1508, 7
    %vm1513 = vcmask 1040384
    %v1514 = vsel %vm1513, %v1488, %v1512
    %v1516 = vlaneseq
    %vm1517 = vcmp.ge.s32.totalorder %v1516, 0
    %vm1518 = vcmp.lt.s32.totalorder %v1516, 256
    %vm1519 = vmand %vm1517, %vm1518
    %1520 = vst.msk [vmem:[#allocation3] sm:$0x3] %vm1519, %v1514
    %v1521 = vld [vmem:[%s0 + $0x100] sm:$0xff]
    %v1522 = vld [vmem:[%s0 + $0x108] sm:$0xff]
    %v1523 = vld [vmem:[%s0 + $0x110] sm:$0xff]
    %v1524 = vld [vmem:[%s0 + $0x118] sm:$0xff]
    %v1525 = vld [vmem:[%s0 + $0x120] sm:$0xff]
    %v1526 = vld [vmem:[%s0 + $0x128] sm:$0xff]
    %v1527 = vld [vmem:[%s0 + $0x130] sm:$0xff]
    %v1528 = vld [vmem:[%s0 + $0x138] sm:$0xff]
    %v1529 = vld [vmem:[%s0 + $0x140] sm:$0xff]
    %v1530 = vld [vmem:[%s0 + $0x148] sm:$0xff]
    %v1531 = vld [vmem:[%s0 + $0x150] sm:$0xff]
    %v1532 = vld [vmem:[%s0 + $0x158] sm:$0xff]
    %v1533 = vld [vmem:[%s0 + $0x160] sm:$0xff]
    %v1534 = vld [vmem:[%s0 + $0x168] sm:$0xff]
    %v1535 = vld [vmem:[%s0 + $0x170] sm:$0xff]
    %v1536 = vld [vmem:[%s0 + $0x178] sm:$0xff]
    %v1537 = vld [vmem:[%s0 + $0x180] sm:$0xff]
    %v1538 = vld [vmem:[%s0 + $0x188] sm:$0xff]
    %v1539 = vld [vmem:[%s0 + $0x190] sm:$0xff]
    %v1540 = vld [vmem:[%s0 + $0x198] sm:$0xff]
    %v1541 = vld [vmem:[%s0 + $0x1a0] sm:$0xff]
    %v1542 = vld [vmem:[%s0 + $0x1a8] sm:$0xff]
    %v1543 = vld [vmem:[%s0 + $0x1b0] sm:$0xff]
    %v1544 = vld [vmem:[%s0 + $0x1b8] sm:$0xff]
    %v1545 = vld [vmem:[%s0 + $0x1c0] sm:$0xff]
    %v1546 = vld [vmem:[%s0 + $0x1c8] sm:$0xff]
    %v1547 = vld [vmem:[%s0 + $0x1d0] sm:$0xff]
    %v1548 = vld [vmem:[%s0 + $0x1d8] sm:$0xff]
    %v1549 = vld [vmem:[%s0 + $0x1e0] sm:$0xff]
    %v1550 = vld [vmem:[%s0 + $0x1e8] sm:$0xff]
    %v1551 = vld [vmem:[%s0 + $0x1f0] sm:$0xff]
    %v1552 = vld [vmem:[%s0 + $0x1f8] sm:$0xff]
    %v1553 = vld [vmem:[%s1 + $0x100] sm:$0xff]
    %v1554 = vld [vmem:[%s1 + $0x108] sm:$0xff]
    %v1555 = vld [vmem:[%s1 + $0x110] sm:$0xff]
    %v1556 = vld [vmem:[%s1 + $0x118] sm:$0xff]
    %v1557 = vld [vmem:[%s1 + $0x120] sm:$0xff]
    %v1558 = vld [vmem:[%s1 + $0x128] sm:$0xff]
    %v1559 = vld [vmem:[%s1 + $0x130] sm:$0xff]
    %v1560 = vld [vmem:[%s1 + $0x138] sm:$0xff]
    %v1561 = vld [vmem:[%s1 + $0x140] sm:$0xff]
    %v1562 = vld [vmem:[%s1 + $0x148] sm:$0xff]
    %v1563 = vld [vmem:[%s1 + $0x150] sm:$0xff]
    %v1564 = vld [vmem:[%s1 + $0x158] sm:$0xff]
    %v1565 = vld [vmem:[%s1 + $0x160] sm:$0xff]
    %v1566 = vld [vmem:[%s1 + $0x168] sm:$0xff]
    %v1567 = vld [vmem:[%s1 + $0x170] sm:$0xff]
    %v1568 = vld [vmem:[%s1 + $0x178] sm:$0xff]
    %v1569 = vld [vmem:[%s1 + $0x180] sm:$0xff]
    %v1570 = vld [vmem:[%s1 + $0x188] sm:$0xff]
    %v1571 = vld [vmem:[%s1 + $0x190] sm:$0xff]
    %v1572 = vld [vmem:[%s1 + $0x198] sm:$0xff]
    %v1573 = vld [vmem:[%s1 + $0x1a0] sm:$0xff]
    %v1574 = vld [vmem:[%s1 + $0x1a8] sm:$0xff]
    %v1575 = vld [vmem:[%s1 + $0x1b0] sm:$0xff]
    %v1576 = vld [vmem:[%s1 + $0x1b8] sm:$0xff]
    %v1577 = vld [vmem:[%s1 + $0x1c0] sm:$0xff]
    %v1578 = vld [vmem:[%s1 + $0x1c8] sm:$0xff]
    %v1579 = vld [vmem:[%s1 + $0x1d0] sm:$0xff]
    %v1580 = vld [vmem:[%s1 + $0x1d8] sm:$0xff]
    %v1581 = vld [vmem:[%s1 + $0x1e0] sm:$0xff]
    %v1582 = vld [vmem:[%s1 + $0x1e8] sm:$0xff]
    %v1583 = vld [vmem:[%s1 + $0x1f0] sm:$0xff]
    %v1584 = vld [vmem:[%s1 + $0x1f8] sm:$0xff]
    %v1585 = vld [vmem:[%s2 + $0x100] sm:$0xff]
    %v1586 = vld [vmem:[%s2 + $0x108] sm:$0xff]
    %v1587 = vld [vmem:[%s2 + $0x110] sm:$0xff]
    %v1588 = vld [vmem:[%s2 + $0x118] sm:$0xff]
    %v1589 = vld [vmem:[%s2 + $0x120] sm:$0xff]
    %v1590 = vld [vmem:[%s2 + $0x128] sm:$0xff]
    %v1591 = vld [vmem:[%s2 + $0x130] sm:$0xff]
    %v1592 = vld [vmem:[%s2 + $0x138] sm:$0xff]
    %v1593 = vld [vmem:[%s2 + $0x140] sm:$0xff]
    %v1594 = vld [vmem:[%s2 + $0x148] sm:$0xff]
    %v1595 = vld [vmem:[%s2 + $0x150] sm:$0xff]
    %v1596 = vld [vmem:[%s2 + $0x158] sm:$0xff]
    %v1597 = vld [vmem:[%s2 + $0x160] sm:$0xff]
    %v1598 = vld [vmem:[%s2 + $0x168] sm:$0xff]
    %v1599 = vld [vmem:[%s2 + $0x170] sm:$0xff]
    %v1600 = vld [vmem:[%s2 + $0x178] sm:$0xff]
    %v1601 = vld [vmem:[%s2 + $0x180] sm:$0xff]
    %v1602 = vld [vmem:[%s2 + $0x188] sm:$0xff]
    %v1603 = vld [vmem:[%s2 + $0x190] sm:$0xff]
    %v1604 = vld [vmem:[%s2 + $0x198] sm:$0xff]
    %v1605 = vld [vmem:[%s2 + $0x1a0] sm:$0xff]
    %v1606 = vld [vmem:[%s2 + $0x1a8] sm:$0xff]
    %v1607 = vld [vmem:[%s2 + $0x1b0] sm:$0xff]
    %v1608 = vld [vmem:[%s2 + $0x1b8] sm:$0xff]
    %v1609 = vld [vmem:[%s2 + $0x1c0] sm:$0xff]
    %v1610 = vld [vmem:[%s2 + $0x1c8] sm:$0xff]
    %v1611 = vld [vmem:[%s2 + $0x1d0] sm:$0xff]
    %v1612 = vld [vmem:[%s2 + $0x1d8] sm:$0xff]
    %v1613 = vld [vmem:[%s2 + $0x1e0] sm:$0xff]
    %v1614 = vld [vmem:[%s2 + $0x1e8] sm:$0xff]
    %v1615 = vld [vmem:[%s2 + $0x1f0] sm:$0xff]
    %v1616 = vld [vmem:[%s2 + $0x1f8] sm:$0xff]
    %1617 = vset.pattern.permute.xlu0 0
    %1618 = vperm.xlu0 %1617, %v1521
    %v1619 = vpop.permute.xlu0 %1618
    %1620 = vset.pattern.permute.xlu0 0
    %1621 = vperm.xlu0 %1620, %v1522
    %v1622 = vpop.permute.xlu0 %1621
    %1623 = vset.pattern.permute.xlu0 0
    %1624 = vperm.xlu0 %1623, %v1523
    %v1625 = vpop.permute.xlu0 %1624
    %1626 = vset.pattern.permute.xlu0 0
    %1627 = vperm.xlu0 %1626, %v1524
    %v1628 = vpop.permute.xlu0 %1627
    %1629 = vset.pattern.permute.xlu0 0
    %1630 = vperm.xlu0 %1629, %v1525
    %v1631 = vpop.permute.xlu0 %1630
    %1632 = vset.pattern.permute.xlu0 0
    %1633 = vperm.xlu0 %1632, %v1526
    %v1634 = vpop.permute.xlu0 %1633
    %1635 = vset.pattern.permute.xlu0 0
    %1636 = vperm.xlu0 %1635, %v1527
    %v1637 = vpop.permute.xlu0 %1636
    %1638 = vset.pattern.permute.xlu0 0
    %1639 = vperm.xlu0 %1638, %v1528
    %v1640 = vpop.permute.xlu0 %1639
    %1641 = vset.pattern.permute.xlu0 0
    %1642 = vperm.xlu0 %1641, %v1529
    %v1643 = vpop.permute.xlu0 %1642
    %1644 = vset.pattern.permute.xlu0 0
    %1645 = vperm.xlu0 %1644, %v1530
    %v1646 = vpop.permute.xlu0 %1645
    %1647 = vset.pattern.permute.xlu0 0
    %1648 = vperm.xlu0 %1647, %v1531
    %v1649 = vpop.permute.xlu0 %1648
    %1650 = vset.pattern.permute.xlu0 0
    %1651 = vperm.xlu0 %1650, %v1532
    %v1652 = vpop.permute.xlu0 %1651
    %1653 = vset.pattern.permute.xlu0 0
    %1654 = vperm.xlu0 %1653, %v1533
    %v1655 = vpop.permute.xlu0 %1654
    %1656 = vset.pattern.permute.xlu0 0
    %1657 = vperm.xlu0 %1656, %v1534
    %v1658 = vpop.permute.xlu0 %1657
    %1659 = vset.pattern.permute.xlu0 0
    %1660 = vperm.xlu0 %1659, %v1535
    %v1661 = vpop.permute.xlu0 %1660
    %1662 = vset.pattern.permute.xlu0 0
    %1663 = vperm.xlu0 %1662, %v1536
    %v1664 = vpop.permute.xlu0 %1663
    %1665 = vset.pattern.permute.xlu0 0
    %1666 = vperm.xlu0 %1665, %v1537
    %v1667 = vpop.permute.xlu0 %1666
    %1668 = vset.pattern.permute.xlu0 0
    %1669 = vperm.xlu0 %1668, %v1538
    %v1670 = vpop.permute.xlu0 %1669
    %1671 = vset.pattern.permute.xlu0 0
    %1672 = vperm.xlu0 %1671, %v1539
    %v1673 = vpop.permute.xlu0 %1672
    %1674 = vset.pattern.permute.xlu0 0
    %1675 = vperm.xlu0 %1674, %v1540
    %v1676 = vpop.permute.xlu0 %1675
    %1677 = vset.pattern.permute.xlu0 0
    %1678 = vperm.xlu0 %1677, %v1541
    %v1679 = vpop.permute.xlu0 %1678
    %1680 = vset.pattern.permute.xlu0 0
    %1681 = vperm.xlu0 %1680, %v1542
    %v1682 = vpop.permute.xlu0 %1681
    %1683 = vset.pattern.permute.xlu0 0
    %1684 = vperm.xlu0 %1683, %v1543
    %v1685 = vpop.permute.xlu0 %1684
    %1686 = vset.pattern.permute.xlu0 0
    %1687 = vperm.xlu0 %1686, %v1544
    %v1688 = vpop.permute.xlu0 %1687
    %1689 = vset.pattern.permute.xlu0 0
    %1690 = vperm.xlu0 %1689, %v1545
    %v1691 = vpop.permute.xlu0 %1690
    %1692 = vset.pattern.permute.xlu0 0
    %1693 = vperm.xlu0 %1692, %v1546
    %v1694 = vpop.permute.xlu0 %1693
    %1695 = vset.pattern.permute.xlu0 0
    %1696 = vperm.xlu0 %1695, %v1547
    %v1697 = vpop.permute.xlu0 %1696
    %1698 = vset.pattern.permute.xlu0 0
    %1699 = vperm.xlu0 %1698, %v1548
    %v1700 = vpop.permute.xlu0 %1699
    %1701 = vset.pattern.permute.xlu0 0
    %1702 = vperm.xlu0 %1701, %v1549
    %v1703 = vpop.permute.xlu0 %1702
    %1704 = vset.pattern.permute.xlu0 0
    %1705 = vperm.xlu0 %1704, %v1550
    %v1706 = vpop.permute.xlu0 %1705
    %1707 = vset.pattern.permute.xlu0 0
    %1708 = vperm.xlu0 %1707, %v1551
    %v1709 = vpop.permute.xlu0 %1708
    %1710 = vset.pattern.permute.xlu0 0
    %1711 = vperm.xlu0 %1710, %v1552
    %v1712 = vpop.permute.xlu0 %1711
    %vm1713 = vcmp.eq.s32.totalorder %v1619, %v162
    %vm1714 = vcmp.eq.s32.totalorder %v1622, %v162
    %vm1715 = vcmp.eq.s32.totalorder %v1625, %v162
    %vm1716 = vcmp.eq.s32.totalorder %v1628, %v162
    %vm1717 = vcmp.eq.s32.totalorder %v1631, %v162
    %vm1718 = vcmp.eq.s32.totalorder %v1634, %v162
    %vm1719 = vcmp.eq.s32.totalorder %v1637, %v162
    %vm1720 = vcmp.eq.s32.totalorder %v1640, %v162
    %vm1721 = vcmp.eq.s32.totalorder %v1643, %v162
    %vm1722 = vcmp.eq.s32.totalorder %v1646, %v162
    %vm1723 = vcmp.eq.s32.totalorder %v1649, %v162
    %vm1724 = vcmp.eq.s32.totalorder %v1652, %v162
    %vm1725 = vcmp.eq.s32.totalorder %v1655, %v162
    %vm1726 = vcmp.eq.s32.totalorder %v1658, %v162
    %vm1727 = vcmp.eq.s32.totalorder %v1661, %v162
    %vm1728 = vcmp.eq.s32.totalorder %v1664, %v162
    %vm1729 = vcmp.eq.s32.totalorder %v1667, %v162
    %vm1730 = vcmp.eq.s32.totalorder %v1670, %v162
    %vm1731 = vcmp.eq.s32.totalorder %v1673, %v162
    %vm1732 = vcmp.eq.s32.totalorder %v1676, %v162
    %vm1733 = vcmp.eq.s32.totalorder %v1679, %v162
    %vm1734 = vcmp.eq.s32.totalorder %v1682, %v162
    %vm1735 = vcmp.eq.s32.totalorder %v1685, %v162
    %vm1736 = vcmp.eq.s32.totalorder %v1688, %v162
    %vm1737 = vcmp.eq.s32.totalorder %v1691, %v162
    %vm1738 = vcmp.eq.s32.totalorder %v1694, %v162
    %vm1739 = vcmp.eq.s32.totalorder %v1697, %v162
    %vm1740 = vcmp.eq.s32.totalorder %v1700, %v162
    %vm1741 = vcmp.eq.s32.totalorder %v1703, %v162
    %vm1742 = vcmp.eq.s32.totalorder %v1706, %v162
    %vm1743 = vcmp.eq.s32.totalorder %v1709, %v162
    %vm1744 = vcmp.eq.s32.totalorder %v1712, %v162
    %v1745 = vsel %vm1713, 1, 0
    %v1746 = vsel %vm1714, 1, 0
    %v1747 = vsel %vm1715, 1, 0
    %v1748 = vsel %vm1716, 1, 0
    %v1749 = vsel %vm1717, 1, 0
    %v1750 = vsel %vm1718, 1, 0
    %v1751 = vsel %vm1719, 1, 0
    %v1752 = vsel %vm1720, 1, 0
    %v1753 = vsel %vm1721, 1, 0
    %v1754 = vsel %vm1722, 1, 0
    %v1755 = vsel %vm1723, 1, 0
    %v1756 = vsel %vm1724, 1, 0
    %v1757 = vsel %vm1725, 1, 0
    %v1758 = vsel %vm1726, 1, 0
    %v1759 = vsel %vm1727, 1, 0
    %v1760 = vsel %vm1728, 1, 0
    %v1761 = vsel %vm1729, 1, 0
    %v1762 = vsel %vm1730, 1, 0
    %v1763 = vsel %vm1731, 1, 0
    %v1764 = vsel %vm1732, 1, 0
    %v1765 = vsel %vm1733, 1, 0
    %v1766 = vsel %vm1734, 1, 0
    %v1767 = vsel %vm1735, 1, 0
    %v1768 = vsel %vm1736, 1, 0
    %v1769 = vsel %vm1737, 1, 0
    %v1770 = vsel %vm1738, 1, 0
    %v1771 = vsel %vm1739, 1, 0
    %v1772 = vsel %vm1740, 1, 0
    %v1773 = vsel %vm1741, 1, 0
    %v1774 = vsel %vm1742, 1, 0
    %v1775 = vsel %vm1743, 1, 0
    %v1776 = vsel %vm1744, 1, 0
    %v1777 = vcvt.s32.f32 %v1745
    %v1778 = vcvt.s32.f32 %v1746
    %v1779 = vcvt.s32.f32 %v1747
    %v1780 = vcvt.s32.f32 %v1748
    %v1781 = vcvt.s32.f32 %v1749
    %v1782 = vcvt.s32.f32 %v1750
    %v1783 = vcvt.s32.f32 %v1751
    %v1784 = vcvt.s32.f32 %v1752
    %v1785 = vcvt.s32.f32 %v1753
    %v1786 = vcvt.s32.f32 %v1754
    %v1787 = vcvt.s32.f32 %v1755
    %v1788 = vcvt.s32.f32 %v1756
    %v1789 = vcvt.s32.f32 %v1757
    %v1790 = vcvt.s32.f32 %v1758
    %v1791 = vcvt.s32.f32 %v1759
    %v1792 = vcvt.s32.f32 %v1760
    %v1793 = vcvt.s32.f32 %v1761
    %v1794 = vcvt.s32.f32 %v1762
    %v1795 = vcvt.s32.f32 %v1763
    %v1796 = vcvt.s32.f32 %v1764
    %v1797 = vcvt.s32.f32 %v1765
    %v1798 = vcvt.s32.f32 %v1766
    %v1799 = vcvt.s32.f32 %v1767
    %v1800 = vcvt.s32.f32 %v1768
    %v1801 = vcvt.s32.f32 %v1769
    %v1802 = vcvt.s32.f32 %v1770
    %v1803 = vcvt.s32.f32 %v1771
    %v1804 = vcvt.s32.f32 %v1772
    %v1805 = vcvt.s32.f32 %v1773
    %v1806 = vcvt.s32.f32 %v1774
    %v1807 = vcvt.s32.f32 %v1775
    %v1808 = vcvt.s32.f32 %v1776
    %1809 = vset.pattern.permute.xlu0 0
    %1810 = vperm.xlu0 %1809, %v1553
    %v1811 = vpop.permute.xlu0 %1810
    %1812 = vset.pattern.permute.xlu0 0
    %1813 = vperm.xlu0 %1812, %v1554
    %v1814 = vpop.permute.xlu0 %1813
    %1815 = vset.pattern.permute.xlu0 0
    %1816 = vperm.xlu0 %1815, %v1555
    %v1817 = vpop.permute.xlu0 %1816
    %1818 = vset.pattern.permute.xlu0 0
    %1819 = vperm.xlu0 %1818, %v1556
    %v1820 = vpop.permute.xlu0 %1819
    %1821 = vset.pattern.permute.xlu0 0
    %1822 = vperm.xlu0 %1821, %v1557
    %v1823 = vpop.permute.xlu0 %1822
    %1824 = vset.pattern.permute.xlu0 0
    %1825 = vperm.xlu0 %1824, %v1558
    %v1826 = vpop.permute.xlu0 %1825
    %1827 = vset.pattern.permute.xlu0 0
    %1828 = vperm.xlu0 %1827, %v1559
    %v1829 = vpop.permute.xlu0 %1828
    %1830 = vset.pattern.permute.xlu0 0
    %1831 = vperm.xlu0 %1830, %v1560
    %v1832 = vpop.permute.xlu0 %1831
    %1833 = vset.pattern.permute.xlu0 0
    %1834 = vperm.xlu0 %1833, %v1561
    %v1835 = vpop.permute.xlu0 %1834
    %1836 = vset.pattern.permute.xlu0 0
    %1837 = vperm.xlu0 %1836, %v1562
    %v1838 = vpop.permute.xlu0 %1837
    %1839 = vset.pattern.permute.xlu0 0
    %1840 = vperm.xlu0 %1839, %v1563
    %v1841 = vpop.permute.xlu0 %1840
    %1842 = vset.pattern.permute.xlu0 0
    %1843 = vperm.xlu0 %1842, %v1564
    %v1844 = vpop.permute.xlu0 %1843
    %1845 = vset.pattern.permute.xlu0 0
    %1846 = vperm.xlu0 %1845, %v1565
    %v1847 = vpop.permute.xlu0 %1846
    %1848 = vset.pattern.permute.xlu0 0
    %1849 = vperm.xlu0 %1848, %v1566
    %v1850 = vpop.permute.xlu0 %1849
    %1851 = vset.pattern.permute.xlu0 0
    %1852 = vperm.xlu0 %1851, %v1567
    %v1853 = vpop.permute.xlu0 %1852
    %1854 = vset.pattern.permute.xlu0 0
    %1855 = vperm.xlu0 %1854, %v1568
    %v1856 = vpop.permute.xlu0 %1855
    %1857 = vset.pattern.permute.xlu0 0
    %1858 = vperm.xlu0 %1857, %v1569
    %v1859 = vpop.permute.xlu0 %1858
    %1860 = vset.pattern.permute.xlu0 0
    %1861 = vperm.xlu0 %1860, %v1570
    %v1862 = vpop.permute.xlu0 %1861
    %1863 = vset.pattern.permute.xlu0 0
    %1864 = vperm.xlu0 %1863, %v1571
    %v1865 = vpop.permute.xlu0 %1864
    %1866 = vset.pattern.permute.xlu0 0
    %1867 = vperm.xlu0 %1866, %v1572
    %v1868 = vpop.permute.xlu0 %1867
    %1869 = vset.pattern.permute.xlu0 0
    %1870 = vperm.xlu0 %1869, %v1573
    %v1871 = vpop.permute.xlu0 %1870
    %1872 = vset.pattern.permute.xlu0 0
    %1873 = vperm.xlu0 %1872, %v1574
    %v1874 = vpop.permute.xlu0 %1873
    %1875 = vset.pattern.permute.xlu0 0
    %1876 = vperm.xlu0 %1875, %v1575
    %v1877 = vpop.permute.xlu0 %1876
    %1878 = vset.pattern.permute.xlu0 0
    %1879 = vperm.xlu0 %1878, %v1576
    %v1880 = vpop.permute.xlu0 %1879
    %1881 = vset.pattern.permute.xlu0 0
    %1882 = vperm.xlu0 %1881, %v1577
    %v1883 = vpop.permute.xlu0 %1882
    %1884 = vset.pattern.permute.xlu0 0
    %1885 = vperm.xlu0 %1884, %v1578
    %v1886 = vpop.permute.xlu0 %1885
    %1887 = vset.pattern.permute.xlu0 0
    %1888 = vperm.xlu0 %1887, %v1579
    %v1889 = vpop.permute.xlu0 %1888
    %1890 = vset.pattern.permute.xlu0 0
    %1891 = vperm.xlu0 %1890, %v1580
    %v1892 = vpop.permute.xlu0 %1891
    %1893 = vset.pattern.permute.xlu0 0
    %1894 = vperm.xlu0 %1893, %v1581
    %v1895 = vpop.permute.xlu0 %1894
    %1896 = vset.pattern.permute.xlu0 0
    %1897 = vperm.xlu0 %1896, %v1582
    %v1898 = vpop.permute.xlu0 %1897
    %1899 = vset.pattern.permute.xlu0 0
    %1900 = vperm.xlu0 %1899, %v1583
    %v1901 = vpop.permute.xlu0 %1900
    %1902 = vset.pattern.permute.xlu0 0
    %1903 = vperm.xlu0 %1902, %v1584
    %v1904 = vpop.permute.xlu0 %1903
    %vm1905 = vcmp.eq.s32.totalorder %v1811, %v162
    %vm1906 = vcmp.eq.s32.totalorder %v1814, %v162
    %vm1907 = vcmp.eq.s32.totalorder %v1817, %v162
    %vm1908 = vcmp.eq.s32.totalorder %v1820, %v162
    %vm1909 = vcmp.eq.s32.totalorder %v1823, %v162
    %vm1910 = vcmp.eq.s32.totalorder %v1826, %v162
    %vm1911 = vcmp.eq.s32.totalorder %v1829, %v162
    %vm1912 = vcmp.eq.s32.totalorder %v1832, %v162
    %vm1913 = vcmp.eq.s32.totalorder %v1835, %v162
    %vm1914 = vcmp.eq.s32.totalorder %v1838, %v162
    %vm1915 = vcmp.eq.s32.totalorder %v1841, %v162
    %vm1916 = vcmp.eq.s32.totalorder %v1844, %v162
    %vm1917 = vcmp.eq.s32.totalorder %v1847, %v162
    %vm1918 = vcmp.eq.s32.totalorder %v1850, %v162
    %vm1919 = vcmp.eq.s32.totalorder %v1853, %v162
    %vm1920 = vcmp.eq.s32.totalorder %v1856, %v162
    %vm1921 = vcmp.eq.s32.totalorder %v1859, %v162
    %vm1922 = vcmp.eq.s32.totalorder %v1862, %v162
    %vm1923 = vcmp.eq.s32.totalorder %v1865, %v162
    %vm1924 = vcmp.eq.s32.totalorder %v1868, %v162
    %vm1925 = vcmp.eq.s32.totalorder %v1871, %v162
    %vm1926 = vcmp.eq.s32.totalorder %v1874, %v162
    %vm1927 = vcmp.eq.s32.totalorder %v1877, %v162
    %vm1928 = vcmp.eq.s32.totalorder %v1880, %v162
    %vm1929 = vcmp.eq.s32.totalorder %v1883, %v162
    %vm1930 = vcmp.eq.s32.totalorder %v1886, %v162
    %vm1931 = vcmp.eq.s32.totalorder %v1889, %v162
    %vm1932 = vcmp.eq.s32.totalorder %v1892, %v162
    %vm1933 = vcmp.eq.s32.totalorder %v1895, %v162
    %vm1934 = vcmp.eq.s32.totalorder %v1898, %v162
    %vm1935 = vcmp.eq.s32.totalorder %v1901, %v162
    %vm1936 = vcmp.eq.s32.totalorder %v1904, %v162
    %v1937 = vsel %vm1905, 1, 0
    %v1938 = vsel %vm1906, 1, 0
    %v1939 = vsel %vm1907, 1, 0
    %v1940 = vsel %vm1908, 1, 0
    %v1941 = vsel %vm1909, 1, 0
    %v1942 = vsel %vm1910, 1, 0
    %v1943 = vsel %vm1911, 1, 0
    %v1944 = vsel %vm1912, 1, 0
    %v1945 = vsel %vm1913, 1, 0
    %v1946 = vsel %vm1914, 1, 0
    %v1947 = vsel %vm1915, 1, 0
    %v1948 = vsel %vm1916, 1, 0
    %v1949 = vsel %vm1917, 1, 0
    %v1950 = vsel %vm1918, 1, 0
    %v1951 = vsel %vm1919, 1, 0
    %v1952 = vsel %vm1920, 1, 0
    %v1953 = vsel %vm1921, 1, 0
    %v1954 = vsel %vm1922, 1, 0
    %v1955 = vsel %vm1923, 1, 0
    %v1956 = vsel %vm1924, 1, 0
    %v1957 = vsel %vm1925, 1, 0
    %v1958 = vsel %vm1926, 1, 0
    %v1959 = vsel %vm1927, 1, 0
    %v1960 = vsel %vm1928, 1, 0
    %v1961 = vsel %vm1929, 1, 0
    %v1962 = vsel %vm1930, 1, 0
    %v1963 = vsel %vm1931, 1, 0
    %v1964 = vsel %vm1932, 1, 0
    %v1965 = vsel %vm1933, 1, 0
    %v1966 = vsel %vm1934, 1, 0
    %v1967 = vsel %vm1935, 1, 0
    %v1968 = vsel %vm1936, 1, 0
    %v1969 = vcvt.s32.f32 %v1937
    %v1970 = vcvt.s32.f32 %v1938
    %v1971 = vcvt.s32.f32 %v1939
    %v1972 = vcvt.s32.f32 %v1940
    %v1973 = vcvt.s32.f32 %v1941
    %v1974 = vcvt.s32.f32 %v1942
    %v1975 = vcvt.s32.f32 %v1943
    %v1976 = vcvt.s32.f32 %v1944
    %v1977 = vcvt.s32.f32 %v1945
    %v1978 = vcvt.s32.f32 %v1946
    %v1979 = vcvt.s32.f32 %v1947
    %v1980 = vcvt.s32.f32 %v1948
    %v1981 = vcvt.s32.f32 %v1949
    %v1982 = vcvt.s32.f32 %v1950
    %v1983 = vcvt.s32.f32 %v1951
    %v1984 = vcvt.s32.f32 %v1952
    %v1985 = vcvt.s32.f32 %v1953
    %v1986 = vcvt.s32.f32 %v1954
    %v1987 = vcvt.s32.f32 %v1955
    %v1988 = vcvt.s32.f32 %v1956
    %v1989 = vcvt.s32.f32 %v1957
    %v1990 = vcvt.s32.f32 %v1958
    %v1991 = vcvt.s32.f32 %v1959
    %v1992 = vcvt.s32.f32 %v1960
    %v1993 = vcvt.s32.f32 %v1961
    %v1994 = vcvt.s32.f32 %v1962
    %v1995 = vcvt.s32.f32 %v1963
    %v1996 = vcvt.s32.f32 %v1964
    %v1997 = vcvt.s32.f32 %v1965
    %v1998 = vcvt.s32.f32 %v1966
    %v1999 = vcvt.s32.f32 %v1967
    %v2000 = vcvt.s32.f32 %v1968
    %v2002 = vsel %vm643, %v1969, 0
    %v2005 = vsel %vm643, %v1970, 0
    %v2008 = vsel %vm643, %v1971, 0
    %v2011 = vsel %vm643, %v1972, 0
    %v2014 = vsel %vm643, %v1973, 0
    %v2017 = vsel %vm643, %v1974, 0
    %v2020 = vsel %vm643, %v1975, 0
    %v2023 = vsel %vm643, %v1976, 0
    %v2026 = vsel %vm643, %v1977, 0
    %v2029 = vsel %vm643, %v1978, 0
    %v2032 = vsel %vm643, %v1979, 0
    %v2035 = vsel %vm643, %v1980, 0
    %v2038 = vsel %vm643, %v1981, 0
    %v2041 = vsel %vm643, %v1982, 0
    %v2044 = vsel %vm643, %v1983, 0
    %v2047 = vsel %vm643, %v1984, 0
    %v2050 = vsel %vm643, %v1985, 0
    %v2053 = vsel %vm643, %v1986, 0
    %v2056 = vsel %vm643, %v1987, 0
    %v2059 = vsel %vm643, %v1988, 0
    %v2062 = vsel %vm643, %v1989, 0
    %v2065 = vsel %vm643, %v1990, 0
    %v2068 = vsel %vm643, %v1991, 0
    %v2071 = vsel %vm643, %v1992, 0
    %v2074 = vsel %vm643, %v1993, 0
    %v2077 = vsel %vm643, %v1994, 0
    %v2080 = vsel %vm643, %v1995, 0
    %v2083 = vsel %vm643, %v1996, 0
    %v2086 = vsel %vm643, %v1997, 0
    %v2089 = vsel %vm643, %v1998, 0
    %v2092 = vsel %vm643, %v1999, 0
    %v2095 = vsel %vm643, %v2000, 0
    %2097 = vmatpush.msra.mxu0 0.0
    %2098 = vmatpush.msra.mxu0 0.0
    %2099 = vmatpush.msra.mxu0 0.0
    %2100 = vmatpush.msra.mxu0 0.0
    %2101 = vmatpush.msra.mxu0 0.0
    %2102 = vmatpush.msra.mxu0 0.0
    %2103 = vmatpush.msra.mxu0 0.0
    %2104 = vmatpush.msra.mxu0 0.0
    %2105 = vmatpush.msra.mxu0 %v159
    %2106 = vmatpush.msra.mxu0 %v156
    %2107 = vmatpush.msra.mxu0 %v153
    %2108 = vmatpush.msra.mxu0 %v150
    %2109 = vmatpush.msra.mxu0 %v147
    %2110 = vmatpush.msra.mxu0 %v144
    %2111 = vmatpush.msra.mxu0 %v141
    %2112 = vmatpush.msra.mxu0 %v138
    %2113 = vmatmul.f32.gmra.mxu0 %v2002
    %v2114 = vpop.f32.mrf.mxu0
    %v2115 = vadd.f32 0.0, %v2114
    %2116 = vmatmul.f32.gmra.mxu0 %v2005
    %v2117 = vpop.f32.mrf.mxu0
    %v2118 = vadd.f32 0.0, %v2117
    %2119 = vmatmul.f32.gmra.mxu0 %v2008
    %v2120 = vpop.f32.mrf.mxu0
    %v2121 = vadd.f32 0.0, %v2120
    %2122 = vmatmul.f32.gmra.mxu0 %v2011
    %v2123 = vpop.f32.mrf.mxu0
    %v2124 = vadd.f32 0.0, %v2123
    %2125 = vmatmul.f32.gmra.mxu0 %v2014
    %v2126 = vpop.f32.mrf.mxu0
    %v2127 = vadd.f32 0.0, %v2126
    %2128 = vmatmul.f32.gmra.mxu0 %v2017
    %v2129 = vpop.f32.mrf.mxu0
    %v2130 = vadd.f32 0.0, %v2129
    %2131 = vmatmul.f32.gmra.mxu0 %v2020
    %v2132 = vpop.f32.mrf.mxu0
    %v2133 = vadd.f32 0.0, %v2132
    %2134 = vmatmul.f32.gmra.mxu0 %v2023
    %v2135 = vpop.f32.mrf.mxu0
    %v2136 = vadd.f32 0.0, %v2135
    %2137 = vmatmul.f32.gmra.mxu0 %v2026
    %v2138 = vpop.f32.mrf.mxu0
    %v2139 = vadd.f32 0.0, %v2138
    %2140 = vmatmul.f32.gmra.mxu0 %v2029
    %v2141 = vpop.f32.mrf.mxu0
    %v2142 = vadd.f32 0.0, %v2141
    %2143 = vmatmul.f32.gmra.mxu0 %v2032
    %v2144 = vpop.f32.mrf.mxu0
    %v2145 = vadd.f32 0.0, %v2144
    %2146 = vmatmul.f32.gmra.mxu0 %v2035
    %v2147 = vpop.f32.mrf.mxu0
    %v2148 = vadd.f32 0.0, %v2147
    %2149 = vmatmul.f32.gmra.mxu0 %v2038
    %v2150 = vpop.f32.mrf.mxu0
    %v2151 = vadd.f32 0.0, %v2150
    %2152 = vmatmul.f32.gmra.mxu0 %v2041
    %v2153 = vpop.f32.mrf.mxu0
    %v2154 = vadd.f32 0.0, %v2153
    %2155 = vmatmul.f32.gmra.mxu0 %v2044
    %v2156 = vpop.f32.mrf.mxu0
    %v2157 = vadd.f32 0.0, %v2156
    %2158 = vmatmul.f32.gmra.mxu0 %v2047
    %v2159 = vpop.f32.mrf.mxu0
    %v2160 = vadd.f32 0.0, %v2159
    %2161 = vmatmul.f32.gmra.mxu0 %v2050
    %v2162 = vpop.f32.mrf.mxu0
    %v2163 = vadd.f32 0.0, %v2162
    %2164 = vmatmul.f32.gmra.mxu0 %v2053
    %v2165 = vpop.f32.mrf.mxu0
    %v2166 = vadd.f32 0.0, %v2165
    %2167 = vmatmul.f32.gmra.mxu0 %v2056
    %v2168 = vpop.f32.mrf.mxu0
    %v2169 = vadd.f32 0.0, %v2168
    %2170 = vmatmul.f32.gmra.mxu0 %v2059
    %v2171 = vpop.f32.mrf.mxu0
    %v2172 = vadd.f32 0.0, %v2171
    %2173 = vmatmul.f32.gmra.mxu0 %v2062
    %v2174 = vpop.f32.mrf.mxu0
    %v2175 = vadd.f32 0.0, %v2174
    %2176 = vmatmul.f32.gmra.mxu0 %v2065
    %v2177 = vpop.f32.mrf.mxu0
    %v2178 = vadd.f32 0.0, %v2177
    %2179 = vmatmul.f32.gmra.mxu0 %v2068
    %v2180 = vpop.f32.mrf.mxu0
    %v2181 = vadd.f32 0.0, %v2180
    %2182 = vmatmul.f32.gmra.mxu0 %v2071
    %v2183 = vpop.f32.mrf.mxu0
    %v2184 = vadd.f32 0.0, %v2183
    %2185 = vmatmul.f32.gmra.mxu0 %v2074
    %v2186 = vpop.f32.mrf.mxu0
    %v2187 = vadd.f32 0.0, %v2186
    %2188 = vmatmul.f32.gmra.mxu0 %v2077
    %v2189 = vpop.f32.mrf.mxu0
    %v2190 = vadd.f32 0.0, %v2189
    %2191 = vmatmul.f32.gmra.mxu0 %v2080
    %v2192 = vpop.f32.mrf.mxu0
    %v2193 = vadd.f32 0.0, %v2192
    %2194 = vmatmul.f32.gmra.mxu0 %v2083
    %v2195 = vpop.f32.mrf.mxu0
    %v2196 = vadd.f32 0.0, %v2195
    %2197 = vmatmul.f32.gmra.mxu0 %v2086
    %v2198 = vpop.f32.mrf.mxu0
    %v2199 = vadd.f32 0.0, %v2198
    %2200 = vmatmul.f32.gmra.mxu0 %v2089
    %v2201 = vpop.f32.mrf.mxu0
    %v2202 = vadd.f32 0.0, %v2201
    %2203 = vmatmul.f32.gmra.mxu0 %v2092
    %v2204 = vpop.f32.mrf.mxu0
    %v2205 = vadd.f32 0.0, %v2204
    %2206 = vmatmul.f32.gmra.mxu0 %v2095
    %v2207 = vpop.f32.mrf.mxu0
    %v2208 = vadd.f32 0.0, %v2207
    %2209 = vdwg.mxu0
    %v2211 = vsel %vm643, %v1777, 0
    %v2214 = vsel %vm643, %v1778, 0
    %v2217 = vsel %vm643, %v1779, 0
    %v2220 = vsel %vm643, %v1780, 0
    %v2223 = vsel %vm643, %v1781, 0
    %v2226 = vsel %vm643, %v1782, 0
    %v2229 = vsel %vm643, %v1783, 0
    %v2232 = vsel %vm643, %v1784, 0
    %v2235 = vsel %vm643, %v1785, 0
    %v2238 = vsel %vm643, %v1786, 0
    %v2241 = vsel %vm643, %v1787, 0
    %v2244 = vsel %vm643, %v1788, 0
    %v2247 = vsel %vm643, %v1789, 0
    %v2250 = vsel %vm643, %v1790, 0
    %v2253 = vsel %vm643, %v1791, 0
    %v2256 = vsel %vm643, %v1792, 0
    %v2259 = vsel %vm643, %v1793, 0
    %v2262 = vsel %vm643, %v1794, 0
    %v2265 = vsel %vm643, %v1795, 0
    %v2268 = vsel %vm643, %v1796, 0
    %v2271 = vsel %vm643, %v1797, 0
    %v2274 = vsel %vm643, %v1798, 0
    %v2277 = vsel %vm643, %v1799, 0
    %v2280 = vsel %vm643, %v1800, 0
    %v2283 = vsel %vm643, %v1801, 0
    %v2286 = vsel %vm643, %v1802, 0
    %v2289 = vsel %vm643, %v1803, 0
    %v2292 = vsel %vm643, %v1804, 0
    %v2295 = vsel %vm643, %v1805, 0
    %v2298 = vsel %vm643, %v1806, 0
    %v2301 = vsel %vm643, %v1807, 0
    %v2304 = vsel %vm643, %v1808, 0
    %2306 = vmatpush.msra.mxu0 0.0
    %2307 = vmatpush.msra.mxu0 0.0
    %2308 = vmatpush.msra.mxu0 0.0
    %2309 = vmatpush.msra.mxu0 0.0
    %2310 = vmatpush.msra.mxu0 0.0
    %2311 = vmatpush.msra.mxu0 0.0
    %2312 = vmatpush.msra.mxu0 0.0
    %2313 = vmatpush.msra.mxu0 0.0
    %2314 = vmatpush.msra.mxu0 %v118
    %2315 = vmatpush.msra.mxu0 %v115
    %2316 = vmatpush.msra.mxu0 %v112
    %2317 = vmatpush.msra.mxu0 %v109
    %2318 = vmatpush.msra.mxu0 %v106
    %2319 = vmatpush.msra.mxu0 %v103
    %2320 = vmatpush.msra.mxu0 %v100
    %2321 = vmatpush.msra.mxu0 %v97
    %2322 = vmatmul.f32.gmra.mxu0 %v2211
    %v2323 = vpop.f32.mrf.mxu0
    %v2324 = vadd.f32 %v2115, %v2323
    %2325 = vmatmul.f32.gmra.mxu0 %v2214
    %v2326 = vpop.f32.mrf.mxu0
    %v2327 = vadd.f32 %v2118, %v2326
    %2328 = vmatmul.f32.gmra.mxu0 %v2217
    %v2329 = vpop.f32.mrf.mxu0
    %v2330 = vadd.f32 %v2121, %v2329
    %2331 = vmatmul.f32.gmra.mxu0 %v2220
    %v2332 = vpop.f32.mrf.mxu0
    %v2333 = vadd.f32 %v2124, %v2332
    %2334 = vmatmul.f32.gmra.mxu0 %v2223
    %v2335 = vpop.f32.mrf.mxu0
    %v2336 = vadd.f32 %v2127, %v2335
    %2337 = vmatmul.f32.gmra.mxu0 %v2226
    %v2338 = vpop.f32.mrf.mxu0
    %v2339 = vadd.f32 %v2130, %v2338
    %2340 = vmatmul.f32.gmra.mxu0 %v2229
    %v2341 = vpop.f32.mrf.mxu0
    %v2342 = vadd.f32 %v2133, %v2341
    %2343 = vmatmul.f32.gmra.mxu0 %v2232
    %v2344 = vpop.f32.mrf.mxu0
    %v2345 = vadd.f32 %v2136, %v2344
    %2346 = vmatmul.f32.gmra.mxu0 %v2235
    %v2347 = vpop.f32.mrf.mxu0
    %v2348 = vadd.f32 %v2139, %v2347
    %2349 = vmatmul.f32.gmra.mxu0 %v2238
    %v2350 = vpop.f32.mrf.mxu0
    %v2351 = vadd.f32 %v2142, %v2350
    %2352 = vmatmul.f32.gmra.mxu0 %v2241
    %v2353 = vpop.f32.mrf.mxu0
    %v2354 = vadd.f32 %v2145, %v2353
    %2355 = vmatmul.f32.gmra.mxu0 %v2244
    %v2356 = vpop.f32.mrf.mxu0
    %v2357 = vadd.f32 %v2148, %v2356
    %2358 = vmatmul.f32.gmra.mxu0 %v2247
    %v2359 = vpop.f32.mrf.mxu0
    %v2360 = vadd.f32 %v2151, %v2359
    %2361 = vmatmul.f32.gmra.mxu0 %v2250
    %v2362 = vpop.f32.mrf.mxu0
    %v2363 = vadd.f32 %v2154, %v2362
    %2364 = vmatmul.f32.gmra.mxu0 %v2253
    %v2365 = vpop.f32.mrf.mxu0
    %v2366 = vadd.f32 %v2157, %v2365
    %2367 = vmatmul.f32.gmra.mxu0 %v2256
    %v2368 = vpop.f32.mrf.mxu0
    %v2369 = vadd.f32 %v2160, %v2368
    %2370 = vmatmul.f32.gmra.mxu0 %v2259
    %v2371 = vpop.f32.mrf.mxu0
    %v2372 = vadd.f32 %v2163, %v2371
    %2373 = vmatmul.f32.gmra.mxu0 %v2262
    %v2374 = vpop.f32.mrf.mxu0
    %v2375 = vadd.f32 %v2166, %v2374
    %2376 = vmatmul.f32.gmra.mxu0 %v2265
    %v2377 = vpop.f32.mrf.mxu0
    %v2378 = vadd.f32 %v2169, %v2377
    %2379 = vmatmul.f32.gmra.mxu0 %v2268
    %v2380 = vpop.f32.mrf.mxu0
    %v2381 = vadd.f32 %v2172, %v2380
    %2382 = vmatmul.f32.gmra.mxu0 %v2271
    %v2383 = vpop.f32.mrf.mxu0
    %v2384 = vadd.f32 %v2175, %v2383
    %2385 = vmatmul.f32.gmra.mxu0 %v2274
    %v2386 = vpop.f32.mrf.mxu0
    %v2387 = vadd.f32 %v2178, %v2386
    %2388 = vmatmul.f32.gmra.mxu0 %v2277
    %v2389 = vpop.f32.mrf.mxu0
    %v2390 = vadd.f32 %v2181, %v2389
    %2391 = vmatmul.f32.gmra.mxu0 %v2280
    %v2392 = vpop.f32.mrf.mxu0
    %v2393 = vadd.f32 %v2184, %v2392
    %2394 = vmatmul.f32.gmra.mxu0 %v2283
    %v2395 = vpop.f32.mrf.mxu0
    %v2396 = vadd.f32 %v2187, %v2395
    %2397 = vmatmul.f32.gmra.mxu0 %v2286
    %v2398 = vpop.f32.mrf.mxu0
    %v2399 = vadd.f32 %v2190, %v2398
    %2400 = vmatmul.f32.gmra.mxu0 %v2289
    %v2401 = vpop.f32.mrf.mxu0
    %v2402 = vadd.f32 %v2193, %v2401
    %2403 = vmatmul.f32.gmra.mxu0 %v2292
    %v2404 = vpop.f32.mrf.mxu0
    %v2405 = vadd.f32 %v2196, %v2404
    %2406 = vmatmul.f32.gmra.mxu0 %v2295
    %v2407 = vpop.f32.mrf.mxu0
    %v2408 = vadd.f32 %v2199, %v2407
    %2409 = vmatmul.f32.gmra.mxu0 %v2298
    %v2410 = vpop.f32.mrf.mxu0
    %v2411 = vadd.f32 %v2202, %v2410
    %2412 = vmatmul.f32.gmra.mxu0 %v2301
    %v2413 = vpop.f32.mrf.mxu0
    %v2414 = vadd.f32 %v2205, %v2413
    %2415 = vmatmul.f32.gmra.mxu0 %v2304
    %v2416 = vpop.f32.mrf.mxu0
    %v2417 = vadd.f32 %v2208, %v2416
    %2418 = vdwg.mxu0
    %v2420 = vsel %vm54, %v1585, 0
    %v2423 = vsel %vm54, %v1586, 0
    %v2426 = vsel %vm54, %v1587, 0
    %v2429 = vsel %vm54, %v1588, 0
    %v2432 = vsel %vm54, %v1589, 0
    %v2435 = vsel %vm54, %v1590, 0
    %v2438 = vsel %vm54, %v1591, 0
    %v2441 = vsel %vm54, %v1592, 0
    %v2444 = vsel %vm54, %v1593, 0
    %v2447 = vsel %vm54, %v1594, 0
    %v2450 = vsel %vm54, %v1595, 0
    %v2453 = vsel %vm54, %v1596, 0
    %v2456 = vsel %vm54, %v1597, 0
    %v2459 = vsel %vm54, %v1598, 0
    %v2462 = vsel %vm54, %v1599, 0
    %v2465 = vsel %vm54, %v1600, 0
    %v2468 = vsel %vm54, %v1601, 0
    %v2471 = vsel %vm54, %v1602, 0
    %v2474 = vsel %vm54, %v1603, 0
    %v2477 = vsel %vm54, %v1604, 0
    %v2480 = vsel %vm54, %v1605, 0
    %v2483 = vsel %vm54, %v1606, 0
    %v2486 = vsel %vm54, %v1607, 0
    %v2489 = vsel %vm54, %v1608, 0
    %v2492 = vsel %vm54, %v1609, 0
    %v2495 = vsel %vm54, %v1610, 0
    %v2498 = vsel %vm54, %v1611, 0
    %v2501 = vsel %vm54, %v1612, 0
    %v2504 = vsel %vm54, %v1613, 0
    %v2507 = vsel %vm54, %v1614, 0
    %v2510 = vsel %vm54, %v1615, 0
    %v2513 = vsel %vm54, %v1616, 0
    %2515 = vmatpush.msra.mxu0 0.0
    %2516 = vmatpush.msra.mxu0 0.0
    %2517 = vmatpush.msra.mxu0 0.0
    %2518 = vmatpush.msra.mxu0 0.0
    %2519 = vmatpush.msra.mxu0 0.0
    %2520 = vmatpush.msra.mxu0 0.0
    %2521 = vmatpush.msra.mxu0 0.0
    %2522 = vmatpush.msra.mxu0 0.0
    %2523 = vmatpush.msra.mxu0 0.0
    %2524 = vmatpush.msra.mxu0 0.0
    %2525 = vmatpush.msra.mxu0 0.0
    %2526 = vmatpush.msra.mxu0 0.0
    %2527 = vmatpush.msra.mxu0 %v50
    %2528 = vmatpush.msra.mxu0 %v49
    %2529 = vmatpush.msra.mxu0 %v48
    %2530 = vmatpush.msra.mxu0 %v47
    %2531 = vmatmul.f32.gmra.mxu0 %v2420
    %v2532 = vpop.f32.mrf.mxu0
    %v2533 = vadd.f32 0.0, %v2532
    %2534 = vmatmul.f32.gmra.mxu0 %v2423
    %v2535 = vpop.f32.mrf.mxu0
    %v2536 = vadd.f32 0.0, %v2535
    %2537 = vmatmul.f32.gmra.mxu0 %v2426
    %v2538 = vpop.f32.mrf.mxu0
    %v2539 = vadd.f32 0.0, %v2538
    %2540 = vmatmul.f32.gmra.mxu0 %v2429
    %v2541 = vpop.f32.mrf.mxu0
    %v2542 = vadd.f32 0.0, %v2541
    %2543 = vmatmul.f32.gmra.mxu0 %v2432
    %v2544 = vpop.f32.mrf.mxu0
    %v2545 = vadd.f32 0.0, %v2544
    %2546 = vmatmul.f32.gmra.mxu0 %v2435
    %v2547 = vpop.f32.mrf.mxu0
    %v2548 = vadd.f32 0.0, %v2547
    %2549 = vmatmul.f32.gmra.mxu0 %v2438
    %v2550 = vpop.f32.mrf.mxu0
    %v2551 = vadd.f32 0.0, %v2550
    %2552 = vmatmul.f32.gmra.mxu0 %v2441
    %v2553 = vpop.f32.mrf.mxu0
    %v2554 = vadd.f32 0.0, %v2553
    %2555 = vmatmul.f32.gmra.mxu0 %v2444
    %v2556 = vpop.f32.mrf.mxu0
    %v2557 = vadd.f32 0.0, %v2556
    %2558 = vmatmul.f32.gmra.mxu0 %v2447
    %v2559 = vpop.f32.mrf.mxu0
    %v2560 = vadd.f32 0.0, %v2559
    %2561 = vmatmul.f32.gmra.mxu0 %v2450
    %v2562 = vpop.f32.mrf.mxu0
    %v2563 = vadd.f32 0.0, %v2562
    %2564 = vmatmul.f32.gmra.mxu0 %v2453
    %v2565 = vpop.f32.mrf.mxu0
    %v2566 = vadd.f32 0.0, %v2565
    %2567 = vmatmul.f32.gmra.mxu0 %v2456
    %v2568 = vpop.f32.mrf.mxu0
    %v2569 = vadd.f32 0.0, %v2568
    %2570 = vmatmul.f32.gmra.mxu0 %v2459
    %v2571 = vpop.f32.mrf.mxu0
    %v2572 = vadd.f32 0.0, %v2571
    %2573 = vmatmul.f32.gmra.mxu0 %v2462
    %v2574 = vpop.f32.mrf.mxu0
    %v2575 = vadd.f32 0.0, %v2574
    %2576 = vmatmul.f32.gmra.mxu0 %v2465
    %v2577 = vpop.f32.mrf.mxu0
    %v2578 = vadd.f32 0.0, %v2577
    %2579 = vmatmul.f32.gmra.mxu0 %v2468
    %v2580 = vpop.f32.mrf.mxu0
    %v2581 = vadd.f32 0.0, %v2580
    %2582 = vmatmul.f32.gmra.mxu0 %v2471
    %v2583 = vpop.f32.mrf.mxu0
    %v2584 = vadd.f32 0.0, %v2583
    %2585 = vmatmul.f32.gmra.mxu0 %v2474
    %v2586 = vpop.f32.mrf.mxu0
    %v2587 = vadd.f32 0.0, %v2586
    %2588 = vmatmul.f32.gmra.mxu0 %v2477
    %v2589 = vpop.f32.mrf.mxu0
    %v2590 = vadd.f32 0.0, %v2589
    %2591 = vmatmul.f32.gmra.mxu0 %v2480
    %v2592 = vpop.f32.mrf.mxu0
    %v2593 = vadd.f32 0.0, %v2592
    %2594 = vmatmul.f32.gmra.mxu0 %v2483
    %v2595 = vpop.f32.mrf.mxu0
    %v2596 = vadd.f32 0.0, %v2595
    %2597 = vmatmul.f32.gmra.mxu0 %v2486
    %v2598 = vpop.f32.mrf.mxu0
    %v2599 = vadd.f32 0.0, %v2598
    %2600 = vmatmul.f32.gmra.mxu0 %v2489
    %v2601 = vpop.f32.mrf.mxu0
    %v2602 = vadd.f32 0.0, %v2601
    %2603 = vmatmul.f32.gmra.mxu0 %v2492
    %v2604 = vpop.f32.mrf.mxu0
    %v2605 = vadd.f32 0.0, %v2604
    %2606 = vmatmul.f32.gmra.mxu0 %v2495
    %v2607 = vpop.f32.mrf.mxu0
    %v2608 = vadd.f32 0.0, %v2607
    %2609 = vmatmul.f32.gmra.mxu0 %v2498
    %v2610 = vpop.f32.mrf.mxu0
    %v2611 = vadd.f32 0.0, %v2610
    %2612 = vmatmul.f32.gmra.mxu0 %v2501
    %v2613 = vpop.f32.mrf.mxu0
    %v2614 = vadd.f32 0.0, %v2613
    %2615 = vmatmul.f32.gmra.mxu0 %v2504
    %v2616 = vpop.f32.mrf.mxu0
    %v2617 = vadd.f32 0.0, %v2616
    %2618 = vmatmul.f32.gmra.mxu0 %v2507
    %v2619 = vpop.f32.mrf.mxu0
    %v2620 = vadd.f32 0.0, %v2619
    %2621 = vmatmul.f32.gmra.mxu0 %v2510
    %v2622 = vpop.f32.mrf.mxu0
    %v2623 = vadd.f32 0.0, %v2622
    %2624 = vmatmul.f32.gmra.mxu0 %v2513
    %v2625 = vpop.f32.mrf.mxu0
    %v2626 = vadd.f32 0.0, %v2625
    %2627 = vdwg.mxu0
    %v2628 = vadd.f32 %v2324, %v2533
    %v2629 = vadd.f32 %v2327, %v2536
    %v2630 = vadd.f32 %v2330, %v2539
    %v2631 = vadd.f32 %v2333, %v2542
    %v2632 = vadd.f32 %v2336, %v2545
    %v2633 = vadd.f32 %v2339, %v2548
    %v2634 = vadd.f32 %v2342, %v2551
    %v2635 = vadd.f32 %v2345, %v2554
    %v2636 = vadd.f32 %v2348, %v2557
    %v2637 = vadd.f32 %v2351, %v2560
    %v2638 = vadd.f32 %v2354, %v2563
    %v2639 = vadd.f32 %v2357, %v2566
    %v2640 = vadd.f32 %v2360, %v2569
    %v2641 = vadd.f32 %v2363, %v2572
    %v2642 = vadd.f32 %v2366, %v2575
    %v2643 = vadd.f32 %v2369, %v2578
    %v2644 = vadd.f32 %v2372, %v2581
    %v2645 = vadd.f32 %v2375, %v2584
    %v2646 = vadd.f32 %v2378, %v2587
    %v2647 = vadd.f32 %v2381, %v2590
    %v2648 = vadd.f32 %v2384, %v2593
    %v2649 = vadd.f32 %v2387, %v2596
    %v2650 = vadd.f32 %v2390, %v2599
    %v2651 = vadd.f32 %v2393, %v2602
    %v2652 = vadd.f32 %v2396, %v2605
    %v2653 = vadd.f32 %v2399, %v2608
    %v2654 = vadd.f32 %v2402, %v2611
    %v2655 = vadd.f32 %v2405, %v2614
    %v2656 = vadd.f32 %v2408, %v2617
    %v2657 = vadd.f32 %v2411, %v2620
    %v2658 = vadd.f32 %v2414, %v2623
    %v2659 = vadd.f32 %v2417, %v2626
    %v2660 = vadd.f32 %v2628, %v1304
    %v2661 = vadd.f32 %v2629, %v1304
    %v2662 = vadd.f32 %v2630, %v1304
    %v2663 = vadd.f32 %v2631, %v1304
    %v2664 = vadd.f32 %v2632, %v1304
    %v2665 = vadd.f32 %v2633, %v1304
    %v2666 = vadd.f32 %v2634, %v1304
    %v2667 = vadd.f32 %v2635, %v1304
    %v2668 = vadd.f32 %v2636, %v1304
    %v2669 = vadd.f32 %v2637, %v1304
    %v2670 = vadd.f32 %v2638, %v1304
    %v2671 = vadd.f32 %v2639, %v1304
    %v2672 = vadd.f32 %v2640, %v1304
    %v2673 = vadd.f32 %v2641, %v1304
    %v2674 = vadd.f32 %v2642, %v1304
    %v2675 = vadd.f32 %v2643, %v1304
    %v2676 = vadd.f32 %v2644, %v1304
    %v2677 = vadd.f32 %v2645, %v1304
    %v2678 = vadd.f32 %v2646, %v1304
    %v2679 = vadd.f32 %v2647, %v1304
    %v2680 = vadd.f32 %v2648, %v1304
    %v2681 = vadd.f32 %v2649, %v1304
    %v2682 = vadd.f32 %v2650, %v1304
    %v2683 = vadd.f32 %v2651, %v1304
    %v2684 = vadd.f32 %v2652, %v1304
    %v2685 = vadd.f32 %v2653, %v1304
    %v2686 = vadd.f32 %v2654, %v1304
    %v2687 = vadd.f32 %v2655, %v1304
    %v2688 = vadd.f32 %v2656, %v1304
    %v2689 = vadd.f32 %v2657, %v1304
    %v2690 = vadd.f32 %v2658, %v1304
    %v2691 = vadd.f32 %v2659, %v1304
    %v2692 = vmax.f32 %v2660, 0.0
    %v2693 = vmax.f32 %v2661, 0.0
    %v2694 = vmax.f32 %v2662, 0.0
    %v2695 = vmax.f32 %v2663, 0.0
    %v2696 = vmax.f32 %v2664, 0.0
    %v2697 = vmax.f32 %v2665, 0.0
    %v2698 = vmax.f32 %v2666, 0.0
    %v2699 = vmax.f32 %v2667, 0.0
    %v2700 = vmax.f32 %v2668, 0.0
    %v2701 = vmax.f32 %v2669, 0.0
    %v2702 = vmax.f32 %v2670, 0.0
    %v2703 = vmax.f32 %v2671, 0.0
    %v2704 = vmax.f32 %v2672, 0.0
    %v2705 = vmax.f32 %v2673, 0.0
    %v2706 = vmax.f32 %v2674, 0.0
    %v2707 = vmax.f32 %v2675, 0.0
    %v2708 = vmax.f32 %v2676, 0.0
    %v2709 = vmax.f32 %v2677, 0.0
    %v2710 = vmax.f32 %v2678, 0.0
    %v2711 = vmax.f32 %v2679, 0.0
    %v2712 = vmax.f32 %v2680, 0.0
    %v2713 = vmax.f32 %v2681, 0.0
    %v2714 = vmax.f32 %v2682, 0.0
    %v2715 = vmax.f32 %v2683, 0.0
    %v2716 = vmax.f32 %v2684, 0.0
    %v2717 = vmax.f32 %v2685, 0.0
    %v2718 = vmax.f32 %v2686, 0.0
    %v2719 = vmax.f32 %v2687, 0.0
    %v2720 = vmax.f32 %v2688, 0.0
    %v2721 = vmax.f32 %v2689, 0.0
    %v2722 = vmax.f32 %v2690, 0.0
    %v2723 = vmax.f32 %v2691, 0.0
    %v2725 = vsel %vm54, %v2692, 0
    %v2728 = vsel %vm54, %v2693, 0
    %v2731 = vsel %vm54, %v2694, 0
    %v2734 = vsel %vm54, %v2695, 0
    %v2737 = vsel %vm54, %v2696, 0
    %v2740 = vsel %vm54, %v2697, 0
    %v2743 = vsel %vm54, %v2698, 0
    %v2746 = vsel %vm54, %v2699, 0
    %v2749 = vsel %vm54, %v2700, 0
    %v2752 = vsel %vm54, %v2701, 0
    %v2755 = vsel %vm54, %v2702, 0
    %v2758 = vsel %vm54, %v2703, 0
    %v2761 = vsel %vm54, %v2704, 0
    %v2764 = vsel %vm54, %v2705, 0
    %v2767 = vsel %vm54, %v2706, 0
    %v2770 = vsel %vm54, %v2707, 0
    %v2773 = vsel %vm54, %v2708, 0
    %v2776 = vsel %vm54, %v2709, 0
    %v2779 = vsel %vm54, %v2710, 0
    %v2782 = vsel %vm54, %v2711, 0
    %v2785 = vsel %vm54, %v2712, 0
    %v2788 = vsel %vm54, %v2713, 0
    %v2791 = vsel %vm54, %v2714, 0
    %v2794 = vsel %vm54, %v2715, 0
    %v2797 = vsel %vm54, %v2716, 0
    %v2800 = vsel %vm54, %v2717, 0
    %v2803 = vsel %vm54, %v2718, 0
    %v2806 = vsel %vm54, %v2719, 0
    %v2809 = vsel %vm54, %v2720, 0
    %v2812 = vsel %vm54, %v2721, 0
    %v2815 = vsel %vm54, %v2722, 0
    %v2818 = vsel %vm54, %v2723, 0
    %2820 = vmatpush.xpose.msra.mxu0 %v2770
    %2821 = vmatpush.xpose.msra.mxu0 %v2767
    %2822 = vmatpush.xpose.msra.mxu0 %v2764
    %2823 = vmatpush.xpose.msra.mxu0 %v2761
    %2824 = vmatpush.xpose.msra.mxu0 %v2758
    %2825 = vmatpush.xpose.msra.mxu0 %v2755
    %2826 = vmatpush.xpose.msra.mxu0 %v2752
    %2827 = vmatpush.xpose.msra.mxu0 %v2749
    %2828 = vmatpush.xpose.msra.mxu0 %v2746
    %2829 = vmatpush.xpose.msra.mxu0 %v2743
    %2830 = vmatpush.xpose.msra.mxu0 %v2740
    %2831 = vmatpush.xpose.msra.mxu0 %v2737
    %2832 = vmatpush.xpose.msra.mxu0 %v2734
    %2833 = vmatpush.xpose.msra.mxu0 %v2731
    %2834 = vmatpush.xpose.msra.mxu0 %v2728
    %2835 = vmatpush.xpose.msra.mxu0 %v2725
    %2836 = vmatmul.f32.gmra.mxu0 %v1372
    %v2837 = vpop.f32.mrf.mxu0
    %v2838 = vadd.f32 %v1370, %v2837
    %2839 = vdwg.mxu0
    %2840 = vmatpush.xpose.msra.mxu0 %v2818
    %2841 = vmatpush.xpose.msra.mxu0 %v2815
    %2842 = vmatpush.xpose.msra.mxu0 %v2812
    %2843 = vmatpush.xpose.msra.mxu0 %v2809
    %2844 = vmatpush.xpose.msra.mxu0 %v2806
    %2845 = vmatpush.xpose.msra.mxu0 %v2803
    %2846 = vmatpush.xpose.msra.mxu0 %v2800
    %2847 = vmatpush.xpose.msra.mxu0 %v2797
    %2848 = vmatpush.xpose.msra.mxu0 %v2794
    %2849 = vmatpush.xpose.msra.mxu0 %v2791
    %2850 = vmatpush.xpose.msra.mxu0 %v2788
    %2851 = vmatpush.xpose.msra.mxu0 %v2785
    %2852 = vmatpush.xpose.msra.mxu0 %v2782
    %2853 = vmatpush.xpose.msra.mxu0 %v2779
    %2854 = vmatpush.xpose.msra.mxu0 %v2776
    %2855 = vmatpush.xpose.msra.mxu0 %v2773
    %2856 = vmatmul.f32.gmra.mxu0 %v1372
    %v2857 = vpop.f32.mrf.mxu0
    %v2858 = vadd.f32 %v1370, %v2857
    %2859 = vdwg.mxu0
    %v2862 = vrot.slane %v2858, 7
    %v2863 = vsel %vm1513, %v2838, %v2862
    %2865 = vst.msk [vmem:[#allocation3 + $0x2] sm:$0x3] %vm1519, %v2863
    %v2866 = vld [vmem:[%s0 + $0x200] sm:$0xff]
    %v2867 = vld [vmem:[%s0 + $0x208] sm:$0xff]
    %v2868 = vld [vmem:[%s0 + $0x210] sm:$0xff]
    %v2869 = vld [vmem:[%s0 + $0x218] sm:$0xff]
    %v2870 = vld [vmem:[%s0 + $0x220] sm:$0xff]
    %v2871 = vld [vmem:[%s0 + $0x228] sm:$0xff]
    %v2872 = vld [vmem:[%s0 + $0x230] sm:$0xff]
    %v2873 = vld [vmem:[%s0 + $0x238] sm:$0xff]
    %v2874 = vld [vmem:[%s0 + $0x240] sm:$0xff]
    %v2875 = vld [vmem:[%s0 + $0x248] sm:$0xff]
    %v2876 = vld [vmem:[%s0 + $0x250] sm:$0xff]
    %v2877 = vld [vmem:[%s0 + $0x258] sm:$0xff]
    %v2878 = vld [vmem:[%s0 + $0x260] sm:$0xff]
    %v2879 = vld [vmem:[%s0 + $0x268] sm:$0xff]
    %v2880 = vld [vmem:[%s0 + $0x270] sm:$0xff]
    %v2881 = vld [vmem:[%s0 + $0x278] sm:$0xff]
    %v2882 = vld [vmem:[%s0 + $0x280] sm:$0xff]
    %v2883 = vld [vmem:[%s0 + $0x288] sm:$0xff]
    %v2884 = vld [vmem:[%s0 + $0x290] sm:$0xff]
    %v2885 = vld [vmem:[%s0 + $0x298] sm:$0xff]
    %v2886 = vld [vmem:[%s0 + $0x2a0] sm:$0xff]
    %v2887 = vld [vmem:[%s0 + $0x2a8] sm:$0xff]
    %v2888 = vld [vmem:[%s0 + $0x2b0] sm:$0xff]
    %v2889 = vld [vmem:[%s0 + $0x2b8] sm:$0xff]
    %v2890 = vld [vmem:[%s0 + $0x2c0] sm:$0xff]
    %v2891 = vld [vmem:[%s0 + $0x2c8] sm:$0xff]
    %v2892 = vld [vmem:[%s0 + $0x2d0] sm:$0xff]
    %v2893 = vld [vmem:[%s0 + $0x2d8] sm:$0xff]
    %v2894 = vld [vmem:[%s0 + $0x2e0] sm:$0xff]
    %v2895 = vld [vmem:[%s0 + $0x2e8] sm:$0xff]
    %v2896 = vld [vmem:[%s0 + $0x2f0] sm:$0xff]
    %v2897 = vld [vmem:[%s0 + $0x2f8] sm:$0xff]
    %v2898 = vld [vmem:[%s1 + $0x200] sm:$0xff]
    %v2899 = vld [vmem:[%s1 + $0x208] sm:$0xff]
    %v2900 = vld [vmem:[%s1 + $0x210] sm:$0xff]
    %v2901 = vld [vmem:[%s1 + $0x218] sm:$0xff]
    %v2902 = vld [vmem:[%s1 + $0x220] sm:$0xff]
    %v2903 = vld [vmem:[%s1 + $0x228] sm:$0xff]
    %v2904 = vld [vmem:[%s1 + $0x230] sm:$0xff]
    %v2905 = vld [vmem:[%s1 + $0x238] sm:$0xff]
    %v2906 = vld [vmem:[%s1 + $0x240] sm:$0xff]
    %v2907 = vld [vmem:[%s1 + $0x248] sm:$0xff]
    %v2908 = vld [vmem:[%s1 + $0x250] sm:$0xff]
    %v2909 = vld [vmem:[%s1 + $0x258] sm:$0xff]
    %v2910 = vld [vmem:[%s1 + $0x260] sm:$0xff]
    %v2911 = vld [vmem:[%s1 + $0x268] sm:$0xff]
    %v2912 = vld [vmem:[%s1 + $0x270] sm:$0xff]
    %v2913 = vld [vmem:[%s1 + $0x278] sm:$0xff]
    %v2914 = vld [vmem:[%s1 + $0x280] sm:$0xff]
    %v2915 = vld [vmem:[%s1 + $0x288] sm:$0xff]
    %v2916 = vld [vmem:[%s1 + $0x290] sm:$0xff]
    %v2917 = vld [vmem:[%s1 + $0x298] sm:$0xff]
    %v2918 = vld [vmem:[%s1 + $0x2a0] sm:$0xff]
    %v2919 = vld [vmem:[%s1 + $0x2a8] sm:$0xff]
    %v2920 = vld [vmem:[%s1 + $0x2b0] sm:$0xff]
    %v2921 = vld [vmem:[%s1 + $0x2b8] sm:$0xff]
    %v2922 = vld [vmem:[%s1 + $0x2c0] sm:$0xff]
    %v2923 = vld [vmem:[%s1 + $0x2c8] sm:$0xff]
    %v2924 = vld [vmem:[%s1 + $0x2d0] sm:$0xff]
    %v2925 = vld [vmem:[%s1 + $0x2d8] sm:$0xff]
    %v2926 = vld [vmem:[%s1 + $0x2e0] sm:$0xff]
    %v2927 = vld [vmem:[%s1 + $0x2e8] sm:$0xff]
    %v2928 = vld [vmem:[%s1 + $0x2f0] sm:$0xff]
    %v2929 = vld [vmem:[%s1 + $0x2f8] sm:$0xff]
    %v2930 = vld [vmem:[%s2 + $0x200] sm:$0xff]
    %v2931 = vld [vmem:[%s2 + $0x208] sm:$0xff]
    %v2932 = vld [vmem:[%s2 + $0x210] sm:$0xff]
    %v2933 = vld [vmem:[%s2 + $0x218] sm:$0xff]
    %v2934 = vld [vmem:[%s2 + $0x220] sm:$0xff]
    %v2935 = vld [vmem:[%s2 + $0x228] sm:$0xff]
    %v2936 = vld [vmem:[%s2 + $0x230] sm:$0xff]
    %v2937 = vld [vmem:[%s2 + $0x238] sm:$0xff]
    %v2938 = vld [vmem:[%s2 + $0x240] sm:$0xff]
    %v2939 = vld [vmem:[%s2 + $0x248] sm:$0xff]
    %v2940 = vld [vmem:[%s2 + $0x250] sm:$0xff]
    %v2941 = vld [vmem:[%s2 + $0x258] sm:$0xff]
    %v2942 = vld [vmem:[%s2 + $0x260] sm:$0xff]
    %v2943 = vld [vmem:[%s2 + $0x268] sm:$0xff]
    %v2944 = vld [vmem:[%s2 + $0x270] sm:$0xff]
    %v2945 = vld [vmem:[%s2 + $0x278] sm:$0xff]
    %v2946 = vld [vmem:[%s2 + $0x280] sm:$0xff]
    %v2947 = vld [vmem:[%s2 + $0x288] sm:$0xff]
    %v2948 = vld [vmem:[%s2 + $0x290] sm:$0xff]
    %v2949 = vld [vmem:[%s2 + $0x298] sm:$0xff]
    %v2950 = vld [vmem:[%s2 + $0x2a0] sm:$0xff]
    %v2951 = vld [vmem:[%s2 + $0x2a8] sm:$0xff]
    %v2952 = vld [vmem:[%s2 + $0x2b0] sm:$0xff]
    %v2953 = vld [vmem:[%s2 + $0x2b8] sm:$0xff]
    %v2954 = vld [vmem:[%s2 + $0x2c0] sm:$0xff]
    %v2955 = vld [vmem:[%s2 + $0x2c8] sm:$0xff]
    %v2956 = vld [vmem:[%s2 + $0x2d0] sm:$0xff]
    %v2957 = vld [vmem:[%s2 + $0x2d8] sm:$0xff]
    %v2958 = vld [vmem:[%s2 + $0x2e0] sm:$0xff]
    %v2959 = vld [vmem:[%s2 + $0x2e8] sm:$0xff]
    %v2960 = vld [vmem:[%s2 + $0x2f0] sm:$0xff]
    %v2961 = vld [vmem:[%s2 + $0x2f8] sm:$0xff]
    %2962 = vset.pattern.permute.xlu0 0
    %2963 = vperm.xlu0 %2962, %v2866
    %v2964 = vpop.permute.xlu0 %2963
    %2965 = vset.pattern.permute.xlu0 0
    %2966 = vperm.xlu0 %2965, %v2867
    %v2967 = vpop.permute.xlu0 %2966
    %2968 = vset.pattern.permute.xlu0 0
    %2969 = vperm.xlu0 %2968, %v2868
    %v2970 = vpop.permute.xlu0 %2969
    %2971 = vset.pattern.permute.xlu0 0
    %2972 = vperm.xlu0 %2971, %v2869
    %v2973 = vpop.permute.xlu0 %2972
    %2974 = vset.pattern.permute.xlu0 0
    %2975 = vperm.xlu0 %2974, %v2870
    %v2976 = vpop.permute.xlu0 %2975
    %2977 = vset.pattern.permute.xlu0 0
    %2978 = vperm.xlu0 %2977, %v2871
    %v2979 = vpop.permute.xlu0 %2978
    %2980 = vset.pattern.permute.xlu0 0
    %2981 = vperm.xlu0 %2980, %v2872
    %v2982 = vpop.permute.xlu0 %2981
    %2983 = vset.pattern.permute.xlu0 0
    %2984 = vperm.xlu0 %2983, %v2873
    %v2985 = vpop.permute.xlu0 %2984
    %2986 = vset.pattern.permute.xlu0 0
    %2987 = vperm.xlu0 %2986, %v2874
    %v2988 = vpop.permute.xlu0 %2987
    %2989 = vset.pattern.permute.xlu0 0
    %2990 = vperm.xlu0 %2989, %v2875
    %v2991 = vpop.permute.xlu0 %2990
    %2992 = vset.pattern.permute.xlu0 0
    %2993 = vperm.xlu0 %2992, %v2876
    %v2994 = vpop.permute.xlu0 %2993
    %2995 = vset.pattern.permute.xlu0 0
    %2996 = vperm.xlu0 %2995, %v2877
    %v2997 = vpop.permute.xlu0 %2996
    %2998 = vset.pattern.permute.xlu0 0
    %2999 = vperm.xlu0 %2998, %v2878
    %v3000 = vpop.permute.xlu0 %2999
    %3001 = vset.pattern.permute.xlu0 0
    %3002 = vperm.xlu0 %3001, %v2879
    %v3003 = vpop.permute.xlu0 %3002
    %3004 = vset.pattern.permute.xlu0 0
    %3005 = vperm.xlu0 %3004, %v2880
    %v3006 = vpop.permute.xlu0 %3005
    %3007 = vset.pattern.permute.xlu0 0
    %3008 = vperm.xlu0 %3007, %v2881
    %v3009 = vpop.permute.xlu0 %3008
    %3010 = vset.pattern.permute.xlu0 0
    %3011 = vperm.xlu0 %3010, %v2882
    %v3012 = vpop.permute.xlu0 %3011
    %3013 = vset.pattern.permute.xlu0 0
    %3014 = vperm.xlu0 %3013, %v2883
    %v3015 = vpop.permute.xlu0 %3014
    %3016 = vset.pattern.permute.xlu0 0
    %3017 = vperm.xlu0 %3016, %v2884
    %v3018 = vpop.permute.xlu0 %3017
    %3019 = vset.pattern.permute.xlu0 0
    %3020 = vperm.xlu0 %3019, %v2885
    %v3021 = vpop.permute.xlu0 %3020
    %3022 = vset.pattern.permute.xlu0 0
    %3023 = vperm.xlu0 %3022, %v2886
    %v3024 = vpop.permute.xlu0 %3023
    %3025 = vset.pattern.permute.xlu0 0
    %3026 = vperm.xlu0 %3025, %v2887
    %v3027 = vpop.permute.xlu0 %3026
    %3028 = vset.pattern.permute.xlu0 0
    %3029 = vperm.xlu0 %3028, %v2888
    %v3030 = vpop.permute.xlu0 %3029
    %3031 = vset.pattern.permute.xlu0 0
    %3032 = vperm.xlu0 %3031, %v2889
    %v3033 = vpop.permute.xlu0 %3032
    %3034 = vset.pattern.permute.xlu0 0
    %3035 = vperm.xlu0 %3034, %v2890
    %v3036 = vpop.permute.xlu0 %3035
    %3037 = vset.pattern.permute.xlu0 0
    %3038 = vperm.xlu0 %3037, %v2891
    %v3039 = vpop.permute.xlu0 %3038
    %3040 = vset.pattern.permute.xlu0 0
    %3041 = vperm.xlu0 %3040, %v2892
    %v3042 = vpop.permute.xlu0 %3041
    %3043 = vset.pattern.permute.xlu0 0
    %3044 = vperm.xlu0 %3043, %v2893
    %v3045 = vpop.permute.xlu0 %3044
    %3046 = vset.pattern.permute.xlu0 0
    %3047 = vperm.xlu0 %3046, %v2894
    %v3048 = vpop.permute.xlu0 %3047
    %3049 = vset.pattern.permute.xlu0 0
    %3050 = vperm.xlu0 %3049, %v2895
    %v3051 = vpop.permute.xlu0 %3050
    %3052 = vset.pattern.permute.xlu0 0
    %3053 = vperm.xlu0 %3052, %v2896
    %v3054 = vpop.permute.xlu0 %3053
    %3055 = vset.pattern.permute.xlu0 0
    %3056 = vperm.xlu0 %3055, %v2897
    %v3057 = vpop.permute.xlu0 %3056
    %vm3058 = vcmp.eq.s32.totalorder %v2964, %v162
    %vm3059 = vcmp.eq.s32.totalorder %v2967, %v162
    %vm3060 = vcmp.eq.s32.totalorder %v2970, %v162
    %vm3061 = vcmp.eq.s32.totalorder %v2973, %v162
    %vm3062 = vcmp.eq.s32.totalorder %v2976, %v162
    %vm3063 = vcmp.eq.s32.totalorder %v2979, %v162
    %vm3064 = vcmp.eq.s32.totalorder %v2982, %v162
    %vm3065 = vcmp.eq.s32.totalorder %v2985, %v162
    %vm3066 = vcmp.eq.s32.totalorder %v2988, %v162
    %vm3067 = vcmp.eq.s32.totalorder %v2991, %v162
    %vm3068 = vcmp.eq.s32.totalorder %v2994, %v162
    %vm3069 = vcmp.eq.s32.totalorder %v2997, %v162
    %vm3070 = vcmp.eq.s32.totalorder %v3000, %v162
    %vm3071 = vcmp.eq.s32.totalorder %v3003, %v162
    %vm3072 = vcmp.eq.s32.totalorder %v3006, %v162
    %vm3073 = vcmp.eq.s32.totalorder %v3009, %v162
    %vm3074 = vcmp.eq.s32.totalorder %v3012, %v162
    %vm3075 = vcmp.eq.s32.totalorder %v3015, %v162
    %vm3076 = vcmp.eq.s32.totalorder %v3018, %v162
    %vm3077 = vcmp.eq.s32.totalorder %v3021, %v162
    %vm3078 = vcmp.eq.s32.totalorder %v3024, %v162
    %vm3079 = vcmp.eq.s32.totalorder %v3027, %v162
    %vm3080 = vcmp.eq.s32.totalorder %v3030, %v162
    %vm3081 = vcmp.eq.s32.totalorder %v3033, %v162
    %vm3082 = vcmp.eq.s32.totalorder %v3036, %v162
    %vm3083 = vcmp.eq.s32.totalorder %v3039, %v162
    %vm3084 = vcmp.eq.s32.totalorder %v3042, %v162
    %vm3085 = vcmp.eq.s32.totalorder %v3045, %v162
    %vm3086 = vcmp.eq.s32.totalorder %v3048, %v162
    %vm3087 = vcmp.eq.s32.totalorder %v3051, %v162
    %vm3088 = vcmp.eq.s32.totalorder %v3054, %v162
    %vm3089 = vcmp.eq.s32.totalorder %v3057, %v162
    %v3090 = vsel %vm3058, 1, 0
    %v3091 = vsel %vm3059, 1, 0
    %v3092 = vsel %vm3060, 1, 0
    %v3093 = vsel %vm3061, 1, 0
    %v3094 = vsel %vm3062, 1, 0
    %v3095 = vsel %vm3063, 1, 0
    %v3096 = vsel %vm3064, 1, 0
    %v3097 = vsel %vm3065, 1, 0
    %v3098 = vsel %vm3066, 1, 0
    %v3099 = vsel %vm3067, 1, 0
    %v3100 = vsel %vm3068, 1, 0
    %v3101 = vsel %vm3069, 1, 0
    %v3102 = vsel %vm3070, 1, 0
    %v3103 = vsel %vm3071, 1, 0
    %v3104 = vsel %vm3072, 1, 0
    %v3105 = vsel %vm3073, 1, 0
    %v3106 = vsel %vm3074, 1, 0
    %v3107 = vsel %vm3075, 1, 0
    %v3108 = vsel %vm3076, 1, 0
    %v3109 = vsel %vm3077, 1, 0
    %v3110 = vsel %vm3078, 1, 0
    %v3111 = vsel %vm3079, 1, 0
    %v3112 = vsel %vm3080, 1, 0
    %v3113 = vsel %vm3081, 1, 0
    %v3114 = vsel %vm3082, 1, 0
    %v3115 = vsel %vm3083, 1, 0
    %v3116 = vsel %vm3084, 1, 0
    %v3117 = vsel %vm3085, 1, 0
    %v3118 = vsel %vm3086, 1, 0
    %v3119 = vsel %vm3087, 1, 0
    %v3120 = vsel %vm3088, 1, 0
    %v3121 = vsel %vm3089, 1, 0
    %v3122 = vcvt.s32.f32 %v3090
    %v3123 = vcvt.s32.f32 %v3091
    %v3124 = vcvt.s32.f32 %v3092
    %v3125 = vcvt.s32.f32 %v3093
    %v3126 = vcvt.s32.f32 %v3094
    %v3127 = vcvt.s32.f32 %v3095
    %v3128 = vcvt.s32.f32 %v3096
    %v3129 = vcvt.s32.f32 %v3097
    %v3130 = vcvt.s32.f32 %v3098
    %v3131 = vcvt.s32.f32 %v3099
    %v3132 = vcvt.s32.f32 %v3100
    %v3133 = vcvt.s32.f32 %v3101
    %v3134 = vcvt.s32.f32 %v3102
    %v3135 = vcvt.s32.f32 %v3103
    %v3136 = vcvt.s32.f32 %v3104
    %v3137 = vcvt.s32.f32 %v3105
    %v3138 = vcvt.s32.f32 %v3106
    %v3139 = vcvt.s32.f32 %v3107
    %v3140 = vcvt.s32.f32 %v3108
    %v3141 = vcvt.s32.f32 %v3109
    %v3142 = vcvt.s32.f32 %v3110
    %v3143 = vcvt.s32.f32 %v3111
    %v3144 = vcvt.s32.f32 %v3112
    %v3145 = vcvt.s32.f32 %v3113
    %v3146 = vcvt.s32.f32 %v3114
    %v3147 = vcvt.s32.f32 %v3115
    %v3148 = vcvt.s32.f32 %v3116
    %v3149 = vcvt.s32.f32 %v3117
    %v3150 = vcvt.s32.f32 %v3118
    %v3151 = vcvt.s32.f32 %v3119
    %v3152 = vcvt.s32.f32 %v3120
    %v3153 = vcvt.s32.f32 %v3121
    %3154 = vset.pattern.permute.xlu0 0
    %3155 = vperm.xlu0 %3154, %v2898
    %v3156 = vpop.permute.xlu0 %3155
    %3157 = vset.pattern.permute.xlu0 0
    %3158 = vperm.xlu0 %3157, %v2899
    %v3159 = vpop.permute.xlu0 %3158
    %3160 = vset.pattern.permute.xlu0 0
    %3161 = vperm.xlu0 %3160, %v2900
    %v3162 = vpop.permute.xlu0 %3161
    %3163 = vset.pattern.permute.xlu0 0
    %3164 = vperm.xlu0 %3163, %v2901
    %v3165 = vpop.permute.xlu0 %3164
    %3166 = vset.pattern.permute.xlu0 0
    %3167 = vperm.xlu0 %3166, %v2902
    %v3168 = vpop.permute.xlu0 %3167
    %3169 = vset.pattern.permute.xlu0 0
    %3170 = vperm.xlu0 %3169, %v2903
    %v3171 = vpop.permute.xlu0 %3170
    %3172 = vset.pattern.permute.xlu0 0
    %3173 = vperm.xlu0 %3172, %v2904
    %v3174 = vpop.permute.xlu0 %3173
    %3175 = vset.pattern.permute.xlu0 0
    %3176 = vperm.xlu0 %3175, %v2905
    %v3177 = vpop.permute.xlu0 %3176
    %3178 = vset.pattern.permute.xlu0 0
    %3179 = vperm.xlu0 %3178, %v2906
    %v3180 = vpop.permute.xlu0 %3179
    %3181 = vset.pattern.permute.xlu0 0
    %3182 = vperm.xlu0 %3181, %v2907
    %v3183 = vpop.permute.xlu0 %3182
    %3184 = vset.pattern.permute.xlu0 0
    %3185 = vperm.xlu0 %3184, %v2908
    %v3186 = vpop.permute.xlu0 %3185
    %3187 = vset.pattern.permute.xlu0 0
    %3188 = vperm.xlu0 %3187, %v2909
    %v3189 = vpop.permute.xlu0 %3188
    %3190 = vset.pattern.permute.xlu0 0
    %3191 = vperm.xlu0 %3190, %v2910
    %v3192 = vpop.permute.xlu0 %3191
    %3193 = vset.pattern.permute.xlu0 0
    %3194 = vperm.xlu0 %3193, %v2911
    %v3195 = vpop.permute.xlu0 %3194
    %3196 = vset.pattern.permute.xlu0 0
    %3197 = vperm.xlu0 %3196, %v2912
    %v3198 = vpop.permute.xlu0 %3197
    %3199 = vset.pattern.permute.xlu0 0
    %3200 = vperm.xlu0 %3199, %v2913
    %v3201 = vpop.permute.xlu0 %3200
    %3202 = vset.pattern.permute.xlu0 0
    %3203 = vperm.xlu0 %3202, %v2914
    %v3204 = vpop.permute.xlu0 %3203
    %3205 = vset.pattern.permute.xlu0 0
    %3206 = vperm.xlu0 %3205, %v2915
    %v3207 = vpop.permute.xlu0 %3206
    %3208 = vset.pattern.permute.xlu0 0
    %3209 = vperm.xlu0 %3208, %v2916
    %v3210 = vpop.permute.xlu0 %3209
    %3211 = vset.pattern.permute.xlu0 0
    %3212 = vperm.xlu0 %3211, %v2917
    %v3213 = vpop.permute.xlu0 %3212
    %3214 = vset.pattern.permute.xlu0 0
    %3215 = vperm.xlu0 %3214, %v2918
    %v3216 = vpop.permute.xlu0 %3215
    %3217 = vset.pattern.permute.xlu0 0
    %3218 = vperm.xlu0 %3217, %v2919
    %v3219 = vpop.permute.xlu0 %3218
    %3220 = vset.pattern.permute.xlu0 0
    %3221 = vperm.xlu0 %3220, %v2920
    %v3222 = vpop.permute.xlu0 %3221
    %3223 = vset.pattern.permute.xlu0 0
    %3224 = vperm.xlu0 %3223, %v2921
    %v3225 = vpop.permute.xlu0 %3224
    %3226 = vset.pattern.permute.xlu0 0
    %3227 = vperm.xlu0 %3226, %v2922
    %v3228 = vpop.permute.xlu0 %3227
    %3229 = vset.pattern.permute.xlu0 0
    %3230 = vperm.xlu0 %3229, %v2923
    %v3231 = vpop.permute.xlu0 %3230
    %3232 = vset.pattern.permute.xlu0 0
    %3233 = vperm.xlu0 %3232, %v2924
    %v3234 = vpop.permute.xlu0 %3233
    %3235 = vset.pattern.permute.xlu0 0
    %3236 = vperm.xlu0 %3235, %v2925
    %v3237 = vpop.permute.xlu0 %3236
    %3238 = vset.pattern.permute.xlu0 0
    %3239 = vperm.xlu0 %3238, %v2926
    %v3240 = vpop.permute.xlu0 %3239
    %3241 = vset.pattern.permute.xlu0 0
    %3242 = vperm.xlu0 %3241, %v2927
    %v3243 = vpop.permute.xlu0 %3242
    %3244 = vset.pattern.permute.xlu0 0
    %3245 = vperm.xlu0 %3244, %v2928
    %v3246 = vpop.permute.xlu0 %3245
    %3247 = vset.pattern.permute.xlu0 0
    %3248 = vperm.xlu0 %3247, %v2929
    %v3249 = vpop.permute.xlu0 %3248
    %vm3250 = vcmp.eq.s32.totalorder %v3156, %v162
    %vm3251 = vcmp.eq.s32.totalorder %v3159, %v162
    %vm3252 = vcmp.eq.s32.totalorder %v3162, %v162
    %vm3253 = vcmp.eq.s32.totalorder %v3165, %v162
    %vm3254 = vcmp.eq.s32.totalorder %v3168, %v162
    %vm3255 = vcmp.eq.s32.totalorder %v3171, %v162
    %vm3256 = vcmp.eq.s32.totalorder %v3174, %v162
    %vm3257 = vcmp.eq.s32.totalorder %v3177, %v162
    %vm3258 = vcmp.eq.s32.totalorder %v3180, %v162
    %vm3259 = vcmp.eq.s32.totalorder %v3183, %v162
    %vm3260 = vcmp.eq.s32.totalorder %v3186, %v162
    %vm3261 = vcmp.eq.s32.totalorder %v3189, %v162
    %vm3262 = vcmp.eq.s32.totalorder %v3192, %v162
    %vm3263 = vcmp.eq.s32.totalorder %v3195, %v162
    %vm3264 = vcmp.eq.s32.totalorder %v3198, %v162
    %vm3265 = vcmp.eq.s32.totalorder %v3201, %v162
    %vm3266 = vcmp.eq.s32.totalorder %v3204, %v162
    %vm3267 = vcmp.eq.s32.totalorder %v3207, %v162
    %vm3268 = vcmp.eq.s32.totalorder %v3210, %v162
    %vm3269 = vcmp.eq.s32.totalorder %v3213, %v162
    %vm3270 = vcmp.eq.s32.totalorder %v3216, %v162
    %vm3271 = vcmp.eq.s32.totalorder %v3219, %v162
    %vm3272 = vcmp.eq.s32.totalorder %v3222, %v162
    %vm3273 = vcmp.eq.s32.totalorder %v3225, %v162
    %vm3274 = vcmp.eq.s32.totalorder %v3228, %v162
    %vm3275 = vcmp.eq.s32.totalorder %v3231, %v162
    %vm3276 = vcmp.eq.s32.totalorder %v3234, %v162
    %vm3277 = vcmp.eq.s32.totalorder %v3237, %v162
    %vm3278 = vcmp.eq.s32.totalorder %v3240, %v162
    %vm3279 = vcmp.eq.s32.totalorder %v3243, %v162
    %vm3280 = vcmp.eq.s32.totalorder %v3246, %v162
    %vm3281 = vcmp.eq.s32.totalorder %v3249, %v162
    %v3282 = vsel %vm3250, 1, 0
    %v3283 = vsel %vm3251, 1, 0
    %v3284 = vsel %vm3252, 1, 0
    %v3285 = vsel %vm3253, 1, 0
    %v3286 = vsel %vm3254, 1, 0
    %v3287 = vsel %vm3255, 1, 0
    %v3288 = vsel %vm3256, 1, 0
    %v3289 = vsel %vm3257, 1, 0
    %v3290 = vsel %vm3258, 1, 0
    %v3291 = vsel %vm3259, 1, 0
    %v3292 = vsel %vm3260, 1, 0
    %v3293 = vsel %vm3261, 1, 0
    %v3294 = vsel %vm3262, 1, 0
    %v3295 = vsel %vm3263, 1, 0
    %v3296 = vsel %vm3264, 1, 0
    %v3297 = vsel %vm3265, 1, 0
    %v3298 = vsel %vm3266, 1, 0
    %v3299 = vsel %vm3267, 1, 0
    %v3300 = vsel %vm3268, 1, 0
    %v3301 = vsel %vm3269, 1, 0
    %v3302 = vsel %vm3270, 1, 0
    %v3303 = vsel %vm3271, 1, 0
    %v3304 = vsel %vm3272, 1, 0
    %v3305 = vsel %vm3273, 1, 0
    %v3306 = vsel %vm3274, 1, 0
    %v3307 = vsel %vm3275, 1, 0
    %v3308 = vsel %vm3276, 1, 0
    %v3309 = vsel %vm3277, 1, 0
    %v3310 = vsel %vm3278, 1, 0
    %v3311 = vsel %vm3279, 1, 0
    %v3312 = vsel %vm3280, 1, 0
    %v3313 = vsel %vm3281, 1, 0
    %v3314 = vcvt.s32.f32 %v3282
    %v3315 = vcvt.s32.f32 %v3283
    %v3316 = vcvt.s32.f32 %v3284
    %v3317 = vcvt.s32.f32 %v3285
    %v3318 = vcvt.s32.f32 %v3286
    %v3319 = vcvt.s32.f32 %v3287
    %v3320 = vcvt.s32.f32 %v3288
    %v3321 = vcvt.s32.f32 %v3289
    %v3322 = vcvt.s32.f32 %v3290
    %v3323 = vcvt.s32.f32 %v3291
    %v3324 = vcvt.s32.f32 %v3292
    %v3325 = vcvt.s32.f32 %v3293
    %v3326 = vcvt.s32.f32 %v3294
    %v3327 = vcvt.s32.f32 %v3295
    %v3328 = vcvt.s32.f32 %v3296
    %v3329 = vcvt.s32.f32 %v3297
    %v3330 = vcvt.s32.f32 %v3298
    %v3331 = vcvt.s32.f32 %v3299
    %v3332 = vcvt.s32.f32 %v3300
    %v3333 = vcvt.s32.f32 %v3301
    %v3334 = vcvt.s32.f32 %v3302
    %v3335 = vcvt.s32.f32 %v3303
    %v3336 = vcvt.s32.f32 %v3304
    %v3337 = vcvt.s32.f32 %v3305
    %v3338 = vcvt.s32.f32 %v3306
    %v3339 = vcvt.s32.f32 %v3307
    %v3340 = vcvt.s32.f32 %v3308
    %v3341 = vcvt.s32.f32 %v3309
    %v3342 = vcvt.s32.f32 %v3310
    %v3343 = vcvt.s32.f32 %v3311
    %v3344 = vcvt.s32.f32 %v3312
    %v3345 = vcvt.s32.f32 %v3313
    %v3347 = vsel %vm643, %v3314, 0
    %v3350 = vsel %vm643, %v3315, 0
    %v3353 = vsel %vm643, %v3316, 0
    %v3356 = vsel %vm643, %v3317, 0
    %v3359 = vsel %vm643, %v3318, 0
    %v3362 = vsel %vm643, %v3319, 0
    %v3365 = vsel %vm643, %v3320, 0
    %v3368 = vsel %vm643, %v3321, 0
    %v3371 = vsel %vm643, %v3322, 0
    %v3374 = vsel %vm643, %v3323, 0
    %v3377 = vsel %vm643, %v3324, 0
    %v3380 = vsel %vm643, %v3325, 0
    %v3383 = vsel %vm643, %v3326, 0
    %v3386 = vsel %vm643, %v3327, 0
    %v3389 = vsel %vm643, %v3328, 0
    %v3392 = vsel %vm643, %v3329, 0
    %v3395 = vsel %vm643, %v3330, 0
    %v3398 = vsel %vm643, %v3331, 0
    %v3401 = vsel %vm643, %v3332, 0
    %v3404 = vsel %vm643, %v3333, 0
    %v3407 = vsel %vm643, %v3334, 0
    %v3410 = vsel %vm643, %v3335, 0
    %v3413 = vsel %vm643, %v3336, 0
    %v3416 = vsel %vm643, %v3337, 0
    %v3419 = vsel %vm643, %v3338, 0
    %v3422 = vsel %vm643, %v3339, 0
    %v3425 = vsel %vm643, %v3340, 0
    %v3428 = vsel %vm643, %v3341, 0
    %v3431 = vsel %vm643, %v3342, 0
    %v3434 = vsel %vm643, %v3343, 0
    %v3437 = vsel %vm643, %v3344, 0
    %v3440 = vsel %vm643, %v3345, 0
    %3442 = vmatpush.msra.mxu0 0.0
    %3443 = vmatpush.msra.mxu0 0.0
    %3444 = vmatpush.msra.mxu0 0.0
    %3445 = vmatpush.msra.mxu0 0.0
    %3446 = vmatpush.msra.mxu0 0.0
    %3447 = vmatpush.msra.mxu0 0.0
    %3448 = vmatpush.msra.mxu0 0.0
    %3449 = vmatpush.msra.mxu0 0.0
    %3450 = vmatpush.msra.mxu0 %v159
    %3451 = vmatpush.msra.mxu0 %v156
    %3452 = vmatpush.msra.mxu0 %v153
    %3453 = vmatpush.msra.mxu0 %v150
    %3454 = vmatpush.msra.mxu0 %v147
    %3455 = vmatpush.msra.mxu0 %v144
    %3456 = vmatpush.msra.mxu0 %v141
    %3457 = vmatpush.msra.mxu0 %v138
    %3458 = vmatmul.f32.gmra.mxu0 %v3347
    %v3459 = vpop.f32.mrf.mxu0
    %v3460 = vadd.f32 0.0, %v3459
    %3461 = vmatmul.f32.gmra.mxu0 %v3350
    %v3462 = vpop.f32.mrf.mxu0
    %v3463 = vadd.f32 0.0, %v3462
    %3464 = vmatmul.f32.gmra.mxu0 %v3353
    %v3465 = vpop.f32.mrf.mxu0
    %v3466 = vadd.f32 0.0, %v3465
    %3467 = vmatmul.f32.gmra.mxu0 %v3356
    %v3468 = vpop.f32.mrf.mxu0
    %v3469 = vadd.f32 0.0, %v3468
    %3470 = vmatmul.f32.gmra.mxu0 %v3359
    %v3471 = vpop.f32.mrf.mxu0
    %v3472 = vadd.f32 0.0, %v3471
    %3473 = vmatmul.f32.gmra.mxu0 %v3362
    %v3474 = vpop.f32.mrf.mxu0
    %v3475 = vadd.f32 0.0, %v3474
    %3476 = vmatmul.f32.gmra.mxu0 %v3365
    %v3477 = vpop.f32.mrf.mxu0
    %v3478 = vadd.f32 0.0, %v3477
    %3479 = vmatmul.f32.gmra.mxu0 %v3368
    %v3480 = vpop.f32.mrf.mxu0
    %v3481 = vadd.f32 0.0, %v3480
    %3482 = vmatmul.f32.gmra.mxu0 %v3371
    %v3483 = vpop.f32.mrf.mxu0
    %v3484 = vadd.f32 0.0, %v3483
    %3485 = vmatmul.f32.gmra.mxu0 %v3374
    %v3486 = vpop.f32.mrf.mxu0
    %v3487 = vadd.f32 0.0, %v3486
    %3488 = vmatmul.f32.gmra.mxu0 %v3377
    %v3489 = vpop.f32.mrf.mxu0
    %v3490 = vadd.f32 0.0, %v3489
    %3491 = vmatmul.f32.gmra.mxu0 %v3380
    %v3492 = vpop.f32.mrf.mxu0
    %v3493 = vadd.f32 0.0, %v3492
    %3494 = vmatmul.f32.gmra.mxu0 %v3383
    %v3495 = vpop.f32.mrf.mxu0
    %v3496 = vadd.f32 0.0, %v3495
    %3497 = vmatmul.f32.gmra.mxu0 %v3386
    %v3498 = vpop.f32.mrf.mxu0
    %v3499 = vadd.f32 0.0, %v3498
    %3500 = vmatmul.f32.gmra.mxu0 %v3389
    %v3501 = vpop.f32.mrf.mxu0
    %v3502 = vadd.f32 0.0, %v3501
    %3503 = vmatmul.f32.gmra.mxu0 %v3392
    %v3504 = vpop.f32.mrf.mxu0
    %v3505 = vadd.f32 0.0, %v3504
    %3506 = vmatmul.f32.gmra.mxu0 %v3395
    %v3507 = vpop.f32.mrf.mxu0
    %v3508 = vadd.f32 0.0, %v3507
    %3509 = vmatmul.f32.gmra.mxu0 %v3398
    %v3510 = vpop.f32.mrf.mxu0
    %v3511 = vadd.f32 0.0, %v3510
    %3512 = vmatmul.f32.gmra.mxu0 %v3401
    %v3513 = vpop.f32.mrf.mxu0
    %v3514 = vadd.f32 0.0, %v3513
    %3515 = vmatmul.f32.gmra.mxu0 %v3404
    %v3516 = vpop.f32.mrf.mxu0
    %v3517 = vadd.f32 0.0, %v3516
    %3518 = vmatmul.f32.gmra.mxu0 %v3407
    %v3519 = vpop.f32.mrf.mxu0
    %v3520 = vadd.f32 0.0, %v3519
    %3521 = vmatmul.f32.gmra.mxu0 %v3410
    %v3522 = vpop.f32.mrf.mxu0
    %v3523 = vadd.f32 0.0, %v3522
    %3524 = vmatmul.f32.gmra.mxu0 %v3413
    %v3525 = vpop.f32.mrf.mxu0
    %v3526 = vadd.f32 0.0, %v3525
    %3527 = vmatmul.f32.gmra.mxu0 %v3416
    %v3528 = vpop.f32.mrf.mxu0
    %v3529 = vadd.f32 0.0, %v3528
    %3530 = vmatmul.f32.gmra.mxu0 %v3419
    %v3531 = vpop.f32.mrf.mxu0
    %v3532 = vadd.f32 0.0, %v3531
    %3533 = vmatmul.f32.gmra.mxu0 %v3422
    %v3534 = vpop.f32.mrf.mxu0
    %v3535 = vadd.f32 0.0, %v3534
    %3536 = vmatmul.f32.gmra.mxu0 %v3425
    %v3537 = vpop.f32.mrf.mxu0
    %v3538 = vadd.f32 0.0, %v3537
    %3539 = vmatmul.f32.gmra.mxu0 %v3428
    %v3540 = vpop.f32.mrf.mxu0
    %v3541 = vadd.f32 0.0, %v3540
    %3542 = vmatmul.f32.gmra.mxu0 %v3431
    %v3543 = vpop.f32.mrf.mxu0
    %v3544 = vadd.f32 0.0, %v3543
    %3545 = vmatmul.f32.gmra.mxu0 %v3434
    %v3546 = vpop.f32.mrf.mxu0
    %v3547 = vadd.f32 0.0, %v3546
    %3548 = vmatmul.f32.gmra.mxu0 %v3437
    %v3549 = vpop.f32.mrf.mxu0
    %v3550 = vadd.f32 0.0, %v3549
    %3551 = vmatmul.f32.gmra.mxu0 %v3440
    %v3552 = vpop.f32.mrf.mxu0
    %v3553 = vadd.f32 0.0, %v3552
    %3554 = vdwg.mxu0
    %v3556 = vsel %vm643, %v3122, 0
    %v3559 = vsel %vm643, %v3123, 0
    %v3562 = vsel %vm643, %v3124, 0
    %v3565 = vsel %vm643, %v3125, 0
    %v3568 = vsel %vm643, %v3126, 0
    %v3571 = vsel %vm643, %v3127, 0
    %v3574 = vsel %vm643, %v3128, 0
    %v3577 = vsel %vm643, %v3129, 0
    %v3580 = vsel %vm643, %v3130, 0
    %v3583 = vsel %vm643, %v3131, 0
    %v3586 = vsel %vm643, %v3132, 0
    %v3589 = vsel %vm643, %v3133, 0
    %v3592 = vsel %vm643, %v3134, 0
    %v3595 = vsel %vm643, %v3135, 0
    %v3598 = vsel %vm643, %v3136, 0
    %v3601 = vsel %vm643, %v3137, 0
    %v3604 = vsel %vm643, %v3138, 0
    %v3607 = vsel %vm643, %v3139, 0
    %v3610 = vsel %vm643, %v3140, 0
    %v3613 = vsel %vm643, %v3141, 0
    %v3616 = vsel %vm643, %v3142, 0
    %v3619 = vsel %vm643, %v3143, 0
    %v3622 = vsel %vm643, %v3144, 0
    %v3625 = vsel %vm643, %v3145, 0
    %v3628 = vsel %vm643, %v3146, 0
    %v3631 = vsel %vm643, %v3147, 0
    %v3634 = vsel %vm643, %v3148, 0
    %v3637 = vsel %vm643, %v3149, 0
    %v3640 = vsel %vm643, %v3150, 0
    %v3643 = vsel %vm643, %v3151, 0
    %v3646 = vsel %vm643, %v3152, 0
    %v3649 = vsel %vm643, %v3153, 0
    %3651 = vmatpush.msra.mxu0 0.0
    %3652 = vmatpush.msra.mxu0 0.0
    %3653 = vmatpush.msra.mxu0 0.0
    %3654 = vmatpush.msra.mxu0 0.0
    %3655 = vmatpush.msra.mxu0 0.0
    %3656 = vmatpush.msra.mxu0 0.0
    %3657 = vmatpush.msra.mxu0 0.0
    %3658 = vmatpush.msra.mxu0 0.0
    %3659 = vmatpush.msra.mxu0 %v118
    %3660 = vmatpush.msra.mxu0 %v115
    %3661 = vmatpush.msra.mxu0 %v112
    %3662 = vmatpush.msra.mxu0 %v109
    %3663 = vmatpush.msra.mxu0 %v106
    %3664 = vmatpush.msra.mxu0 %v103
    %3665 = vmatpush.msra.mxu0 %v100
    %3666 = vmatpush.msra.mxu0 %v97
    %3667 = vmatmul.f32.gmra.mxu0 %v3556
    %v3668 = vpop.f32.mrf.mxu0
    %v3669 = vadd.f32 %v3460, %v3668
    %3670 = vmatmul.f32.gmra.mxu0 %v3559
    %v3671 = vpop.f32.mrf.mxu0
    %v3672 = vadd.f32 %v3463, %v3671
    %3673 = vmatmul.f32.gmra.mxu0 %v3562
    %v3674 = vpop.f32.mrf.mxu0
    %v3675 = vadd.f32 %v3466, %v3674
    %3676 = vmatmul.f32.gmra.mxu0 %v3565
    %v3677 = vpop.f32.mrf.mxu0
    %v3678 = vadd.f32 %v3469, %v3677
    %3679 = vmatmul.f32.gmra.mxu0 %v3568
    %v3680 = vpop.f32.mrf.mxu0
    %v3681 = vadd.f32 %v3472, %v3680
    %3682 = vmatmul.f32.gmra.mxu0 %v3571
    %v3683 = vpop.f32.mrf.mxu0
    %v3684 = vadd.f32 %v3475, %v3683
    %3685 = vmatmul.f32.gmra.mxu0 %v3574
    %v3686 = vpop.f32.mrf.mxu0
    %v3687 = vadd.f32 %v3478, %v3686
    %3688 = vmatmul.f32.gmra.mxu0 %v3577
    %v3689 = vpop.f32.mrf.mxu0
    %v3690 = vadd.f32 %v3481, %v3689
    %3691 = vmatmul.f32.gmra.mxu0 %v3580
    %v3692 = vpop.f32.mrf.mxu0
    %v3693 = vadd.f32 %v3484, %v3692
    %3694 = vmatmul.f32.gmra.mxu0 %v3583
    %v3695 = vpop.f32.mrf.mxu0
    %v3696 = vadd.f32 %v3487, %v3695
    %3697 = vmatmul.f32.gmra.mxu0 %v3586
    %v3698 = vpop.f32.mrf.mxu0
    %v3699 = vadd.f32 %v3490, %v3698
    %3700 = vmatmul.f32.gmra.mxu0 %v3589
    %v3701 = vpop.f32.mrf.mxu0
    %v3702 = vadd.f32 %v3493, %v3701
    %3703 = vmatmul.f32.gmra.mxu0 %v3592
    %v3704 = vpop.f32.mrf.mxu0
    %v3705 = vadd.f32 %v3496, %v3704
    %3706 = vmatmul.f32.gmra.mxu0 %v3595
    %v3707 = vpop.f32.mrf.mxu0
    %v3708 = vadd.f32 %v3499, %v3707
    %3709 = vmatmul.f32.gmra.mxu0 %v3598
    %v3710 = vpop.f32.mrf.mxu0
    %v3711 = vadd.f32 %v3502, %v3710
    %3712 = vmatmul.f32.gmra.mxu0 %v3601
    %v3713 = vpop.f32.mrf.mxu0
    %v3714 = vadd.f32 %v3505, %v3713
    %3715 = vmatmul.f32.gmra.mxu0 %v3604
    %v3716 = vpop.f32.mrf.mxu0
    %v3717 = vadd.f32 %v3508, %v3716
    %3718 = vmatmul.f32.gmra.mxu0 %v3607
    %v3719 = vpop.f32.mrf.mxu0
    %v3720 = vadd.f32 %v3511, %v3719
    %3721 = vmatmul.f32.gmra.mxu0 %v3610
    %v3722 = vpop.f32.mrf.mxu0
    %v3723 = vadd.f32 %v3514, %v3722
    %3724 = vmatmul.f32.gmra.mxu0 %v3613
    %v3725 = vpop.f32.mrf.mxu0
    %v3726 = vadd.f32 %v3517, %v3725
    %3727 = vmatmul.f32.gmra.mxu0 %v3616
    %v3728 = vpop.f32.mrf.mxu0
    %v3729 = vadd.f32 %v3520, %v3728
    %3730 = vmatmul.f32.gmra.mxu0 %v3619
    %v3731 = vpop.f32.mrf.mxu0
    %v3732 = vadd.f32 %v3523, %v3731
    %3733 = vmatmul.f32.gmra.mxu0 %v3622
    %v3734 = vpop.f32.mrf.mxu0
    %v3735 = vadd.f32 %v3526, %v3734
    %3736 = vmatmul.f32.gmra.mxu0 %v3625
    %v3737 = vpop.f32.mrf.mxu0
    %v3738 = vadd.f32 %v3529, %v3737
    %3739 = vmatmul.f32.gmra.mxu0 %v3628
    %v3740 = vpop.f32.mrf.mxu0
    %v3741 = vadd.f32 %v3532, %v3740
    %3742 = vmatmul.f32.gmra.mxu0 %v3631
    %v3743 = vpop.f32.mrf.mxu0
    %v3744 = vadd.f32 %v3535, %v3743
    %3745 = vmatmul.f32.gmra.mxu0 %v3634
    %v3746 = vpop.f32.mrf.mxu0
    %v3747 = vadd.f32 %v3538, %v3746
    %3748 = vmatmul.f32.gmra.mxu0 %v3637
    %v3749 = vpop.f32.mrf.mxu0
    %v3750 = vadd.f32 %v3541, %v3749
    %3751 = vmatmul.f32.gmra.mxu0 %v3640
    %v3752 = vpop.f32.mrf.mxu0
    %v3753 = vadd.f32 %v3544, %v3752
    %3754 = vmatmul.f32.gmra.mxu0 %v3643
    %v3755 = vpop.f32.mrf.mxu0
    %v3756 = vadd.f32 %v3547, %v3755
    %3757 = vmatmul.f32.gmra.mxu0 %v3646
    %v3758 = vpop.f32.mrf.mxu0
    %v3759 = vadd.f32 %v3550, %v3758
    %3760 = vmatmul.f32.gmra.mxu0 %v3649
    %v3761 = vpop.f32.mrf.mxu0
    %v3762 = vadd.f32 %v3553, %v3761
    %3763 = vdwg.mxu0
    %v3765 = vsel %vm54, %v2930, 0
    %v3768 = vsel %vm54, %v2931, 0
    %v3771 = vsel %vm54, %v2932, 0
    %v3774 = vsel %vm54, %v2933, 0
    %v3777 = vsel %vm54, %v2934, 0
    %v3780 = vsel %vm54, %v2935, 0
    %v3783 = vsel %vm54, %v2936, 0
    %v3786 = vsel %vm54, %v2937, 0
    %v3789 = vsel %vm54, %v2938, 0
    %v3792 = vsel %vm54, %v2939, 0
    %v3795 = vsel %vm54, %v2940, 0
    %v3798 = vsel %vm54, %v2941, 0
    %v3801 = vsel %vm54, %v2942, 0
    %v3804 = vsel %vm54, %v2943, 0
    %v3807 = vsel %vm54, %v2944, 0
    %v3810 = vsel %vm54, %v2945, 0
    %v3813 = vsel %vm54, %v2946, 0
    %v3816 = vsel %vm54, %v2947, 0
    %v3819 = vsel %vm54, %v2948, 0
    %v3822 = vsel %vm54, %v2949, 0
    %v3825 = vsel %vm54, %v2950, 0
    %v3828 = vsel %vm54, %v2951, 0
    %v3831 = vsel %vm54, %v2952, 0
    %v3834 = vsel %vm54, %v2953, 0
    %v3837 = vsel %vm54, %v2954, 0
    %v3840 = vsel %vm54, %v2955, 0
    %v3843 = vsel %vm54, %v2956, 0
    %v3846 = vsel %vm54, %v2957, 0
    %v3849 = vsel %vm54, %v2958, 0
    %v3852 = vsel %vm54, %v2959, 0
    %v3855 = vsel %vm54, %v2960, 0
    %v3858 = vsel %vm54, %v2961, 0
    %3860 = vmatpush.msra.mxu0 0.0
    %3861 = vmatpush.msra.mxu0 0.0
    %3862 = vmatpush.msra.mxu0 0.0
    %3863 = vmatpush.msra.mxu0 0.0
    %3864 = vmatpush.msra.mxu0 0.0
    %3865 = vmatpush.msra.mxu0 0.0
    %3866 = vmatpush.msra.mxu0 0.0
    %3867 = vmatpush.msra.mxu0 0.0
    %3868 = vmatpush.msra.mxu0 0.0
    %3869 = vmatpush.msra.mxu0 0.0
    %3870 = vmatpush.msra.mxu0 0.0
    %3871 = vmatpush.msra.mxu0 0.0
    %3872 = vmatpush.msra.mxu0 %v50
    %3873 = vmatpush.msra.mxu0 %v49
    %3874 = vmatpush.msra.mxu0 %v48
    %3875 = vmatpush.msra.mxu0 %v47
    %3876 = vmatmul.f32.gmra.mxu0 %v3765
    %v3877 = vpop.f32.mrf.mxu0
    %v3878 = vadd.f32 0.0, %v3877
    %3879 = vmatmul.f32.gmra.mxu0 %v3768
    %v3880 = vpop.f32.mrf.mxu0
    %v3881 = vadd.f32 0.0, %v3880
    %3882 = vmatmul.f32.gmra.mxu0 %v3771
    %v3883 = vpop.f32.mrf.mxu0
    %v3884 = vadd.f32 0.0, %v3883
    %3885 = vmatmul.f32.gmra.mxu0 %v3774
    %v3886 = vpop.f32.mrf.mxu0
    %v3887 = vadd.f32 0.0, %v3886
    %3888 = vmatmul.f32.gmra.mxu0 %v3777
    %v3889 = vpop.f32.mrf.mxu0
    %v3890 = vadd.f32 0.0, %v3889
    %3891 = vmatmul.f32.gmra.mxu0 %v3780
    %v3892 = vpop.f32.mrf.mxu0
    %v3893 = vadd.f32 0.0, %v3892
    %3894 = vmatmul.f32.gmra.mxu0 %v3783
    %v3895 = vpop.f32.mrf.mxu0
    %v3896 = vadd.f32 0.0, %v3895
    %3897 = vmatmul.f32.gmra.mxu0 %v3786
    %v3898 = vpop.f32.mrf.mxu0
    %v3899 = vadd.f32 0.0, %v3898
    %3900 = vmatmul.f32.gmra.mxu0 %v3789
    %v3901 = vpop.f32.mrf.mxu0
    %v3902 = vadd.f32 0.0, %v3901
    %3903 = vmatmul.f32.gmra.mxu0 %v3792
    %v3904 = vpop.f32.mrf.mxu0
    %v3905 = vadd.f32 0.0, %v3904
    %3906 = vmatmul.f32.gmra.mxu0 %v3795
    %v3907 = vpop.f32.mrf.mxu0
    %v3908 = vadd.f32 0.0, %v3907
    %3909 = vmatmul.f32.gmra.mxu0 %v3798
    %v3910 = vpop.f32.mrf.mxu0
    %v3911 = vadd.f32 0.0, %v3910
    %3912 = vmatmul.f32.gmra.mxu0 %v3801
    %v3913 = vpop.f32.mrf.mxu0
    %v3914 = vadd.f32 0.0, %v3913
    %3915 = vmatmul.f32.gmra.mxu0 %v3804
    %v3916 = vpop.f32.mrf.mxu0
    %v3917 = vadd.f32 0.0, %v3916
    %3918 = vmatmul.f32.gmra.mxu0 %v3807
    %v3919 = vpop.f32.mrf.mxu0
    %v3920 = vadd.f32 0.0, %v3919
    %3921 = vmatmul.f32.gmra.mxu0 %v3810
    %v3922 = vpop.f32.mrf.mxu0
    %v3923 = vadd.f32 0.0, %v3922
    %3924 = vmatmul.f32.gmra.mxu0 %v3813
    %v3925 = vpop.f32.mrf.mxu0
    %v3926 = vadd.f32 0.0, %v3925
    %3927 = vmatmul.f32.gmra.mxu0 %v3816
    %v3928 = vpop.f32.mrf.mxu0
    %v3929 = vadd.f32 0.0, %v3928
    %3930 = vmatmul.f32.gmra.mxu0 %v3819
    %v3931 = vpop.f32.mrf.mxu0
    %v3932 = vadd.f32 0.0, %v3931
    %3933 = vmatmul.f32.gmra.mxu0 %v3822
    %v3934 = vpop.f32.mrf.mxu0
    %v3935 = vadd.f32 0.0, %v3934
    %3936 = vmatmul.f32.gmra.mxu0 %v3825
    %v3937 = vpop.f32.mrf.mxu0
    %v3938 = vadd.f32 0.0, %v3937
    %3939 = vmatmul.f32.gmra.mxu0 %v3828
    %v3940 = vpop.f32.mrf.mxu0
    %v3941 = vadd.f32 0.0, %v3940
    %3942 = vmatmul.f32.gmra.mxu0 %v3831
    %v3943 = vpop.f32.mrf.mxu0
    %v3944 = vadd.f32 0.0, %v3943
    %3945 = vmatmul.f32.gmra.mxu0 %v3834
    %v3946 = vpop.f32.mrf.mxu0
    %v3947 = vadd.f32 0.0, %v3946
    %3948 = vmatmul.f32.gmra.mxu0 %v3837
    %v3949 = vpop.f32.mrf.mxu0
    %v3950 = vadd.f32 0.0, %v3949
    %3951 = vmatmul.f32.gmra.mxu0 %v3840
    %v3952 = vpop.f32.mrf.mxu0
    %v3953 = vadd.f32 0.0, %v3952
    %3954 = vmatmul.f32.gmra.mxu0 %v3843
    %v3955 = vpop.f32.mrf.mxu0
    %v3956 = vadd.f32 0.0, %v3955
    %3957 = vmatmul.f32.gmra.mxu0 %v3846
    %v3958 = vpop.f32.mrf.mxu0
    %v3959 = vadd.f32 0.0, %v3958
    %3960 = vmatmul.f32.gmra.mxu0 %v3849
    %v3961 = vpop.f32.mrf.mxu0
    %v3962 = vadd.f32 0.0, %v3961
    %3963 = vmatmul.f32.gmra.mxu0 %v3852
    %v3964 = vpop.f32.mrf.mxu0
    %v3965 = vadd.f32 0.0, %v3964
    %3966 = vmatmul.f32.gmra.mxu0 %v3855
    %v3967 = vpop.f32.mrf.mxu0
    %v3968 = vadd.f32 0.0, %v3967
    %3969 = vmatmul.f32.gmra.mxu0 %v3858
    %v3970 = vpop.f32.mrf.mxu0
    %v3971 = vadd.f32 0.0, %v3970
    %3972 = vdwg.mxu0
    %v3973 = vadd.f32 %v3669, %v3878
    %v3974 = vadd.f32 %v3672, %v3881
    %v3975 = vadd.f32 %v3675, %v3884
    %v3976 = vadd.f32 %v3678, %v3887
    %v3977 = vadd.f32 %v3681, %v3890
    %v3978 = vadd.f32 %v3684, %v3893
    %v3979 = vadd.f32 %v3687, %v3896
    %v3980 = vadd.f32 %v3690, %v3899
    %v3981 = vadd.f32 %v3693, %v3902
    %v3982 = vadd.f32 %v3696, %v3905
    %v3983 = vadd.f32 %v3699, %v3908
    %v3984 = vadd.f32 %v3702, %v3911
    %v3985 = vadd.f32 %v3705, %v3914
    %v3986 = vadd.f32 %v3708, %v3917
    %v3987 = vadd.f32 %v3711, %v3920
    %v3988 = vadd.f32 %v3714, %v3923
    %v3989 = vadd.f32 %v3717, %v3926
    %v3990 = vadd.f32 %v3720, %v3929
    %v3991 = vadd.f32 %v3723, %v3932
    %v3992 = vadd.f32 %v3726, %v3935
    %v3993 = vadd.f32 %v3729, %v3938
    %v3994 = vadd.f32 %v3732, %v3941
    %v3995 = vadd.f32 %v3735, %v3944
    %v3996 = vadd.f32 %v3738, %v3947
    %v3997 = vadd.f32 %v3741, %v3950
    %v3998 = vadd.f32 %v3744, %v3953
    %v3999 = vadd.f32 %v3747, %v3956
    %v4000 = vadd.f32 %v3750, %v3959
    %v4001 = vadd.f32 %v3753, %v3962
    %v4002 = vadd.f32 %v3756, %v3965
    %v4003 = vadd.f32 %v3759, %v3968
    %v4004 = vadd.f32 %v3762, %v3971
    %v4005 = vadd.f32 %v3973, %v1304
    %v4006 = vadd.f32 %v3974, %v1304
    %v4007 = vadd.f32 %v3975, %v1304
    %v4008 = vadd.f32 %v3976, %v1304
    %v4009 = vadd.f32 %v3977, %v1304
    %v4010 = vadd.f32 %v3978, %v1304
    %v4011 = vadd.f32 %v3979, %v1304
    %v4012 = vadd.f32 %v3980, %v1304
    %v4013 = vadd.f32 %v3981, %v1304
    %v4014 = vadd.f32 %v3982, %v1304
    %v4015 = vadd.f32 %v3983, %v1304
    %v4016 = vadd.f32 %v3984, %v1304
    %v4017 = vadd.f32 %v3985, %v1304
    %v4018 = vadd.f32 %v3986, %v1304
    %v4019 = vadd.f32 %v3987, %v1304
    %v4020 = vadd.f32 %v3988, %v1304
    %v4021 = vadd.f32 %v3989, %v1304
    %v4022 = vadd.f32 %v3990, %v1304
    %v4023 = vadd.f32 %v3991, %v1304
    %v4024 = vadd.f32 %v3992, %v1304
    %v4025 = vadd.f32 %v3993, %v1304
    %v4026 = vadd.f32 %v3994, %v1304
    %v4027 = vadd.f32 %v3995, %v1304
    %v4028 = vadd.f32 %v3996, %v1304
    %v4029 = vadd.f32 %v3997, %v1304
    %v4030 = vadd.f32 %v3998, %v1304
    %v4031 = vadd.f32 %v3999, %v1304
    %v4032 = vadd.f32 %v4000, %v1304
    %v4033 = vadd.f32 %v4001, %v1304
    %v4034 = vadd.f32 %v4002, %v1304
    %v4035 = vadd.f32 %v4003, %v1304
    %v4036 = vadd.f32 %v4004, %v1304
    %v4037 = vmax.f32 %v4005, 0.0
    %v4038 = vmax.f32 %v4006, 0.0
    %v4039 = vmax.f32 %v4007, 0.0
    %v4040 = vmax.f32 %v4008, 0.0
    %v4041 = vmax.f32 %v4009, 0.0
    %v4042 = vmax.f32 %v4010, 0.0
    %v4043 = vmax.f32 %v4011, 0.0
    %v4044 = vmax.f32 %v4012, 0.0
    %v4045 = vmax.f32 %v4013, 0.0
    %v4046 = vmax.f32 %v4014, 0.0
    %v4047 = vmax.f32 %v4015, 0.0
    %v4048 = vmax.f32 %v4016, 0.0
    %v4049 = vmax.f32 %v4017, 0.0
    %v4050 = vmax.f32 %v4018, 0.0
    %v4051 = vmax.f32 %v4019, 0.0
    %v4052 = vmax.f32 %v4020, 0.0
    %v4053 = vmax.f32 %v4021, 0.0
    %v4054 = vmax.f32 %v4022, 0.0
    %v4055 = vmax.f32 %v4023, 0.0
    %v4056 = vmax.f32 %v4024, 0.0
    %v4057 = vmax.f32 %v4025, 0.0
    %v4058 = vmax.f32 %v4026, 0.0
    %v4059 = vmax.f32 %v4027, 0.0
    %v4060 = vmax.f32 %v4028, 0.0
    %v4061 = vmax.f32 %v4029, 0.0
    %v4062 = vmax.f32 %v4030, 0.0
    %v4063 = vmax.f32 %v4031, 0.0
    %v4064 = vmax.f32 %v4032, 0.0
    %v4065 = vmax.f32 %v4033, 0.0
    %v4066 = vmax.f32 %v4034, 0.0
    %v4067 = vmax.f32 %v4035, 0.0
    %v4068 = vmax.f32 %v4036, 0.0
    %v4070 = vsel %vm54, %v4037, 0
    %v4073 = vsel %vm54, %v4038, 0
    %v4076 = vsel %vm54, %v4039, 0
    %v4079 = vsel %vm54, %v4040, 0
    %v4082 = vsel %vm54, %v4041, 0
    %v4085 = vsel %vm54, %v4042, 0
    %v4088 = vsel %vm54, %v4043, 0
    %v4091 = vsel %vm54, %v4044, 0
    %v4094 = vsel %vm54, %v4045, 0
    %v4097 = vsel %vm54, %v4046, 0
    %v4100 = vsel %vm54, %v4047, 0
    %v4103 = vsel %vm54, %v4048, 0
    %v4106 = vsel %vm54, %v4049, 0
    %v4109 = vsel %vm54, %v4050, 0
    %v4112 = vsel %vm54, %v4051, 0
    %v4115 = vsel %vm54, %v4052, 0
    %v4118 = vsel %vm54, %v4053, 0
    %v4121 = vsel %vm54, %v4054, 0
    %v4124 = vsel %vm54, %v4055, 0
    %v4127 = vsel %vm54, %v4056, 0
    %v4130 = vsel %vm54, %v4057, 0
    %v4133 = vsel %vm54, %v4058, 0
    %v4136 = vsel %vm54, %v4059, 0
    %v4139 = vsel %vm54, %v4060, 0
    %v4142 = vsel %vm54, %v4061, 0
    %v4145 = vsel %vm54, %v4062, 0
    %v4148 = vsel %vm54, %v4063, 0
    %v4151 = vsel %vm54, %v4064, 0
    %v4154 = vsel %vm54, %v4065, 0
    %v4157 = vsel %vm54, %v4066, 0
    %v4160 = vsel %vm54, %v4067, 0
    %v4163 = vsel %vm54, %v4068, 0
    %4165 = vmatpush.xpose.msra.mxu0 %v4115
    %4166 = vmatpush.xpose.msra.mxu0 %v4112
    %4167 = vmatpush.xpose.msra.mxu0 %v4109
    %4168 = vmatpush.xpose.msra.mxu0 %v4106
    %4169 = vmatpush.xpose.msra.mxu0 %v4103
    %4170 = vmatpush.xpose.msra.mxu0 %v4100
    %4171 = vmatpush.xpose.msra.mxu0 %v4097
    %4172 = vmatpush.xpose.msra.mxu0 %v4094
    %4173 = vmatpush.xpose.msra.mxu0 %v4091
    %4174 = vmatpush.xpose.msra.mxu0 %v4088
    %4175 = vmatpush.xpose.msra.mxu0 %v4085
    %4176 = vmatpush.xpose.msra.mxu0 %v4082
    %4177 = vmatpush.xpose.msra.mxu0 %v4079
    %4178 = vmatpush.xpose.msra.mxu0 %v4076
    %4179 = vmatpush.xpose.msra.mxu0 %v4073
    %4180 = vmatpush.xpose.msra.mxu0 %v4070
    %4181 = vmatmul.f32.gmra.mxu0 %v1372
    %v4182 = vpop.f32.mrf.mxu0
    %v4183 = vadd.f32 %v1370, %v4182
    %4184 = vdwg.mxu0
    %4185 = vmatpush.xpose.msra.mxu0 %v4163
    %4186 = vmatpush.xpose.msra.mxu0 %v4160
    %4187 = vmatpush.xpose.msra.mxu0 %v4157
    %4188 = vmatpush.xpose.msra.mxu0 %v4154
    %4189 = vmatpush.xpose.msra.mxu0 %v4151
    %4190 = vmatpush.xpose.msra.mxu0 %v4148
    %4191 = vmatpush.xpose.msra.mxu0 %v4145
    %4192 = vmatpush.xpose.msra.mxu0 %v4142
    %4193 = vmatpush.xpose.msra.mxu0 %v4139
    %4194 = vmatpush.xpose.msra.mxu0 %v4136
    %4195 = vmatpush.xpose.msra.mxu0 %v4133
    %4196 = vmatpush.xpose.msra.mxu0 %v4130
    %4197 = vmatpush.xpose.msra.mxu0 %v4127
    %4198 = vmatpush.xpose.msra.mxu0 %v4124
    %4199 = vmatpush.xpose.msra.mxu0 %v4121
    %4200 = vmatpush.xpose.msra.mxu0 %v4118
    %4201 = vmatmul.f32.gmra.mxu0 %v1372
    %v4202 = vpop.f32.mrf.mxu0
    %v4203 = vadd.f32 %v1370, %v4202
    %4204 = vdwg.mxu0
    %v4207 = vrot.slane %v4203, 7
    %v4208 = vsel %vm1513, %v4183, %v4207
    %4210 = vst.msk [vmem:[#allocation3 + $0x4] sm:$0x3] %vm1519, %v4208
    %v4211 = vld [vmem:[%s0 + $0x300] sm:$0xff]
    %v4212 = vld [vmem:[%s0 + $0x308] sm:$0xff]
    %v4213 = vld [vmem:[%s0 + $0x310] sm:$0xff]
    %v4214 = vld [vmem:[%s0 + $0x318] sm:$0xff]
    %v4215 = vld [vmem:[%s0 + $0x320] sm:$0xff]
    %v4216 = vld [vmem:[%s0 + $0x328] sm:$0xff]
    %v4217 = vld [vmem:[%s0 + $0x330] sm:$0xff]
    %v4218 = vld [vmem:[%s0 + $0x338] sm:$0xff]
    %v4219 = vld [vmem:[%s0 + $0x340] sm:$0xff]
    %v4220 = vld [vmem:[%s0 + $0x348] sm:$0xff]
    %v4221 = vld [vmem:[%s0 + $0x350] sm:$0xff]
    %v4222 = vld [vmem:[%s0 + $0x358] sm:$0xff]
    %v4223 = vld [vmem:[%s0 + $0x360] sm:$0xff]
    %v4224 = vld [vmem:[%s0 + $0x368] sm:$0xff]
    %v4225 = vld [vmem:[%s0 + $0x370] sm:$0xff]
    %v4226 = vld [vmem:[%s0 + $0x378] sm:$0xff]
    %v4227 = vld [vmem:[%s0 + $0x380] sm:$0xff]
    %v4228 = vld [vmem:[%s0 + $0x388] sm:$0xff]
    %v4229 = vld [vmem:[%s0 + $0x390] sm:$0xff]
    %v4230 = vld [vmem:[%s0 + $0x398] sm:$0xff]
    %v4231 = vld [vmem:[%s0 + $0x3a0] sm:$0xff]
    %v4232 = vld [vmem:[%s0 + $0x3a8] sm:$0xff]
    %v4233 = vld [vmem:[%s0 + $0x3b0] sm:$0xff]
    %v4234 = vld [vmem:[%s0 + $0x3b8] sm:$0xff]
    %v4235 = vld [vmem:[%s0 + $0x3c0] sm:$0xff]
    %v4236 = vld [vmem:[%s0 + $0x3c8] sm:$0xff]
    %v4237 = vld [vmem:[%s0 + $0x3d0] sm:$0xff]
    %v4238 = vld [vmem:[%s0 + $0x3d8] sm:$0xff]
    %v4239 = vld [vmem:[%s0 + $0x3e0] sm:$0xff]
    %v4240 = vld [vmem:[%s0 + $0x3e8] sm:$0xff]
    %v4241 = vld [vmem:[%s0 + $0x3f0] sm:$0xff]
    %v4242 = vld [vmem:[%s0 + $0x3f8] sm:$0xff]
    %v4243 = vld [vmem:[%s1 + $0x300] sm:$0xff]
    %v4244 = vld [vmem:[%s1 + $0x308] sm:$0xff]
    %v4245 = vld [vmem:[%s1 + $0x310] sm:$0xff]
    %v4246 = vld [vmem:[%s1 + $0x318] sm:$0xff]
    %v4247 = vld [vmem:[%s1 + $0x320] sm:$0xff]
    %v4248 = vld [vmem:[%s1 + $0x328] sm:$0xff]
    %v4249 = vld [vmem:[%s1 + $0x330] sm:$0xff]
    %v4250 = vld [vmem:[%s1 + $0x338] sm:$0xff]
    %v4251 = vld [vmem:[%s1 + $0x340] sm:$0xff]
    %v4252 = vld [vmem:[%s1 + $0x348] sm:$0xff]
    %v4253 = vld [vmem:[%s1 + $0x350] sm:$0xff]
    %v4254 = vld [vmem:[%s1 + $0x358] sm:$0xff]
    %v4255 = vld [vmem:[%s1 + $0x360] sm:$0xff]
    %v4256 = vld [vmem:[%s1 + $0x368] sm:$0xff]
    %v4257 = vld [vmem:[%s1 + $0x370] sm:$0xff]
    %v4258 = vld [vmem:[%s1 + $0x378] sm:$0xff]
    %v4259 = vld [vmem:[%s1 + $0x380] sm:$0xff]
    %v4260 = vld [vmem:[%s1 + $0x388] sm:$0xff]
    %v4261 = vld [vmem:[%s1 + $0x390] sm:$0xff]
    %v4262 = vld [vmem:[%s1 + $0x398] sm:$0xff]
    %v4263 = vld [vmem:[%s1 + $0x3a0] sm:$0xff]
    %v4264 = vld [vmem:[%s1 + $0x3a8] sm:$0xff]
    %v4265 = vld [vmem:[%s1 + $0x3b0] sm:$0xff]
    %v4266 = vld [vmem:[%s1 + $0x3b8] sm:$0xff]
    %v4267 = vld [vmem:[%s1 + $0x3c0] sm:$0xff]
    %v4268 = vld [vmem:[%s1 + $0x3c8] sm:$0xff]
    %v4269 = vld [vmem:[%s1 + $0x3d0] sm:$0xff]
    %v4270 = vld [vmem:[%s1 + $0x3d8] sm:$0xff]
    %v4271 = vld [vmem:[%s1 + $0x3e0] sm:$0xff]
    %v4272 = vld [vmem:[%s1 + $0x3e8] sm:$0xff]
    %v4273 = vld [vmem:[%s1 + $0x3f0] sm:$0xff]
    %v4274 = vld [vmem:[%s1 + $0x3f8] sm:$0xff]
    %v4275 = vld [vmem:[%s2 + $0x300] sm:$0xff]
    %v4276 = vld [vmem:[%s2 + $0x308] sm:$0xff]
    %v4277 = vld [vmem:[%s2 + $0x310] sm:$0xff]
    %v4278 = vld [vmem:[%s2 + $0x318] sm:$0xff]
    %v4279 = vld [vmem:[%s2 + $0x320] sm:$0xff]
    %v4280 = vld [vmem:[%s2 + $0x328] sm:$0xff]
    %v4281 = vld [vmem:[%s2 + $0x330] sm:$0xff]
    %v4282 = vld [vmem:[%s2 + $0x338] sm:$0xff]
    %v4283 = vld [vmem:[%s2 + $0x340] sm:$0xff]
    %v4284 = vld [vmem:[%s2 + $0x348] sm:$0xff]
    %v4285 = vld [vmem:[%s2 + $0x350] sm:$0xff]
    %v4286 = vld [vmem:[%s2 + $0x358] sm:$0xff]
    %v4287 = vld [vmem:[%s2 + $0x360] sm:$0xff]
    %v4288 = vld [vmem:[%s2 + $0x368] sm:$0xff]
    %v4289 = vld [vmem:[%s2 + $0x370] sm:$0xff]
    %v4290 = vld [vmem:[%s2 + $0x378] sm:$0xff]
    %v4291 = vld [vmem:[%s2 + $0x380] sm:$0xff]
    %v4292 = vld [vmem:[%s2 + $0x388] sm:$0xff]
    %v4293 = vld [vmem:[%s2 + $0x390] sm:$0xff]
    %v4294 = vld [vmem:[%s2 + $0x398] sm:$0xff]
    %v4295 = vld [vmem:[%s2 + $0x3a0] sm:$0xff]
    %v4296 = vld [vmem:[%s2 + $0x3a8] sm:$0xff]
    %v4297 = vld [vmem:[%s2 + $0x3b0] sm:$0xff]
    %v4298 = vld [vmem:[%s2 + $0x3b8] sm:$0xff]
    %v4299 = vld [vmem:[%s2 + $0x3c0] sm:$0xff]
    %v4300 = vld [vmem:[%s2 + $0x3c8] sm:$0xff]
    %v4301 = vld [vmem:[%s2 + $0x3d0] sm:$0xff]
    %v4302 = vld [vmem:[%s2 + $0x3d8] sm:$0xff]
    %v4303 = vld [vmem:[%s2 + $0x3e0] sm:$0xff]
    %v4304 = vld [vmem:[%s2 + $0x3e8] sm:$0xff]
    %v4305 = vld [vmem:[%s2 + $0x3f0] sm:$0xff]
    %v4306 = vld [vmem:[%s2 + $0x3f8] sm:$0xff]
    %4307 = vset.pattern.permute.xlu0 0
    %4308 = vperm.xlu0 %4307, %v4211
    %v4309 = vpop.permute.xlu0 %4308
    %4310 = vset.pattern.permute.xlu0 0
    %4311 = vperm.xlu0 %4310, %v4212
    %v4312 = vpop.permute.xlu0 %4311
    %4313 = vset.pattern.permute.xlu0 0
    %4314 = vperm.xlu0 %4313, %v4213
    %v4315 = vpop.permute.xlu0 %4314
    %4316 = vset.pattern.permute.xlu0 0
    %4317 = vperm.xlu0 %4316, %v4214
    %v4318 = vpop.permute.xlu0 %4317
    %4319 = vset.pattern.permute.xlu0 0
    %4320 = vperm.xlu0 %4319, %v4215
    %v4321 = vpop.permute.xlu0 %4320
    %4322 = vset.pattern.permute.xlu0 0
    %4323 = vperm.xlu0 %4322, %v4216
    %v4324 = vpop.permute.xlu0 %4323
    %4325 = vset.pattern.permute.xlu0 0
    %4326 = vperm.xlu0 %4325, %v4217
    %v4327 = vpop.permute.xlu0 %4326
    %4328 = vset.pattern.permute.xlu0 0
    %4329 = vperm.xlu0 %4328, %v4218
    %v4330 = vpop.permute.xlu0 %4329
    %4331 = vset.pattern.permute.xlu0 0
    %4332 = vperm.xlu0 %4331, %v4219
    %v4333 = vpop.permute.xlu0 %4332
    %4334 = vset.pattern.permute.xlu0 0
    %4335 = vperm.xlu0 %4334, %v4220
    %v4336 = vpop.permute.xlu0 %4335
    %4337 = vset.pattern.permute.xlu0 0
    %4338 = vperm.xlu0 %4337, %v4221
    %v4339 = vpop.permute.xlu0 %4338
    %4340 = vset.pattern.permute.xlu0 0
    %4341 = vperm.xlu0 %4340, %v4222
    %v4342 = vpop.permute.xlu0 %4341
    %4343 = vset.pattern.permute.xlu0 0
    %4344 = vperm.xlu0 %4343, %v4223
    %v4345 = vpop.permute.xlu0 %4344
    %4346 = vset.pattern.permute.xlu0 0
    %4347 = vperm.xlu0 %4346, %v4224
    %v4348 = vpop.permute.xlu0 %4347
    %4349 = vset.pattern.permute.xlu0 0
    %4350 = vperm.xlu0 %4349, %v4225
    %v4351 = vpop.permute.xlu0 %4350
    %4352 = vset.pattern.permute.xlu0 0
    %4353 = vperm.xlu0 %4352, %v4226
    %v4354 = vpop.permute.xlu0 %4353
    %4355 = vset.pattern.permute.xlu0 0
    %4356 = vperm.xlu0 %4355, %v4227
    %v4357 = vpop.permute.xlu0 %4356
    %4358 = vset.pattern.permute.xlu0 0
    %4359 = vperm.xlu0 %4358, %v4228
    %v4360 = vpop.permute.xlu0 %4359
    %4361 = vset.pattern.permute.xlu0 0
    %4362 = vperm.xlu0 %4361, %v4229
    %v4363 = vpop.permute.xlu0 %4362
    %4364 = vset.pattern.permute.xlu0 0
    %4365 = vperm.xlu0 %4364, %v4230
    %v4366 = vpop.permute.xlu0 %4365
    %4367 = vset.pattern.permute.xlu0 0
    %4368 = vperm.xlu0 %4367, %v4231
    %v4369 = vpop.permute.xlu0 %4368
    %4370 = vset.pattern.permute.xlu0 0
    %4371 = vperm.xlu0 %4370, %v4232
    %v4372 = vpop.permute.xlu0 %4371
    %4373 = vset.pattern.permute.xlu0 0
    %4374 = vperm.xlu0 %4373, %v4233
    %v4375 = vpop.permute.xlu0 %4374
    %4376 = vset.pattern.permute.xlu0 0
    %4377 = vperm.xlu0 %4376, %v4234
    %v4378 = vpop.permute.xlu0 %4377
    %4379 = vset.pattern.permute.xlu0 0
    %4380 = vperm.xlu0 %4379, %v4235
    %v4381 = vpop.permute.xlu0 %4380
    %4382 = vset.pattern.permute.xlu0 0
    %4383 = vperm.xlu0 %4382, %v4236
    %v4384 = vpop.permute.xlu0 %4383
    %4385 = vset.pattern.permute.xlu0 0
    %4386 = vperm.xlu0 %4385, %v4237
    %v4387 = vpop.permute.xlu0 %4386
    %4388 = vset.pattern.permute.xlu0 0
    %4389 = vperm.xlu0 %4388, %v4238
    %v4390 = vpop.permute.xlu0 %4389
    %4391 = vset.pattern.permute.xlu0 0
    %4392 = vperm.xlu0 %4391, %v4239
    %v4393 = vpop.permute.xlu0 %4392
    %4394 = vset.pattern.permute.xlu0 0
    %4395 = vperm.xlu0 %4394, %v4240
    %v4396 = vpop.permute.xlu0 %4395
    %4397 = vset.pattern.permute.xlu0 0
    %4398 = vperm.xlu0 %4397, %v4241
    %v4399 = vpop.permute.xlu0 %4398
    %4400 = vset.pattern.permute.xlu0 0
    %4401 = vperm.xlu0 %4400, %v4242
    %v4402 = vpop.permute.xlu0 %4401
    %vm4403 = vcmp.eq.s32.totalorder %v4309, %v162
    %vm4404 = vcmp.eq.s32.totalorder %v4312, %v162
    %vm4405 = vcmp.eq.s32.totalorder %v4315, %v162
    %vm4406 = vcmp.eq.s32.totalorder %v4318, %v162
    %vm4407 = vcmp.eq.s32.totalorder %v4321, %v162
    %vm4408 = vcmp.eq.s32.totalorder %v4324, %v162
    %vm4409 = vcmp.eq.s32.totalorder %v4327, %v162
    %vm4410 = vcmp.eq.s32.totalorder %v4330, %v162
    %vm4411 = vcmp.eq.s32.totalorder %v4333, %v162
    %vm4412 = vcmp.eq.s32.totalorder %v4336, %v162
    %vm4413 = vcmp.eq.s32.totalorder %v4339, %v162
    %vm4414 = vcmp.eq.s32.totalorder %v4342, %v162
    %vm4415 = vcmp.eq.s32.totalorder %v4345, %v162
    %vm4416 = vcmp.eq.s32.totalorder %v4348, %v162
    %vm4417 = vcmp.eq.s32.totalorder %v4351, %v162
    %vm4418 = vcmp.eq.s32.totalorder %v4354, %v162
    %vm4419 = vcmp.eq.s32.totalorder %v4357, %v162
    %vm4420 = vcmp.eq.s32.totalorder %v4360, %v162
    %vm4421 = vcmp.eq.s32.totalorder %v4363, %v162
    %vm4422 = vcmp.eq.s32.totalorder %v4366, %v162
    %vm4423 = vcmp.eq.s32.totalorder %v4369, %v162
    %vm4424 = vcmp.eq.s32.totalorder %v4372, %v162
    %vm4425 = vcmp.eq.s32.totalorder %v4375, %v162
    %vm4426 = vcmp.eq.s32.totalorder %v4378, %v162
    %vm4427 = vcmp.eq.s32.totalorder %v4381, %v162
    %vm4428 = vcmp.eq.s32.totalorder %v4384, %v162
    %vm4429 = vcmp.eq.s32.totalorder %v4387, %v162
    %vm4430 = vcmp.eq.s32.totalorder %v4390, %v162
    %vm4431 = vcmp.eq.s32.totalorder %v4393, %v162
    %vm4432 = vcmp.eq.s32.totalorder %v4396, %v162
    %vm4433 = vcmp.eq.s32.totalorder %v4399, %v162
    %vm4434 = vcmp.eq.s32.totalorder %v4402, %v162
    %v4435 = vsel %vm4403, 1, 0
    %v4436 = vsel %vm4404, 1, 0
    %v4437 = vsel %vm4405, 1, 0
    %v4438 = vsel %vm4406, 1, 0
    %v4439 = vsel %vm4407, 1, 0
    %v4440 = vsel %vm4408, 1, 0
    %v4441 = vsel %vm4409, 1, 0
    %v4442 = vsel %vm4410, 1, 0
    %v4443 = vsel %vm4411, 1, 0
    %v4444 = vsel %vm4412, 1, 0
    %v4445 = vsel %vm4413, 1, 0
    %v4446 = vsel %vm4414, 1, 0
    %v4447 = vsel %vm4415, 1, 0
    %v4448 = vsel %vm4416, 1, 0
    %v4449 = vsel %vm4417, 1, 0
    %v4450 = vsel %vm4418, 1, 0
    %v4451 = vsel %vm4419, 1, 0
    %v4452 = vsel %vm4420, 1, 0
    %v4453 = vsel %vm4421, 1, 0
    %v4454 = vsel %vm4422, 1, 0
    %v4455 = vsel %vm4423, 1, 0
    %v4456 = vsel %vm4424, 1, 0
    %v4457 = vsel %vm4425, 1, 0
    %v4458 = vsel %vm4426, 1, 0
    %v4459 = vsel %vm4427, 1, 0
    %v4460 = vsel %vm4428, 1, 0
    %v4461 = vsel %vm4429, 1, 0
    %v4462 = vsel %vm4430, 1, 0
    %v4463 = vsel %vm4431, 1, 0
    %v4464 = vsel %vm4432, 1, 0
    %v4465 = vsel %vm4433, 1, 0
    %v4466 = vsel %vm4434, 1, 0
    %v4467 = vcvt.s32.f32 %v4435
    %v4468 = vcvt.s32.f32 %v4436
    %v4469 = vcvt.s32.f32 %v4437
    %v4470 = vcvt.s32.f32 %v4438
    %v4471 = vcvt.s32.f32 %v4439
    %v4472 = vcvt.s32.f32 %v4440
    %v4473 = vcvt.s32.f32 %v4441
    %v4474 = vcvt.s32.f32 %v4442
    %v4475 = vcvt.s32.f32 %v4443
    %v4476 = vcvt.s32.f32 %v4444
    %v4477 = vcvt.s32.f32 %v4445
    %v4478 = vcvt.s32.f32 %v4446
    %v4479 = vcvt.s32.f32 %v4447
    %v4480 = vcvt.s32.f32 %v4448
    %v4481 = vcvt.s32.f32 %v4449
    %v4482 = vcvt.s32.f32 %v4450
    %v4483 = vcvt.s32.f32 %v4451
    %v4484 = vcvt.s32.f32 %v4452
    %v4485 = vcvt.s32.f32 %v4453
    %v4486 = vcvt.s32.f32 %v4454
    %v4487 = vcvt.s32.f32 %v4455
    %v4488 = vcvt.s32.f32 %v4456
    %v4489 = vcvt.s32.f32 %v4457
    %v4490 = vcvt.s32.f32 %v4458
    %v4491 = vcvt.s32.f32 %v4459
    %v4492 = vcvt.s32.f32 %v4460
    %v4493 = vcvt.s32.f32 %v4461
    %v4494 = vcvt.s32.f32 %v4462
    %v4495 = vcvt.s32.f32 %v4463
    %v4496 = vcvt.s32.f32 %v4464
    %v4497 = vcvt.s32.f32 %v4465
    %v4498 = vcvt.s32.f32 %v4466
    %4499 = vset.pattern.permute.xlu0 0
    %4500 = vperm.xlu0 %4499, %v4243
    %v4501 = vpop.permute.xlu0 %4500
    %4502 = vset.pattern.permute.xlu0 0
    %4503 = vperm.xlu0 %4502, %v4244
    %v4504 = vpop.permute.xlu0 %4503
    %4505 = vset.pattern.permute.xlu0 0
    %4506 = vperm.xlu0 %4505, %v4245
    %v4507 = vpop.permute.xlu0 %4506
    %4508 = vset.pattern.permute.xlu0 0
    %4509 = vperm.xlu0 %4508, %v4246
    %v4510 = vpop.permute.xlu0 %4509
    %4511 = vset.pattern.permute.xlu0 0
    %4512 = vperm.xlu0 %4511, %v4247
    %v4513 = vpop.permute.xlu0 %4512
    %4514 = vset.pattern.permute.xlu0 0
    %4515 = vperm.xlu0 %4514, %v4248
    %v4516 = vpop.permute.xlu0 %4515
    %4517 = vset.pattern.permute.xlu0 0
    %4518 = vperm.xlu0 %4517, %v4249
    %v4519 = vpop.permute.xlu0 %4518
    %4520 = vset.pattern.permute.xlu0 0
    %4521 = vperm.xlu0 %4520, %v4250
    %v4522 = vpop.permute.xlu0 %4521
    %4523 = vset.pattern.permute.xlu0 0
    %4524 = vperm.xlu0 %4523, %v4251
    %v4525 = vpop.permute.xlu0 %4524
    %4526 = vset.pattern.permute.xlu0 0
    %4527 = vperm.xlu0 %4526, %v4252
    %v4528 = vpop.permute.xlu0 %4527
    %4529 = vset.pattern.permute.xlu0 0
    %4530 = vperm.xlu0 %4529, %v4253
    %v4531 = vpop.permute.xlu0 %4530
    %4532 = vset.pattern.permute.xlu0 0
    %4533 = vperm.xlu0 %4532, %v4254
    %v4534 = vpop.permute.xlu0 %4533
    %4535 = vset.pattern.permute.xlu0 0
    %4536 = vperm.xlu0 %4535, %v4255
    %v4537 = vpop.permute.xlu0 %4536
    %4538 = vset.pattern.permute.xlu0 0
    %4539 = vperm.xlu0 %4538, %v4256
    %v4540 = vpop.permute.xlu0 %4539
    %4541 = vset.pattern.permute.xlu0 0
    %4542 = vperm.xlu0 %4541, %v4257
    %v4543 = vpop.permute.xlu0 %4542
    %4544 = vset.pattern.permute.xlu0 0
    %4545 = vperm.xlu0 %4544, %v4258
    %v4546 = vpop.permute.xlu0 %4545
    %4547 = vset.pattern.permute.xlu0 0
    %4548 = vperm.xlu0 %4547, %v4259
    %v4549 = vpop.permute.xlu0 %4548
    %4550 = vset.pattern.permute.xlu0 0
    %4551 = vperm.xlu0 %4550, %v4260
    %v4552 = vpop.permute.xlu0 %4551
    %4553 = vset.pattern.permute.xlu0 0
    %4554 = vperm.xlu0 %4553, %v4261
    %v4555 = vpop.permute.xlu0 %4554
    %4556 = vset.pattern.permute.xlu0 0
    %4557 = vperm.xlu0 %4556, %v4262
    %v4558 = vpop.permute.xlu0 %4557
    %4559 = vset.pattern.permute.xlu0 0
    %4560 = vperm.xlu0 %4559, %v4263
    %v4561 = vpop.permute.xlu0 %4560
    %4562 = vset.pattern.permute.xlu0 0
    %4563 = vperm.xlu0 %4562, %v4264
    %v4564 = vpop.permute.xlu0 %4563
    %4565 = vset.pattern.permute.xlu0 0
    %4566 = vperm.xlu0 %4565, %v4265
    %v4567 = vpop.permute.xlu0 %4566
    %4568 = vset.pattern.permute.xlu0 0
    %4569 = vperm.xlu0 %4568, %v4266
    %v4570 = vpop.permute.xlu0 %4569
    %4571 = vset.pattern.permute.xlu0 0
    %4572 = vperm.xlu0 %4571, %v4267
    %v4573 = vpop.permute.xlu0 %4572
    %4574 = vset.pattern.permute.xlu0 0
    %4575 = vperm.xlu0 %4574, %v4268
    %v4576 = vpop.permute.xlu0 %4575
    %4577 = vset.pattern.permute.xlu0 0
    %4578 = vperm.xlu0 %4577, %v4269
    %v4579 = vpop.permute.xlu0 %4578
    %4580 = vset.pattern.permute.xlu0 0
    %4581 = vperm.xlu0 %4580, %v4270
    %v4582 = vpop.permute.xlu0 %4581
    %4583 = vset.pattern.permute.xlu0 0
    %4584 = vperm.xlu0 %4583, %v4271
    %v4585 = vpop.permute.xlu0 %4584
    %4586 = vset.pattern.permute.xlu0 0
    %4587 = vperm.xlu0 %4586, %v4272
    %v4588 = vpop.permute.xlu0 %4587
    %4589 = vset.pattern.permute.xlu0 0
    %4590 = vperm.xlu0 %4589, %v4273
    %v4591 = vpop.permute.xlu0 %4590
    %4592 = vset.pattern.permute.xlu0 0
    %4593 = vperm.xlu0 %4592, %v4274
    %v4594 = vpop.permute.xlu0 %4593
    %vm4595 = vcmp.eq.s32.totalorder %v4501, %v162
    %vm4596 = vcmp.eq.s32.totalorder %v4504, %v162
    %vm4597 = vcmp.eq.s32.totalorder %v4507, %v162
    %vm4598 = vcmp.eq.s32.totalorder %v4510, %v162
    %vm4599 = vcmp.eq.s32.totalorder %v4513, %v162
    %vm4600 = vcmp.eq.s32.totalorder %v4516, %v162
    %vm4601 = vcmp.eq.s32.totalorder %v4519, %v162
    %vm4602 = vcmp.eq.s32.totalorder %v4522, %v162
    %vm4603 = vcmp.eq.s32.totalorder %v4525, %v162
    %vm4604 = vcmp.eq.s32.totalorder %v4528, %v162
    %vm4605 = vcmp.eq.s32.totalorder %v4531, %v162
    %vm4606 = vcmp.eq.s32.totalorder %v4534, %v162
    %vm4607 = vcmp.eq.s32.totalorder %v4537, %v162
    %vm4608 = vcmp.eq.s32.totalorder %v4540, %v162
    %vm4609 = vcmp.eq.s32.totalorder %v4543, %v162
    %vm4610 = vcmp.eq.s32.totalorder %v4546, %v162
    %vm4611 = vcmp.eq.s32.totalorder %v4549, %v162
    %vm4612 = vcmp.eq.s32.totalorder %v4552, %v162
    %vm4613 = vcmp.eq.s32.totalorder %v4555, %v162
    %vm4614 = vcmp.eq.s32.totalorder %v4558, %v162
    %vm4615 = vcmp.eq.s32.totalorder %v4561, %v162
    %vm4616 = vcmp.eq.s32.totalorder %v4564, %v162
    %vm4617 = vcmp.eq.s32.totalorder %v4567, %v162
    %vm4618 = vcmp.eq.s32.totalorder %v4570, %v162
    %vm4619 = vcmp.eq.s32.totalorder %v4573, %v162
    %vm4620 = vcmp.eq.s32.totalorder %v4576, %v162
    %vm4621 = vcmp.eq.s32.totalorder %v4579, %v162
    %vm4622 = vcmp.eq.s32.totalorder %v4582, %v162
    %vm4623 = vcmp.eq.s32.totalorder %v4585, %v162
    %vm4624 = vcmp.eq.s32.totalorder %v4588, %v162
    %vm4625 = vcmp.eq.s32.totalorder %v4591, %v162
    %vm4626 = vcmp.eq.s32.totalorder %v4594, %v162
    %v4627 = vsel %vm4595, 1, 0
    %v4628 = vsel %vm4596, 1, 0
    %v4629 = vsel %vm4597, 1, 0
    %v4630 = vsel %vm4598, 1, 0
    %v4631 = vsel %vm4599, 1, 0
    %v4632 = vsel %vm4600, 1, 0
    %v4633 = vsel %vm4601, 1, 0
    %v4634 = vsel %vm4602, 1, 0
    %v4635 = vsel %vm4603, 1, 0
    %v4636 = vsel %vm4604, 1, 0
    %v4637 = vsel %vm4605, 1, 0
    %v4638 = vsel %vm4606, 1, 0
    %v4639 = vsel %vm4607, 1, 0
    %v4640 = vsel %vm4608, 1, 0
    %v4641 = vsel %vm4609, 1, 0
    %v4642 = vsel %vm4610, 1, 0
    %v4643 = vsel %vm4611, 1, 0
    %v4644 = vsel %vm4612, 1, 0
    %v4645 = vsel %vm4613, 1, 0
    %v4646 = vsel %vm4614, 1, 0
    %v4647 = vsel %vm4615, 1, 0
    %v4648 = vsel %vm4616, 1, 0
    %v4649 = vsel %vm4617, 1, 0
    %v4650 = vsel %vm4618, 1, 0
    %v4651 = vsel %vm4619, 1, 0
    %v4652 = vsel %vm4620, 1, 0
    %v4653 = vsel %vm4621, 1, 0
    %v4654 = vsel %vm4622, 1, 0
    %v4655 = vsel %vm4623, 1, 0
    %v4656 = vsel %vm4624, 1, 0
    %v4657 = vsel %vm4625, 1, 0
    %v4658 = vsel %vm4626, 1, 0
    %v4659 = vcvt.s32.f32 %v4627
    %v4660 = vcvt.s32.f32 %v4628
    %v4661 = vcvt.s32.f32 %v4629
    %v4662 = vcvt.s32.f32 %v4630
    %v4663 = vcvt.s32.f32 %v4631
    %v4664 = vcvt.s32.f32 %v4632
    %v4665 = vcvt.s32.f32 %v4633
    %v4666 = vcvt.s32.f32 %v4634
    %v4667 = vcvt.s32.f32 %v4635
    %v4668 = vcvt.s32.f32 %v4636
    %v4669 = vcvt.s32.f32 %v4637
    %v4670 = vcvt.s32.f32 %v4638
    %v4671 = vcvt.s32.f32 %v4639
    %v4672 = vcvt.s32.f32 %v4640
    %v4673 = vcvt.s32.f32 %v4641
    %v4674 = vcvt.s32.f32 %v4642
    %v4675 = vcvt.s32.f32 %v4643
    %v4676 = vcvt.s32.f32 %v4644
    %v4677 = vcvt.s32.f32 %v4645
    %v4678 = vcvt.s32.f32 %v4646
    %v4679 = vcvt.s32.f32 %v4647
    %v4680 = vcvt.s32.f32 %v4648
    %v4681 = vcvt.s32.f32 %v4649
    %v4682 = vcvt.s32.f32 %v4650
    %v4683 = vcvt.s32.f32 %v4651
    %v4684 = vcvt.s32.f32 %v4652
    %v4685 = vcvt.s32.f32 %v4653
    %v4686 = vcvt.s32.f32 %v4654
    %v4687 = vcvt.s32.f32 %v4655
    %v4688 = vcvt.s32.f32 %v4656
    %v4689 = vcvt.s32.f32 %v4657
    %v4690 = vcvt.s32.f32 %v4658
    %v4692 = vsel %vm643, %v4659, 0
    %v4695 = vsel %vm643, %v4660, 0
    %v4698 = vsel %vm643, %v4661, 0
    %v4701 = vsel %vm643, %v4662, 0
    %v4704 = vsel %vm643, %v4663, 0
    %v4707 = vsel %vm643, %v4664, 0
    %v4710 = vsel %vm643, %v4665, 0
    %v4713 = vsel %vm643, %v4666, 0
    %v4716 = vsel %vm643, %v4667, 0
    %v4719 = vsel %vm643, %v4668, 0
    %v4722 = vsel %vm643, %v4669, 0
    %v4725 = vsel %vm643, %v4670, 0
    %v4728 = vsel %vm643, %v4671, 0
    %v4731 = vsel %vm643, %v4672, 0
    %v4734 = vsel %vm643, %v4673, 0
    %v4737 = vsel %vm643, %v4674, 0
    %v4740 = vsel %vm643, %v4675, 0
    %v4743 = vsel %vm643, %v4676, 0
    %v4746 = vsel %vm643, %v4677, 0
    %v4749 = vsel %vm643, %v4678, 0
    %v4752 = vsel %vm643, %v4679, 0
    %v4755 = vsel %vm643, %v4680, 0
    %v4758 = vsel %vm643, %v4681, 0
    %v4761 = vsel %vm643, %v4682, 0
    %v4764 = vsel %vm643, %v4683, 0
    %v4767 = vsel %vm643, %v4684, 0
    %v4770 = vsel %vm643, %v4685, 0
    %v4773 = vsel %vm643, %v4686, 0
    %v4776 = vsel %vm643, %v4687, 0
    %v4779 = vsel %vm643, %v4688, 0
    %v4782 = vsel %vm643, %v4689, 0
    %v4785 = vsel %vm643, %v4690, 0
    %4787 = vmatpush.msra.mxu0 0.0
    %4788 = vmatpush.msra.mxu0 0.0
    %4789 = vmatpush.msra.mxu0 0.0
    %4790 = vmatpush.msra.mxu0 0.0
    %4791 = vmatpush.msra.mxu0 0.0
    %4792 = vmatpush.msra.mxu0 0.0
    %4793 = vmatpush.msra.mxu0 0.0
    %4794 = vmatpush.msra.mxu0 0.0
    %4795 = vmatpush.msra.mxu0 %v159
    %4796 = vmatpush.msra.mxu0 %v156
    %4797 = vmatpush.msra.mxu0 %v153
    %4798 = vmatpush.msra.mxu0 %v150
    %4799 = vmatpush.msra.mxu0 %v147
    %4800 = vmatpush.msra.mxu0 %v144
    %4801 = vmatpush.msra.mxu0 %v141
    %4802 = vmatpush.msra.mxu0 %v138
    %4803 = vmatmul.f32.gmra.mxu0 %v4692
    %v4804 = vpop.f32.mrf.mxu0
    %v4805 = vadd.f32 0.0, %v4804
    %4806 = vmatmul.f32.gmra.mxu0 %v4695
    %v4807 = vpop.f32.mrf.mxu0
    %v4808 = vadd.f32 0.0, %v4807
    %4809 = vmatmul.f32.gmra.mxu0 %v4698
    %v4810 = vpop.f32.mrf.mxu0
    %v4811 = vadd.f32 0.0, %v4810
    %4812 = vmatmul.f32.gmra.mxu0 %v4701
    %v4813 = vpop.f32.mrf.mxu0
    %v4814 = vadd.f32 0.0, %v4813
    %4815 = vmatmul.f32.gmra.mxu0 %v4704
    %v4816 = vpop.f32.mrf.mxu0
    %v4817 = vadd.f32 0.0, %v4816
    %4818 = vmatmul.f32.gmra.mxu0 %v4707
    %v4819 = vpop.f32.mrf.mxu0
    %v4820 = vadd.f32 0.0, %v4819
    %4821 = vmatmul.f32.gmra.mxu0 %v4710
    %v4822 = vpop.f32.mrf.mxu0
    %v4823 = vadd.f32 0.0, %v4822
    %4824 = vmatmul.f32.gmra.mxu0 %v4713
    %v4825 = vpop.f32.mrf.mxu0
    %v4826 = vadd.f32 0.0, %v4825
    %4827 = vmatmul.f32.gmra.mxu0 %v4716
    %v4828 = vpop.f32.mrf.mxu0
    %v4829 = vadd.f32 0.0, %v4828
    %4830 = vmatmul.f32.gmra.mxu0 %v4719
    %v4831 = vpop.f32.mrf.mxu0
    %v4832 = vadd.f32 0.0, %v4831
    %4833 = vmatmul.f32.gmra.mxu0 %v4722
    %v4834 = vpop.f32.mrf.mxu0
    %v4835 = vadd.f32 0.0, %v4834
    %4836 = vmatmul.f32.gmra.mxu0 %v4725
    %v4837 = vpop.f32.mrf.mxu0
    %v4838 = vadd.f32 0.0, %v4837
    %4839 = vmatmul.f32.gmra.mxu0 %v4728
    %v4840 = vpop.f32.mrf.mxu0
    %v4841 = vadd.f32 0.0, %v4840
    %4842 = vmatmul.f32.gmra.mxu0 %v4731
    %v4843 = vpop.f32.mrf.mxu0
    %v4844 = vadd.f32 0.0, %v4843
    %4845 = vmatmul.f32.gmra.mxu0 %v4734
    %v4846 = vpop.f32.mrf.mxu0
    %v4847 = vadd.f32 0.0, %v4846
    %4848 = vmatmul.f32.gmra.mxu0 %v4737
    %v4849 = vpop.f32.mrf.mxu0
    %v4850 = vadd.f32 0.0, %v4849
    %4851 = vmatmul.f32.gmra.mxu0 %v4740
    %v4852 = vpop.f32.mrf.mxu0
    %v4853 = vadd.f32 0.0, %v4852
    %4854 = vmatmul.f32.gmra.mxu0 %v4743
    %v4855 = vpop.f32.mrf.mxu0
    %v4856 = vadd.f32 0.0, %v4855
    %4857 = vmatmul.f32.gmra.mxu0 %v4746
    %v4858 = vpop.f32.mrf.mxu0
    %v4859 = vadd.f32 0.0, %v4858
    %4860 = vmatmul.f32.gmra.mxu0 %v4749
    %v4861 = vpop.f32.mrf.mxu0
    %v4862 = vadd.f32 0.0, %v4861
    %4863 = vmatmul.f32.gmra.mxu0 %v4752
    %v4864 = vpop.f32.mrf.mxu0
    %v4865 = vadd.f32 0.0, %v4864
    %4866 = vmatmul.f32.gmra.mxu0 %v4755
    %v4867 = vpop.f32.mrf.mxu0
    %v4868 = vadd.f32 0.0, %v4867
    %4869 = vmatmul.f32.gmra.mxu0 %v4758
    %v4870 = vpop.f32.mrf.mxu0
    %v4871 = vadd.f32 0.0, %v4870
    %4872 = vmatmul.f32.gmra.mxu0 %v4761
    %v4873 = vpop.f32.mrf.mxu0
    %v4874 = vadd.f32 0.0, %v4873
    %4875 = vmatmul.f32.gmra.mxu0 %v4764
    %v4876 = vpop.f32.mrf.mxu0
    %v4877 = vadd.f32 0.0, %v4876
    %4878 = vmatmul.f32.gmra.mxu0 %v4767
    %v4879 = vpop.f32.mrf.mxu0
    %v4880 = vadd.f32 0.0, %v4879
    %4881 = vmatmul.f32.gmra.mxu0 %v4770
    %v4882 = vpop.f32.mrf.mxu0
    %v4883 = vadd.f32 0.0, %v4882
    %4884 = vmatmul.f32.gmra.mxu0 %v4773
    %v4885 = vpop.f32.mrf.mxu0
    %v4886 = vadd.f32 0.0, %v4885
    %4887 = vmatmul.f32.gmra.mxu0 %v4776
    %v4888 = vpop.f32.mrf.mxu0
    %v4889 = vadd.f32 0.0, %v4888
    %4890 = vmatmul.f32.gmra.mxu0 %v4779
    %v4891 = vpop.f32.mrf.mxu0
    %v4892 = vadd.f32 0.0, %v4891
    %4893 = vmatmul.f32.gmra.mxu0 %v4782
    %v4894 = vpop.f32.mrf.mxu0
    %v4895 = vadd.f32 0.0, %v4894
    %4896 = vmatmul.f32.gmra.mxu0 %v4785
    %v4897 = vpop.f32.mrf.mxu0
    %v4898 = vadd.f32 0.0, %v4897
    %4899 = vdwg.mxu0
    %v4901 = vsel %vm643, %v4467, 0
    %v4904 = vsel %vm643, %v4468, 0
    %v4907 = vsel %vm643, %v4469, 0
    %v4910 = vsel %vm643, %v4470, 0
    %v4913 = vsel %vm643, %v4471, 0
    %v4916 = vsel %vm643, %v4472, 0
    %v4919 = vsel %vm643, %v4473, 0
    %v4922 = vsel %vm643, %v4474, 0
    %v4925 = vsel %vm643, %v4475, 0
    %v4928 = vsel %vm643, %v4476, 0
    %v4931 = vsel %vm643, %v4477, 0
    %v4934 = vsel %vm643, %v4478, 0
    %v4937 = vsel %vm643, %v4479, 0
    %v4940 = vsel %vm643, %v4480, 0
    %v4943 = vsel %vm643, %v4481, 0
    %v4946 = vsel %vm643, %v4482, 0
    %v4949 = vsel %vm643, %v4483, 0
    %v4952 = vsel %vm643, %v4484, 0
    %v4955 = vsel %vm643, %v4485, 0
    %v4958 = vsel %vm643, %v4486, 0
    %v4961 = vsel %vm643, %v4487, 0
    %v4964 = vsel %vm643, %v4488, 0
    %v4967 = vsel %vm643, %v4489, 0
    %v4970 = vsel %vm643, %v4490, 0
    %v4973 = vsel %vm643, %v4491, 0
    %v4976 = vsel %vm643, %v4492, 0
    %v4979 = vsel %vm643, %v4493, 0
    %v4982 = vsel %vm643, %v4494, 0
    %v4985 = vsel %vm643, %v4495, 0
    %v4988 = vsel %vm643, %v4496, 0
    %v4991 = vsel %vm643, %v4497, 0
    %v4994 = vsel %vm643, %v4498, 0
    %4996 = vmatpush.msra.mxu0 0.0
    %4997 = vmatpush.msra.mxu0 0.0
    %4998 = vmatpush.msra.mxu0 0.0
    %4999 = vmatpush.msra.mxu0 0.0
    %5000 = vmatpush.msra.mxu0 0.0
    %5001 = vmatpush.msra.mxu0 0.0
    %5002 = vmatpush.msra.mxu0 0.0
    %5003 = vmatpush.msra.mxu0 0.0
    %5004 = vmatpush.msra.mxu0 %v118
    %5005 = vmatpush.msra.mxu0 %v115
    %5006 = vmatpush.msra.mxu0 %v112
    %5007 = vmatpush.msra.mxu0 %v109
    %5008 = vmatpush.msra.mxu0 %v106
    %5009 = vmatpush.msra.mxu0 %v103
    %5010 = vmatpush.msra.mxu0 %v100
    %5011 = vmatpush.msra.mxu0 %v97
    %5012 = vmatmul.f32.gmra.mxu0 %v4901
    %v5013 = vpop.f32.mrf.mxu0
    %v5014 = vadd.f32 %v4805, %v5013
    %5015 = vmatmul.f32.gmra.mxu0 %v4904
    %v5016 = vpop.f32.mrf.mxu0
    %v5017 = vadd.f32 %v4808, %v5016
    %5018 = vmatmul.f32.gmra.mxu0 %v4907
    %v5019 = vpop.f32.mrf.mxu0
    %v5020 = vadd.f32 %v4811, %v5019
    %5021 = vmatmul.f32.gmra.mxu0 %v4910
    %v5022 = vpop.f32.mrf.mxu0
    %v5023 = vadd.f32 %v4814, %v5022
    %5024 = vmatmul.f32.gmra.mxu0 %v4913
    %v5025 = vpop.f32.mrf.mxu0
    %v5026 = vadd.f32 %v4817, %v5025
    %5027 = vmatmul.f32.gmra.mxu0 %v4916
    %v5028 = vpop.f32.mrf.mxu0
    %v5029 = vadd.f32 %v4820, %v5028
    %5030 = vmatmul.f32.gmra.mxu0 %v4919
    %v5031 = vpop.f32.mrf.mxu0
    %v5032 = vadd.f32 %v4823, %v5031
    %5033 = vmatmul.f32.gmra.mxu0 %v4922
    %v5034 = vpop.f32.mrf.mxu0
    %v5035 = vadd.f32 %v4826, %v5034
    %5036 = vmatmul.f32.gmra.mxu0 %v4925
    %v5037 = vpop.f32.mrf.mxu0
    %v5038 = vadd.f32 %v4829, %v5037
    %5039 = vmatmul.f32.gmra.mxu0 %v4928
    %v5040 = vpop.f32.mrf.mxu0
    %v5041 = vadd.f32 %v4832, %v5040
    %5042 = vmatmul.f32.gmra.mxu0 %v4931
    %v5043 = vpop.f32.mrf.mxu0
    %v5044 = vadd.f32 %v4835, %v5043
    %5045 = vmatmul.f32.gmra.mxu0 %v4934
    %v5046 = vpop.f32.mrf.mxu0
    %v5047 = vadd.f32 %v4838, %v5046
    %5048 = vmatmul.f32.gmra.mxu0 %v4937
    %v5049 = vpop.f32.mrf.mxu0
    %v5050 = vadd.f32 %v4841, %v5049
    %5051 = vmatmul.f32.gmra.mxu0 %v4940
    %v5052 = vpop.f32.mrf.mxu0
    %v5053 = vadd.f32 %v4844, %v5052
    %5054 = vmatmul.f32.gmra.mxu0 %v4943
    %v5055 = vpop.f32.mrf.mxu0
    %v5056 = vadd.f32 %v4847, %v5055
    %5057 = vmatmul.f32.gmra.mxu0 %v4946
    %v5058 = vpop.f32.mrf.mxu0
    %v5059 = vadd.f32 %v4850, %v5058
    %5060 = vmatmul.f32.gmra.mxu0 %v4949
    %v5061 = vpop.f32.mrf.mxu0
    %v5062 = vadd.f32 %v4853, %v5061
    %5063 = vmatmul.f32.gmra.mxu0 %v4952
    %v5064 = vpop.f32.mrf.mxu0
    %v5065 = vadd.f32 %v4856, %v5064
    %5066 = vmatmul.f32.gmra.mxu0 %v4955
    %v5067 = vpop.f32.mrf.mxu0
    %v5068 = vadd.f32 %v4859, %v5067
    %5069 = vmatmul.f32.gmra.mxu0 %v4958
    %v5070 = vpop.f32.mrf.mxu0
    %v5071 = vadd.f32 %v4862, %v5070
    %5072 = vmatmul.f32.gmra.mxu0 %v4961
    %v5073 = vpop.f32.mrf.mxu0
    %v5074 = vadd.f32 %v4865, %v5073
    %5075 = vmatmul.f32.gmra.mxu0 %v4964
    %v5076 = vpop.f32.mrf.mxu0
    %v5077 = vadd.f32 %v4868, %v5076
    %5078 = vmatmul.f32.gmra.mxu0 %v4967
    %v5079 = vpop.f32.mrf.mxu0
    %v5080 = vadd.f32 %v4871, %v5079
    %5081 = vmatmul.f32.gmra.mxu0 %v4970
    %v5082 = vpop.f32.mrf.mxu0
    %v5083 = vadd.f32 %v4874, %v5082
    %5084 = vmatmul.f32.gmra.mxu0 %v4973
    %v5085 = vpop.f32.mrf.mxu0
    %v5086 = vadd.f32 %v4877, %v5085
    %5087 = vmatmul.f32.gmra.mxu0 %v4976
    %v5088 = vpop.f32.mrf.mxu0
    %v5089 = vadd.f32 %v4880, %v5088
    %5090 = vmatmul.f32.gmra.mxu0 %v4979
    %v5091 = vpop.f32.mrf.mxu0
    %v5092 = vadd.f32 %v4883, %v5091
    %5093 = vmatmul.f32.gmra.mxu0 %v4982
    %v5094 = vpop.f32.mrf.mxu0
    %v5095 = vadd.f32 %v4886, %v5094
    %5096 = vmatmul.f32.gmra.mxu0 %v4985
    %v5097 = vpop.f32.mrf.mxu0
    %v5098 = vadd.f32 %v4889, %v5097
    %5099 = vmatmul.f32.gmra.mxu0 %v4988
    %v5100 = vpop.f32.mrf.mxu0
    %v5101 = vadd.f32 %v4892, %v5100
    %5102 = vmatmul.f32.gmra.mxu0 %v4991
    %v5103 = vpop.f32.mrf.mxu0
    %v5104 = vadd.f32 %v4895, %v5103
    %5105 = vmatmul.f32.gmra.mxu0 %v4994
    %v5106 = vpop.f32.mrf.mxu0
    %v5107 = vadd.f32 %v4898, %v5106
    %5108 = vdwg.mxu0
    %v5110 = vsel %vm54, %v4275, 0
    %v5113 = vsel %vm54, %v4276, 0
    %v5116 = vsel %vm54, %v4277, 0
    %v5119 = vsel %vm54, %v4278, 0
    %v5122 = vsel %vm54, %v4279, 0
    %v5125 = vsel %vm54, %v4280, 0
    %v5128 = vsel %vm54, %v4281, 0
    %v5131 = vsel %vm54, %v4282, 0
    %v5134 = vsel %vm54, %v4283, 0
    %v5137 = vsel %vm54, %v4284, 0
    %v5140 = vsel %vm54, %v4285, 0
    %v5143 = vsel %vm54, %v4286, 0
    %v5146 = vsel %vm54, %v4287, 0
    %v5149 = vsel %vm54, %v4288, 0
    %v5152 = vsel %vm54, %v4289, 0
    %v5155 = vsel %vm54, %v4290, 0
    %v5158 = vsel %vm54, %v4291, 0
    %v5161 = vsel %vm54, %v4292, 0
    %v5164 = vsel %vm54, %v4293, 0
    %v5167 = vsel %vm54, %v4294, 0
    %v5170 = vsel %vm54, %v4295, 0
    %v5173 = vsel %vm54, %v4296, 0
    %v5176 = vsel %vm54, %v4297, 0
    %v5179 = vsel %vm54, %v4298, 0
    %v5182 = vsel %vm54, %v4299, 0
    %v5185 = vsel %vm54, %v4300, 0
    %v5188 = vsel %vm54, %v4301, 0
    %v5191 = vsel %vm54, %v4302, 0
    %v5194 = vsel %vm54, %v4303, 0
    %v5197 = vsel %vm54, %v4304, 0
    %v5200 = vsel %vm54, %v4305, 0
    %v5203 = vsel %vm54, %v4306, 0
    %5205 = vmatpush.msra.mxu0 0.0
    %5206 = vmatpush.msra.mxu0 0.0
    %5207 = vmatpush.msra.mxu0 0.0
    %5208 = vmatpush.msra.mxu0 0.0
    %5209 = vmatpush.msra.mxu0 0.0
    %5210 = vmatpush.msra.mxu0 0.0
    %5211 = vmatpush.msra.mxu0 0.0
    %5212 = vmatpush.msra.mxu0 0.0
    %5213 = vmatpush.msra.mxu0 0.0
    %5214 = vmatpush.msra.mxu0 0.0
    %5215 = vmatpush.msra.mxu0 0.0
    %5216 = vmatpush.msra.mxu0 0.0
    %5217 = vmatpush.msra.mxu0 %v50
    %5218 = vmatpush.msra.mxu0 %v49
    %5219 = vmatpush.msra.mxu0 %v48
    %5220 = vmatpush.msra.mxu0 %v47
    %5221 = vmatmul.f32.gmra.mxu0 %v5110
    %v5222 = vpop.f32.mrf.mxu0
    %v5223 = vadd.f32 0.0, %v5222
    %5224 = vmatmul.f32.gmra.mxu0 %v5113
    %v5225 = vpop.f32.mrf.mxu0
    %v5226 = vadd.f32 0.0, %v5225
    %5227 = vmatmul.f32.gmra.mxu0 %v5116
    %v5228 = vpop.f32.mrf.mxu0
    %v5229 = vadd.f32 0.0, %v5228
    %5230 = vmatmul.f32.gmra.mxu0 %v5119
    %v5231 = vpop.f32.mrf.mxu0
    %v5232 = vadd.f32 0.0, %v5231
    %5233 = vmatmul.f32.gmra.mxu0 %v5122
    %v5234 = vpop.f32.mrf.mxu0
    %v5235 = vadd.f32 0.0, %v5234
    %5236 = vmatmul.f32.gmra.mxu0 %v5125
    %v5237 = vpop.f32.mrf.mxu0
    %v5238 = vadd.f32 0.0, %v5237
    %5239 = vmatmul.f32.gmra.mxu0 %v5128
    %v5240 = vpop.f32.mrf.mxu0
    %v5241 = vadd.f32 0.0, %v5240
    %5242 = vmatmul.f32.gmra.mxu0 %v5131
    %v5243 = vpop.f32.mrf.mxu0
    %v5244 = vadd.f32 0.0, %v5243
    %5245 = vmatmul.f32.gmra.mxu0 %v5134
    %v5246 = vpop.f32.mrf.mxu0
    %v5247 = vadd.f32 0.0, %v5246
    %5248 = vmatmul.f32.gmra.mxu0 %v5137
    %v5249 = vpop.f32.mrf.mxu0
    %v5250 = vadd.f32 0.0, %v5249
    %5251 = vmatmul.f32.gmra.mxu0 %v5140
    %v5252 = vpop.f32.mrf.mxu0
    %v5253 = vadd.f32 0.0, %v5252
    %5254 = vmatmul.f32.gmra.mxu0 %v5143
    %v5255 = vpop.f32.mrf.mxu0
    %v5256 = vadd.f32 0.0, %v5255
    %5257 = vmatmul.f32.gmra.mxu0 %v5146
    %v5258 = vpop.f32.mrf.mxu0
    %v5259 = vadd.f32 0.0, %v5258
    %5260 = vmatmul.f32.gmra.mxu0 %v5149
    %v5261 = vpop.f32.mrf.mxu0
    %v5262 = vadd.f32 0.0, %v5261
    %5263 = vmatmul.f32.gmra.mxu0 %v5152
    %v5264 = vpop.f32.mrf.mxu0
    %v5265 = vadd.f32 0.0, %v5264
    %5266 = vmatmul.f32.gmra.mxu0 %v5155
    %v5267 = vpop.f32.mrf.mxu0
    %v5268 = vadd.f32 0.0, %v5267
    %5269 = vmatmul.f32.gmra.mxu0 %v5158
    %v5270 = vpop.f32.mrf.mxu0
    %v5271 = vadd.f32 0.0, %v5270
    %5272 = vmatmul.f32.gmra.mxu0 %v5161
    %v5273 = vpop.f32.mrf.mxu0
    %v5274 = vadd.f32 0.0, %v5273
    %5275 = vmatmul.f32.gmra.mxu0 %v5164
    %v5276 = vpop.f32.mrf.mxu0
    %v5277 = vadd.f32 0.0, %v5276
    %5278 = vmatmul.f32.gmra.mxu0 %v5167
    %v5279 = vpop.f32.mrf.mxu0
    %v5280 = vadd.f32 0.0, %v5279
    %5281 = vmatmul.f32.gmra.mxu0 %v5170
    %v5282 = vpop.f32.mrf.mxu0
    %v5283 = vadd.f32 0.0, %v5282
    %5284 = vmatmul.f32.gmra.mxu0 %v5173
    %v5285 = vpop.f32.mrf.mxu0
    %v5286 = vadd.f32 0.0, %v5285
    %5287 = vmatmul.f32.gmra.mxu0 %v5176
    %v5288 = vpop.f32.mrf.mxu0
    %v5289 = vadd.f32 0.0, %v5288
    %5290 = vmatmul.f32.gmra.mxu0 %v5179
    %v5291 = vpop.f32.mrf.mxu0
    %v5292 = vadd.f32 0.0, %v5291
    %5293 = vmatmul.f32.gmra.mxu0 %v5182
    %v5294 = vpop.f32.mrf.mxu0
    %v5295 = vadd.f32 0.0, %v5294
    %5296 = vmatmul.f32.gmra.mxu0 %v5185
    %v5297 = vpop.f32.mrf.mxu0
    %v5298 = vadd.f32 0.0, %v5297
    %5299 = vmatmul.f32.gmra.mxu0 %v5188
    %v5300 = vpop.f32.mrf.mxu0
    %v5301 = vadd.f32 0.0, %v5300
    %5302 = vmatmul.f32.gmra.mxu0 %v5191
    %v5303 = vpop.f32.mrf.mxu0
    %v5304 = vadd.f32 0.0, %v5303
    %5305 = vmatmul.f32.gmra.mxu0 %v5194
    %v5306 = vpop.f32.mrf.mxu0
    %v5307 = vadd.f32 0.0, %v5306
    %5308 = vmatmul.f32.gmra.mxu0 %v5197
    %v5309 = vpop.f32.mrf.mxu0
    %v5310 = vadd.f32 0.0, %v5309
    %5311 = vmatmul.f32.gmra.mxu0 %v5200
    %v5312 = vpop.f32.mrf.mxu0
    %v5313 = vadd.f32 0.0, %v5312
    %5314 = vmatmul.f32.gmra.mxu0 %v5203
    %v5315 = vpop.f32.mrf.mxu0
    %v5316 = vadd.f32 0.0, %v5315
    %5317 = vdwg.mxu0
    %v5318 = vadd.f32 %v5014, %v5223
    %v5319 = vadd.f32 %v5017, %v5226
    %v5320 = vadd.f32 %v5020, %v5229
    %v5321 = vadd.f32 %v5023, %v5232
    %v5322 = vadd.f32 %v5026, %v5235
    %v5323 = vadd.f32 %v5029, %v5238
    %v5324 = vadd.f32 %v5032, %v5241
    %v5325 = vadd.f32 %v5035, %v5244
    %v5326 = vadd.f32 %v5038, %v5247
    %v5327 = vadd.f32 %v5041, %v5250
    %v5328 = vadd.f32 %v5044, %v5253
    %v5329 = vadd.f32 %v5047, %v5256
    %v5330 = vadd.f32 %v5050, %v5259
    %v5331 = vadd.f32 %v5053, %v5262
    %v5332 = vadd.f32 %v5056, %v5265
    %v5333 = vadd.f32 %v5059, %v5268
    %v5334 = vadd.f32 %v5062, %v5271
    %v5335 = vadd.f32 %v5065, %v5274
    %v5336 = vadd.f32 %v5068, %v5277
    %v5337 = vadd.f32 %v5071, %v5280
    %v5338 = vadd.f32 %v5074, %v5283
    %v5339 = vadd.f32 %v5077, %v5286
    %v5340 = vadd.f32 %v5080, %v5289
    %v5341 = vadd.f32 %v5083, %v5292
    %v5342 = vadd.f32 %v5086, %v5295
    %v5343 = vadd.f32 %v5089, %v5298
    %v5344 = vadd.f32 %v5092, %v5301
    %v5345 = vadd.f32 %v5095, %v5304
    %v5346 = vadd.f32 %v5098, %v5307
    %v5347 = vadd.f32 %v5101, %v5310
    %v5348 = vadd.f32 %v5104, %v5313
    %v5349 = vadd.f32 %v5107, %v5316
    %v5350 = vadd.f32 %v5318, %v1304
    %v5351 = vadd.f32 %v5319, %v1304
    %v5352 = vadd.f32 %v5320, %v1304
    %v5353 = vadd.f32 %v5321, %v1304
    %v5354 = vadd.f32 %v5322, %v1304
    %v5355 = vadd.f32 %v5323, %v1304
    %v5356 = vadd.f32 %v5324, %v1304
    %v5357 = vadd.f32 %v5325, %v1304
    %v5358 = vadd.f32 %v5326, %v1304
    %v5359 = vadd.f32 %v5327, %v1304
    %v5360 = vadd.f32 %v5328, %v1304
    %v5361 = vadd.f32 %v5329, %v1304
    %v5362 = vadd.f32 %v5330, %v1304
    %v5363 = vadd.f32 %v5331, %v1304
    %v5364 = vadd.f32 %v5332, %v1304
    %v5365 = vadd.f32 %v5333, %v1304
    %v5366 = vadd.f32 %v5334, %v1304
    %v5367 = vadd.f32 %v5335, %v1304
    %v5368 = vadd.f32 %v5336, %v1304
    %v5369 = vadd.f32 %v5337, %v1304
    %v5370 = vadd.f32 %v5338, %v1304
    %v5371 = vadd.f32 %v5339, %v1304
    %v5372 = vadd.f32 %v5340, %v1304
    %v5373 = vadd.f32 %v5341, %v1304
    %v5374 = vadd.f32 %v5342, %v1304
    %v5375 = vadd.f32 %v5343, %v1304
    %v5376 = vadd.f32 %v5344, %v1304
    %v5377 = vadd.f32 %v5345, %v1304
    %v5378 = vadd.f32 %v5346, %v1304
    %v5379 = vadd.f32 %v5347, %v1304
    %v5380 = vadd.f32 %v5348, %v1304
    %v5381 = vadd.f32 %v5349, %v1304
    %v5382 = vmax.f32 %v5350, 0.0
    %v5383 = vmax.f32 %v5351, 0.0
    %v5384 = vmax.f32 %v5352, 0.0
    %v5385 = vmax.f32 %v5353, 0.0
    %v5386 = vmax.f32 %v5354, 0.0
    %v5387 = vmax.f32 %v5355, 0.0
    %v5388 = vmax.f32 %v5356, 0.0
    %v5389 = vmax.f32 %v5357, 0.0
    %v5390 = vmax.f32 %v5358, 0.0
    %v5391 = vmax.f32 %v5359, 0.0
    %v5392 = vmax.f32 %v5360, 0.0
    %v5393 = vmax.f32 %v5361, 0.0
    %v5394 = vmax.f32 %v5362, 0.0
    %v5395 = vmax.f32 %v5363, 0.0
    %v5396 = vmax.f32 %v5364, 0.0
    %v5397 = vmax.f32 %v5365, 0.0
    %v5398 = vmax.f32 %v5366, 0.0
    %v5399 = vmax.f32 %v5367, 0.0
    %v5400 = vmax.f32 %v5368, 0.0
    %v5401 = vmax.f32 %v5369, 0.0
    %v5402 = vmax.f32 %v5370, 0.0
    %v5403 = vmax.f32 %v5371, 0.0
    %v5404 = vmax.f32 %v5372, 0.0
    %v5405 = vmax.f32 %v5373, 0.0
    %v5406 = vmax.f32 %v5374, 0.0
    %v5407 = vmax.f32 %v5375, 0.0
    %v5408 = vmax.f32 %v5376, 0.0
    %v5409 = vmax.f32 %v5377, 0.0
    %v5410 = vmax.f32 %v5378, 0.0
    %v5411 = vmax.f32 %v5379, 0.0
    %v5412 = vmax.f32 %v5380, 0.0
    %v5413 = vmax.f32 %v5381, 0.0
    %v5415 = vsel %vm54, %v5382, 0
    %v5418 = vsel %vm54, %v5383, 0
    %v5421 = vsel %vm54, %v5384, 0
    %v5424 = vsel %vm54, %v5385, 0
    %v5427 = vsel %vm54, %v5386, 0
    %v5430 = vsel %vm54, %v5387, 0
    %v5433 = vsel %vm54, %v5388, 0
    %v5436 = vsel %vm54, %v5389, 0
    %v5439 = vsel %vm54, %v5390, 0
    %v5442 = vsel %vm54, %v5391, 0
    %v5445 = vsel %vm54, %v5392, 0
    %v5448 = vsel %vm54, %v5393, 0
    %v5451 = vsel %vm54, %v5394, 0
    %v5454 = vsel %vm54, %v5395, 0
    %v5457 = vsel %vm54, %v5396, 0
    %v5460 = vsel %vm54, %v5397, 0
    %v5463 = vsel %vm54, %v5398, 0
    %v5466 = vsel %vm54, %v5399, 0
    %v5469 = vsel %vm54, %v5400, 0
    %v5472 = vsel %vm54, %v5401, 0
    %v5475 = vsel %vm54, %v5402, 0
    %v5478 = vsel %vm54, %v5403, 0
    %v5481 = vsel %vm54, %v5404, 0
    %v5484 = vsel %vm54, %v5405, 0
    %v5487 = vsel %vm54, %v5406, 0
    %v5490 = vsel %vm54, %v5407, 0
    %v5493 = vsel %vm54, %v5408, 0
    %v5496 = vsel %vm54, %v5409, 0
    %v5499 = vsel %vm54, %v5410, 0
    %v5502 = vsel %vm54, %v5411, 0
    %v5505 = vsel %vm54, %v5412, 0
    %v5508 = vsel %vm54, %v5413, 0
    %5510 = vmatpush.xpose.msra.mxu0 %v5460
    %5511 = vmatpush.xpose.msra.mxu0 %v5457
    %5512 = vmatpush.xpose.msra.mxu0 %v5454
    %5513 = vmatpush.xpose.msra.mxu0 %v5451
    %5514 = vmatpush.xpose.msra.mxu0 %v5448
    %5515 = vmatpush.xpose.msra.mxu0 %v5445
    %5516 = vmatpush.xpose.msra.mxu0 %v5442
    %5517 = vmatpush.xpose.msra.mxu0 %v5439
    %5518 = vmatpush.xpose.msra.mxu0 %v5436
    %5519 = vmatpush.xpose.msra.mxu0 %v5433
    %5520 = vmatpush.xpose.msra.mxu0 %v5430
    %5521 = vmatpush.xpose.msra.mxu0 %v5427
    %5522 = vmatpush.xpose.msra.mxu0 %v5424
    %5523 = vmatpush.xpose.msra.mxu0 %v5421
    %5524 = vmatpush.xpose.msra.mxu0 %v5418
    %5525 = vmatpush.xpose.msra.mxu0 %v5415
    %5526 = vmatmul.f32.gmra.mxu0 %v1372
    %v5527 = vpop.f32.mrf.mxu0
    %v5528 = vadd.f32 %v1370, %v5527
    %5529 = vdwg.mxu0
    %5530 = vmatpush.xpose.msra.mxu0 %v5508
    %5531 = vmatpush.xpose.msra.mxu0 %v5505
    %5532 = vmatpush.xpose.msra.mxu0 %v5502
    %5533 = vmatpush.xpose.msra.mxu0 %v5499
    %5534 = vmatpush.xpose.msra.mxu0 %v5496
    %5535 = vmatpush.xpose.msra.mxu0 %v5493
    %5536 = vmatpush.xpose.msra.mxu0 %v5490
    %5537 = vmatpush.xpose.msra.mxu0 %v5487
    %5538 = vmatpush.xpose.msra.mxu0 %v5484
    %5539 = vmatpush.xpose.msra.mxu0 %v5481
    %5540 = vmatpush.xpose.msra.mxu0 %v5478
    %5541 = vmatpush.xpose.msra.mxu0 %v5475
    %5542 = vmatpush.xpose.msra.mxu0 %v5472
    %5543 = vmatpush.xpose.msra.mxu0 %v5469
    %5544 = vmatpush.xpose.msra.mxu0 %v5466
    %5545 = vmatpush.xpose.msra.mxu0 %v5463
    %5546 = vmatmul.f32.gmra.mxu0 %v1372
    %v5547 = vpop.f32.mrf.mxu0
    %v5548 = vadd.f32 %v1370, %v5547
    %5549 = vdwg.mxu0
    %v5552 = vrot.slane %v5548, 7
    %v5553 = vsel %vm1513, %v5528, %v5552
    %5555 = vst.msk [vmem:[#allocation3 + $0x6] sm:$0x3] %vm1519, %v5553
    // Predicated region
    $region34: #{tpu_custom_call.1} parent=1 // pred_check
      _
    $region35: #{tpu_custom_call.1} parent=1 // pred_check_branch
      %5557 = sbr.rel (0) target = $region37
    $region36: #{tpu_custom_call.1} parent=1 // pred_region
      %5559 = vsyncadd [#allocation4], 0
      %s5561 = sshll.u32 [#allocation3], 4
      %s5562 = int_to_ptr.vmem [resolvable:$true] %s5561
      %s5563 = sshll.u32 %s8, 4
      %s5564 = int_to_ptr.hbm [resolvable:$true] %s5563
      %5566 = dma.vmem_to_hbm [thread:$0]  %s5562, 128, %s5564, [#allocation4]
    $region37: #{tpu_custom_call.1} parent=1 // pred_fallthru
      _
    // Predicated region
    $region38: #{tpu_custom_call.1} parent=1 // pred_check
      _
    $region39: #{tpu_custom_call.1} parent=1 // pred_check_branch
      %5568 = sbr.rel (0) target = $region41
    $region40: #{tpu_custom_call.1} parent=1 // pred_region
      %5570 = dma.done [#allocation4], 128
    $region41: #{tpu_custom_call.1} parent=1 // pred_fallthru
      _
    %5571 = vsyncpa [#allocation4], 1

</llo_original>
